<compile_context>
chip_gen: v5e
topology: v5e:2x2
jax: 0.10.0
libtpu: 0.0.40
codegen_flags: <defaults>
</compile_context>

<pallas_src>
import functools

import jax
import jax.numpy as jnp
from jax.experimental import pallas as pl
from jax.experimental.pallas import tpu as pltpu

NEG_SLOPE = 0.2
BN_EPS = 1e-5
LANE = 128
MAX_TILE_ROWS = 1024                 # row-tile cap: keeps per-step VMEM small
VMEM_LIMIT = 48 * 1024 * 1024        # explicit scoped-VMEM cap (v5e default=16MiB)


def _round_up(x, m):
    return ((x + m - 1) // m) * m


# ---------------------------------------------------------------- kernel ----
def _fused_conv_kernel(x_ref, w_ref, b_ref, *out_refs, offs, tile_rows,
                       w_inner, w_out, m_rows, pre_lrelu, act_out, want_stats):
    """One (batch, row-tile) cell of a 3x3 (or folded 2x2) conv.

    x_ref : (1, LP, Ce)     bf16  flattened, halo-padded input (full rows)
    w_ref : (T*Ce, CoutP)   bf16  taps concatenated along K, CoutP lane-dense
    b_ref : (1, CoutP)      f32   bias (zeros for BN layers)
    out_refs[0]             y     (1, tile_rows, CoutP)
    out_refs[1:3]           BN partial sum / sumsq, (1, 8, CoutP) f32
    """
    cout_p = w_ref.shape[-1]
    max_off = max(offs)
    r0 = pl.multiple_of(pl.program_id(1) * tile_rows, 8)

    # Load this tile's rows (+ halo) once; apply the previous layer's
    # LeakyReLU once here (hoisted out of the taps).  The mean was already
    # subtracted in the wrapper pad copy and 1/std is folded into w_ref, so
    # only the LeakyReLU remains; halo zeros stay zero, matching PyTorch's
    # zero padding applied after the activation.
    strip = x_ref[0, pl.ds(r0, tile_rows + max_off), :].astype(jnp.float32)
    if pre_lrelu:
        strip = jnp.where(strip >= 0.0, strip, NEG_SLOPE * strip)

    # im2col along K, VMEM-only: one lane-dim concat + ONE MXU dot
    # (K = T*Ce = 64..1152) instead of T small-K dots with f32 acc RMW.
    xcat = jnp.concatenate(
        [strip[off:off + tile_rows, :] for off in offs], axis=-1)
    acc = jnp.dot(xcat.astype(jnp.bfloat16), w_ref[...],
                  preferred_element_type=jnp.float32)
    acc = acc + b_ref[...]

    y_ref = out_refs[0]
    if act_out:                                          # fused LeakyReLU(0.2)
        y_ref[0] = jnp.where(acc >= 0.0, acc,
                             NEG_SLOPE * acc).astype(y_ref.dtype)
    else:
        y_ref[0] = acc.astype(y_ref.dtype)

    if want_stats:
        # Fused BatchNorm statistics; mask wrap-around columns and the rows
        # past the last real output row (allocation tail).
        sum_ref, sq_ref = out_refs[1], out_refs[2]
        rows = r0 + jax.lax.broadcasted_iota(jnp.int32, (tile_rows, 1), 0)
        valid = jnp.logical_and(rows < m_rows, rows % w_inner < w_out)
        yv = jnp.where(valid, acc, 0.0)
        srow = jnp.sum(yv, axis=0, keepdims=True)            # (1, CoutP)
        sqrow = jnp.sum(yv * yv, axis=0, keepdims=True)
        row0 = jax.lax.broadcasted_iota(jnp.int32, (8, cout_p), 0) == 0
        sum_ref[0] = jnp.where(row0, srow, 0.0)
        sq_ref[0] = jnp.where(row0, sqrow, 0.0)


# --------------------------------------------------------- weight folding ---
def _fold_w_stride1(w_pt, invstd, cout_p):
    # (Cout, Cin, 3, 3) -> (9*Cin, CoutP); row index = (kh*3+kw)*Cin + c.
    cout, cin = w_pt.shape[0], w_pt.shape[1]
    wf = w_pt.astype(jnp.float32)
    if invstd is not None:
        wf = wf * invstd[None, :, None, None]
    wt = jnp.transpose(wf, (2, 3, 1, 0)).reshape(9 * cin, cout)
    wt = jnp.pad(wt, ((0, 0), (0, cout_p - cout)))
    return wt.astype(jnp.bfloat16)


def _fold_w_stride2(w_pt, invstd, cout_p):
    # stride-2 3x3 conv == 2x2 stride-1 conv on a space-to-depth input
    # (4*Cin channels).  Taps concatenated along K -> (16*Cin, CoutP).
    cout, cin = w_pt.shape[0], w_pt.shape[1]
    wf = w_pt.astype(jnp.float32)
    if invstd is not None:
        wf = wf * invstd[None, :, None, None]
    w4 = jnp.pad(wf, ((0, 0), (0, 0), (0, 1), (0, 1)))        # 3x3 -> 4x4 taps
    taps = []
    for bh in range(2):
        for bw in range(2):
            sub = w4[:, :, 2 * bh:2 * bh + 2, 2 * bw:2 * bw + 2]  # (co,ci,2,2)
            taps.append(jnp.transpose(sub, (2, 3, 1, 0)).reshape(4 * cin, cout))
    wt = jnp.concatenate(taps, axis=0)                        # (16*Cin, Cout)
    wt = jnp.pad(wt, ((0, 0), (0, cout_p - cout)))
    return wt.astype(jnp.bfloat16)


# -------------------------------------------------------------- one layer ---
def fused_conv_layer(x_nhwc, w_pt, bias, *, stride, pre_lrelu, act_out,
                     want_stats, mean=None, invstd=None,
                     out_dtype=jnp.bfloat16):
    n, h, wdim, cin = x_nhwc.shape
    cout = w_pt.shape[0]
    cout_p = _round_up(cout, LANE)

    xf = x_nhwc.astype(jnp.float32)
    if mean is not None:
        xf = xf - mean.reshape(1, 1, 1, cin)      # rides the halo-pad copy
    xb = xf.astype(jnp.bfloat16)
    xp = jnp.pad(xb, ((0, 0), (1, 1), (1, 1), (0, 0)))        # conv zero halo
    hp, wp = h + 2, wdim + 2

    if stride == 2:
        # TODO(synk): space-to-depth is still one XLA transpose pass per
        # stride-2 layer; doing it in-kernel (strided loads) would remove it.
        ho, wo = (h - 1) // 2 + 1, (wdim - 1) // 2 + 1
        if hp % 2:
            xp = jnp.pad(xp, ((0, 0), (0, 1), (0, 0), (0, 0))); hp += 1
        if wp % 2:
            xp = jnp.pad(xp, ((0, 0), (0, 0), (0, 1), (0, 0))); wp += 1
        hb, wb = hp // 2, wp // 2
        xs = xp.reshape(n, hb, 2, wb, 2, cin).transpose(0, 1, 3, 2, 4, 5)
        xs = xs.reshape(n, hb * wb, 4 * cin)                  # space-to-depth
        w_inner, lp, ce = wb, hb * wb, 4 * cin
        offs = tuple(bh * wb + bw for bh in range(2) for bw in range(2))
        wt = _fold_w_stride2(w_pt, invstd, cout_p)
    else:
        ho, wo = h, wdim
        xs = xp.reshape(n, hp * wp, cin)
        w_inner, lp, ce = wp, hp * wp, cin
        offs = tuple(kh * wp + kw for kh in range(3) for kw in range(3))
        wt = _fold_w_stride1(w_pt, invstd, cout_p)

    max_off = max(offs)
    m_rows = (ho - 1) * w_inner + wo          # last real output row + 1
    rows_needed = ho * w_inner                # rows the (ho, w_inner) view needs
    tile_rows = min(_round_up(rows_needed, 8), MAX_TILE_ROWS)
    n_tiles = pl.cdiv(rows_needed, tile_rows)
    rows_alloc = n_tiles * tile_rows
    lp_alloc = max(lp, max_off + rows_alloc)  # keep all in-kernel slices in-bounds
    if lp_alloc > lp:
        xs = jnp.pad(xs, ((0, 0), (0, lp_alloc - lp), (0, 0)))

    bvec = jnp.zeros((1, cout_p), jnp.float32)
    if bias is not None:
        bvec = bvec.at[0, :cout].set(bias.astype(jnp.float32))

    kern = functools.partial(
        _fused_conv_kernel, offs=offs, tile_rows=tile_rows, w_inner=w_inner,
        w_out=wo, m_rows=m_rows, pre_lrelu=pre_lrelu, act_out=act_out,
        want_stats=want_stats)

    out_shapes = [jax.ShapeDtypeStruct((n, rows_alloc, cout_p), out_dtype)]
    out_specs = [pl.BlockSpec((1, tile_rows, cout_p), lambda b, r: (b, r, 0))]
    if want_stats:
        out_shapes += [jax.ShapeDtypeStruct((n, n_tiles * 8, cout_p),
                                            jnp.float32)] * 2
        out_specs += [pl.BlockSpec((1, 8, cout_p), lambda b, r: (b, r, 0))] * 2

    res = pl.pallas_call(
        kern,
        out_shape=tuple(out_shapes),
        grid=(n, n_tiles),
        in_specs=[
            # full input rows resident per batch element (row tiles re-use it);
            # weights and bias are grid-invariant.
            pl.BlockSpec((1, lp_alloc, ce), lambda b, r: (b, 0, 0)),
            pl.BlockSpec(wt.shape, lambda b, r: (0, 0)),
            pl.BlockSpec((1, cout_p), lambda b, r: (0, 0)),
        ],
        out_specs=tuple(out_specs),
        compiler_params=pltpu.CompilerParams(
            dimension_semantics=("parallel", "parallel"),
            vmem_limit_bytes=VMEM_LIMIT),
    )(xs, wt, bvec)

    y = res[0]
    if rows_alloc != rows_needed:
        y = y[:, :rows_needed, :]
    # View as (ho, w_inner) and drop wrap columns / padded lanes; these slices
    # fuse into the next layer's pad copy (no standalone pad pass anymore).
    y = y.reshape(n, ho, w_inner, cout_p)[:, :, :wo, :cout]

    if not want_stats:
        return y, None

    cnt = float(n * ho * wo)
    ssum = jnp.sum(res[1], axis=(0, 1))[:cout]
    ssq = jnp.sum(res[2], axis=(0, 1))[:cout]
    mu = ssum / cnt
    var = jnp.maximum(ssq / cnt - mu * mu, 0.0)
    # TODO(synk): E[x^2]-E[x]^2 in f32 can cancel at very large pixel counts;
    # a mean-shifted two-pass reduction would be more robust for big images.
    return y, (mu, jax.lax.rsqrt(var + BN_EPS))


# ----------------------------------------------------------- model set-up ---
def build_cfg(input_nc=4, ndf=16, n_layers=5):
    # Mirrors NLayerDiscriminator(input_nc, ndf, n_layers, BatchNorm2d,
    # use_sigmoid=False): use_bias=False for BN-followed convs.
    cfg = [dict(cin=input_nc, cout=ndf, stride=2, bias=True, bn=False,
                act_out=True)]
    nf = 1
    for nlay in range(1, n_layers - 2):
        nf_prev, nf = nf, min(2 ** nlay, 8)
        cfg.append(dict(cin=ndf * nf_prev, cout=ndf * nf, stride=2,
                        bias=False, bn=True, act_out=False))
    nf_prev, nf = nf, min(2 ** n_layers, 8)
    cfg.append(dict(cin=ndf * nf_prev, cout=ndf * nf, stride=1,
                    bias=False, bn=True, act_out=False))
    cfg.append(dict(cin=ndf * nf, cout=1, stride=1, bias=True, bn=False,
                    act_out=False))
    return cfg


def init_params(key, cfg):
    weights = []
    for lc in cfg:
        key, kw, kb = jax.random.split(key, 3)
        fan_in = lc["cin"] * 9
        w = (jax.random.normal(kw, (lc["cout"], lc["cin"], 3, 3), jnp.float32)
             / jnp.sqrt(float(fan_in)))
        b = (jax.random.normal(kb, (lc["cout"],), jnp.float32) * 0.01
             if lc["bias"] else None)
        weights.append(dict(w=w, b=b))
    return weights


def forward(weights, x_nchw, cfg):
    x = jnp.transpose(x_nchw, (0, 2, 3, 1))       # NCHW -> NHWC (once, at edge)
    stats = None                                  # pending BN of previous layer
    for idx, (wts, lc) in enumerate(zip(weights, cfg)):
        is_last = idx == len(cfg) - 1
        x, stats = fused_conv_layer(
            x, wts["w"], wts["b"],
            stride=lc["stride"],
            pre_lrelu=stats is not None,
            act_out=lc["act_out"],
            want_stats=lc["bn"],
            mean=None if stats is None else stats[0],
            invstd=None if stats is None else stats[1],
            out_dtype=jnp.float32 if is_last else jnp.bfloat16)
    return jnp.transpose(x, (0, 3, 1, 2))          # NHWC -> NCHW


if __name__ == "__main__":
    cfg = build_cfg(input_nc=4, ndf=16, n_layers=5)
    weights = init_params(jax.random.PRNGKey(1), cfg)
    x = jax.random.normal(jax.random.PRNGKey(0), (2, 4, 16, 16), jnp.float32)

    fwd = jax.jit(functools.partial(forward, cfg=cfg))   # cfg static (closure)
    y = fwd(weights, x)
    jax.block_until_ready(y)

    assert y.shape == (2, 1, 2, 2), y.shape
    assert bool(jnp.all(jnp.isfinite(y)))
    print("KERNEL_OK")
</pallas_src>

<mosaic_0001>
module attributes {stable_mosaic.version = 11 : i64} {
  func.func @_fused_conv_kernel(%arg0: i32, %arg1: i32, %arg2: memref<1x82x16xbf16, #tpu.memory_space<vmem>>, %arg3: memref<64x128xbf16, #tpu.memory_space<vmem>>, %arg4: memref<1x128xf32, #tpu.memory_space<vmem>>, %arg5: memref<1x72x128xbf16, #tpu.memory_space<vmem>>) attributes {dimension_semantics = [#tpu.dimension_semantics<parallel>, #tpu.dimension_semantics<parallel>], iteration_bounds = array<i64: 2, 1>, scalar_prefetch = 0 : i64, scratch_operands = 0 : i64, tpu.core_type = #tpu.core_type<tc>, window_params = [{transform_indices = @transform_0, window_bounds = array<i64: 1, 82, 16>}, {pipeline_mode = #tpu.pipeline_mode<synchronous>, transform_indices = @transform_1, window_bounds = array<i64: 64, 128>}, {pipeline_mode = #tpu.pipeline_mode<synchronous>, transform_indices = @transform_2, window_bounds = array<i64: 1, 128>}, {transform_indices = @transform_3, window_bounds = array<i64: 1, 72, 128>}]} {
    %c72_i32 = arith.constant 72 : i32
    %0 = arith.muli %arg1, %c72_i32 : i32
    %1 = tpu.assume_multiple %0, 8 : i32
    %c0 = arith.constant 0 : index
    %2 = arith.index_cast %1 : i32 to index
    %c0_0 = arith.constant 0 : index
    %3 = vector.load %arg2[%c0, %2, %c0_0] : memref<1x82x16xbf16, #tpu.memory_space<vmem>>, vector<1x82x16xbf16>
    %4 = vector.shape_cast %3 : vector<1x82x16xbf16> to vector<82x16xbf16>
    %5 = arith.extf %4 : vector<82x16xbf16> to vector<82x16xf32>
    %6 = vector.extract_strided_slice %5 {offsets = [0, 0], sizes = [72, 16], strides = [1, 1]} : vector<82x16xf32> to vector<72x16xf32>
    %7 = vector.extract_strided_slice %5 {offsets = [1, 0], sizes = [72, 16], strides = [1, 1]} : vector<82x16xf32> to vector<72x16xf32>
    %8 = vector.extract_strided_slice %5 {offsets = [9, 0], sizes = [72, 16], strides = [1, 1]} : vector<82x16xf32> to vector<72x16xf32>
    %9 = vector.extract_strided_slice %5 {offsets = [10, 0], sizes = [72, 16], strides = [1, 1]} : vector<82x16xf32> to vector<72x16xf32>
    %10 = tpu.concatenate %6, %7, %8, %9 in 1 : vector<72x16xf32>, vector<72x16xf32>, vector<72x16xf32>, vector<72x16xf32> -> vector<72x64xf32>
    %11 = arith.truncf %10 : vector<72x64xf32> to vector<72x64xbf16>
    %c0_1 = arith.constant 0 : index
    %c0_2 = arith.constant 0 : index
    %12 = vector.load %arg3[%c0_1, %c0_2] : memref<64x128xbf16, #tpu.memory_space<vmem>>, vector<64x128xbf16>
    %cst = arith.constant dense<0.000000e+00> : vector<72x128xf32>
    %13 = tpu.matmul %11, %12, %cst {dimension_numbers = #tpu.dot_dimension_numbers<[1], [0], [0], [1], [0, 0, 1, 1], [], []>} : vector<72x64xbf16>, vector<64x128xbf16>, vector<72x128xf32> -> vector<72x128xf32>
    %c0_3 = arith.constant 0 : index
    %c0_4 = arith.constant 0 : index
    %14 = vector.load %arg4[%c0_3, %c0_4] : memref<1x128xf32, #tpu.memory_space<vmem>>, vector<1x128xf32>
    %15 = vector.broadcast %14 : vector<1x128xf32> to vector<72x128xf32>
    %16 = arith.addf %13, %15 : vector<72x128xf32>
    %cst_5 = arith.constant 0.000000e+00 : f32
    %17 = vector.broadcast %cst_5 : f32 to vector<72x128xf32>
    %18 = arith.cmpf oge, %16, %17 : vector<72x128xf32>
    %cst_6 = arith.constant 2.000000e-01 : f32
    %19 = vector.broadcast %cst_6 : f32 to vector<72x128xf32>
    %20 = arith.mulf %19, %16 : vector<72x128xf32>
    %21 = arith.select %18, %16, %20 : vector<72x128xi1>, vector<72x128xf32>
    %22 = arith.truncf %21 : vector<72x128xf32> to vector<72x128xbf16>
    %c0_7 = arith.constant 0 : index
    %c0_8 = arith.constant 0 : index
    %c0_9 = arith.constant 0 : index
    %23 = vector.load %arg5[%c0_7, %c0_8, %c0_9] : memref<1x72x128xbf16, #tpu.memory_space<vmem>>, vector<1x72x128xbf16>
    %24 = vector.shape_cast %23 : vector<1x72x128xbf16> to vector<72x128xbf16>
    %25 = vector.shape_cast %22 : vector<72x128xbf16> to vector<1x72x128xbf16>
    tpu.vector_store %arg5[%c0_7, %c0_8, %c0_9], %25 {strides = array<i32>} : memref<1x72x128xbf16, #tpu.memory_space<vmem>>, vector<1x72x128xbf16>,
    return
  }
  func.func @transform_0(%arg0: i32, %arg1: i32) -> (i32, i32, i32) {
    %c0_i32 = arith.constant 0 : i32
    %c0_i32_0 = arith.constant 0 : i32
    %c0_i32_1 = arith.constant 0 : i32
    return %arg0, %c0_i32, %c0_i32_0 : i32, i32, i32
  }
  func.func @transform_1(%arg0: i32, %arg1: i32) -> (i32, i32) {
    %c0_i32 = arith.constant 0 : i32
    %c0_i32_0 = arith.constant 0 : i32
    %c0_i32_1 = arith.constant 0 : i32
    return %c0_i32, %c0_i32_0 : i32, i32
  }
  func.func @transform_2(%arg0: i32, %arg1: i32) -> (i32, i32) {
    %c0_i32 = arith.constant 0 : i32
    %c0_i32_0 = arith.constant 0 : i32
    %c0_i32_1 = arith.constant 0 : i32
    return %c0_i32, %c0_i32_0 : i32, i32
  }
  func.func @transform_3(%arg0: i32, %arg1: i32) -> (i32, i32, i32) {
    %c0_i32 = arith.constant 0 : i32
    %c0_i32_0 = arith.constant 0 : i32
    return %arg0, %arg1, %c0_i32 : i32, i32, i32
  }
}

module attributes {stable_mosaic.version = 11 : i64} {
  func.func @_fused_conv_kernel(%arg0: i32, %arg1: i32, %arg2: memref<1x30x64xbf16, #tpu.memory_space<vmem>>, %arg3: memref<256x128xbf16, #tpu.memory_space<vmem>>, %arg4: memref<1x128xf32, #tpu.memory_space<vmem>>, %arg5: memref<1x24x128xbf16, #tpu.memory_space<vmem>>, %arg6: memref<1x8x128xf32, #tpu.memory_space<vmem>>, %arg7: memref<1x8x128xf32, #tpu.memory_space<vmem>>) attributes {dimension_semantics = [#tpu.dimension_semantics<parallel>, #tpu.dimension_semantics<parallel>], iteration_bounds = array<i64: 2, 1>, scalar_prefetch = 0 : i64, scratch_operands = 0 : i64, tpu.core_type = #tpu.core_type<tc>, window_params = [{transform_indices = @transform_0, window_bounds = array<i64: 1, 30, 64>}, {pipeline_mode = #tpu.pipeline_mode<synchronous>, transform_indices = @transform_1, window_bounds = array<i64: 256, 128>}, {pipeline_mode = #tpu.pipeline_mode<synchronous>, transform_indices = @transform_2, window_bounds = array<i64: 1, 128>}, {transform_indices = @transform_3, window_bounds = array<i64: 1, 24, 128>}, {transform_indices = @transform_4, window_bounds = array<i64: 1, 8, 128>}, {transform_indices = @transform_5, window_bounds = array<i64: 1, 8, 128>}]} {
    %c24_i32 = arith.constant 24 : i32
    %0 = arith.muli %arg1, %c24_i32 : i32
    %1 = tpu.assume_multiple %0, 8 : i32
    %c0 = arith.constant 0 : index
    %2 = arith.index_cast %1 : i32 to index
    %c0_0 = arith.constant 0 : index
    %3 = vector.load %arg2[%c0, %2, %c0_0] : memref<1x30x64xbf16, #tpu.memory_space<vmem>>, vector<1x30x64xbf16>
    %4 = vector.shape_cast %3 : vector<1x30x64xbf16> to vector<30x64xbf16>
    %5 = arith.extf %4 : vector<30x64xbf16> to vector<30x64xf32>
    %6 = vector.extract_strided_slice %5 {offsets = [0, 0], sizes = [24, 64], strides = [1, 1]} : vector<30x64xf32> to vector<24x64xf32>
    %7 = vector.extract_strided_slice %5 {offsets = [1, 0], sizes = [24, 64], strides = [1, 1]} : vector<30x64xf32> to vector<24x64xf32>
    %8 = vector.extract_strided_slice %5 {offsets = [5, 0], sizes = [24, 64], strides = [1, 1]} : vector<30x64xf32> to vector<24x64xf32>
    %9 = vector.extract_strided_slice %5 {offsets = [6, 0], sizes = [24, 64], strides = [1, 1]} : vector<30x64xf32> to vector<24x64xf32>
    %10 = tpu.concatenate %6, %7, %8, %9 in 1 : vector<24x64xf32>, vector<24x64xf32>, vector<24x64xf32>, vector<24x64xf32> -> vector<24x256xf32>
    %11 = arith.truncf %10 : vector<24x256xf32> to vector<24x256xbf16>
    %c0_1 = arith.constant 0 : index
    %c0_2 = arith.constant 0 : index
    %12 = vector.load %arg3[%c0_1, %c0_2] : memref<256x128xbf16, #tpu.memory_space<vmem>>, vector<256x128xbf16>
    %cst = arith.constant dense<0.000000e+00> : vector<24x128xf32>
    %13 = tpu.matmul %11, %12, %cst {dimension_numbers = #tpu.dot_dimension_numbers<[1], [0], [0], [1], [0, 0, 1, 1], [], []>} : vector<24x256xbf16>, vector<256x128xbf16>, vector<24x128xf32> -> vector<24x128xf32>
    %c0_3 = arith.constant 0 : index
    %c0_4 = arith.constant 0 : index
    %14 = vector.load %arg4[%c0_3, %c0_4] : memref<1x128xf32, #tpu.memory_space<vmem>>, vector<1x128xf32>
    %15 = vector.broadcast %14 : vector<1x128xf32> to vector<24x128xf32>
    %16 = arith.addf %13, %15 : vector<24x128xf32>
    %17 = arith.truncf %16 : vector<24x128xf32> to vector<24x128xbf16>
    %c0_5 = arith.constant 0 : index
    %c0_6 = arith.constant 0 : index
    %c0_7 = arith.constant 0 : index
    %18 = vector.load %arg5[%c0_5, %c0_6, %c0_7] : memref<1x24x128xbf16, #tpu.memory_space<vmem>>, vector<1x24x128xbf16>
    %19 = vector.shape_cast %18 : vector<1x24x128xbf16> to vector<24x128xbf16>
    %20 = vector.shape_cast %17 : vector<24x128xbf16> to vector<1x24x128xbf16>
    tpu.vector_store %arg5[%c0_5, %c0_6, %c0_7], %20 {strides = array<i32>} : memref<1x24x128xbf16, #tpu.memory_space<vmem>>, vector<1x24x128xbf16>,
    %21 = tpu.iota {dimensions = array<i32: 0>} : vector<24x1xi32>
    %22 = vector.broadcast %1 : i32 to vector<24x1xi32>
    %23 = arith.addi %22, %21 : vector<24x1xi32>
    %c19_i32 = arith.constant 19 : i32
    %24 = vector.broadcast %c19_i32 : i32 to vector<24x1xi32>
    %25 = arith.cmpi slt, %23, %24 : vector<24x1xi32>
    %c5_i32 = arith.constant 5 : i32
    %c0_i32 = arith.constant 0 : i32
    %26 = arith.cmpi eq, %c5_i32, %c0_i32 : i32
    %c1_i32 = arith.constant 1 : i32
    %27 = arith.select %26, %c1_i32, %c5_i32 : i32
    %28 = vector.broadcast %27 : i32 to vector<24x1xi32>
    %29 = arith.remsi %23, %28 : vector<24x1xi32>
    %c0_i32_8 = arith.constant 0 : i32
    %30 = vector.broadcast %c0_i32_8 : i32 to vector<24x1xi32>
    %31 = arith.cmpi ne, %29, %30 : vector<24x1xi32>
    %c0_i32_9 = arith.constant 0 : i32
    %32 = vector.broadcast %c0_i32_9 : i32 to vector<24x1xi32>
    %33 = arith.cmpi slt, %29, %32 : vector<24x1xi32>
    %c0_i32_10 = arith.constant 0 : i32
    %34 = arith.cmpi slt, %27, %c0_i32_10 : i32
    %35 = vector.broadcast %34 : i1 to vector<24x1xi1>
    %36 = vector.broadcast %35 : vector<24x1xi1> to vector<24x1xi1>
    %37 = arith.xori %33, %36 : vector<24x1xi1>
    %38 = arith.andi %37, %31 : vector<24x1xi1>
    %39 = vector.broadcast %27 : i32 to vector<24x1xi32>
    %40 = arith.addi %29, %39 : vector<24x1xi32>
    %41 = arith.select %38, %40, %29 : vector<24x1xi1>, vector<24x1xi32>
    %c4_i32 = arith.constant 4 : i32
    %42 = vector.broadcast %c4_i32 : i32 to vector<24x1xi32>
    %43 = arith.cmpi slt, %41, %42 : vector<24x1xi32>
    %44 = arith.andi %25, %43 : vector<24x1xi1>
    %cst_11 = arith.constant 0.000000e+00 : f32
    %45 = vector.shape_cast %44 : vector<24x1xi1> to vector<24x1xi1>
    %46 = vector.broadcast %45 : vector<24x1xi1> to vector<24x128xi1>
    %47 = vector.broadcast %cst_11 : f32 to vector<24x128xf32>
    %48 = arith.select %46, %16, %47 : vector<24x128xi1>, vector<24x128xf32>
    %cst_12 = arith.constant dense<0.000000e+00> : vector<128xf32>
    %49 = vector.multi_reduction <add>, %48, %cst_12 [0] : vector<24x128xf32> to vector<128xf32>
    %50 = vector.shape_cast %49 : vector<128xf32> to vector<1x128xf32>
    %51 = arith.mulf %48, %48 : vector<24x128xf32>
    %cst_13 = arith.constant dense<0.000000e+00> : vector<128xf32>
    %52 = vector.multi_reduction <add>, %51, %cst_13 [0] : vector<24x128xf32> to vector<128xf32>
    %53 = vector.shape_cast %52 : vector<128xf32> to vector<1x128xf32>
    %54 = tpu.iota {dimensions = array<i32: 0>} : vector<8x128xi32>
    %c0_i32_14 = arith.constant 0 : i32
    %55 = vector.broadcast %c0_i32_14 : i32 to vector<8x128xi32>
    %56 = arith.cmpi eq, %54, %55 : vector<8x128xi32>
    %cst_15 = arith.constant 0.000000e+00 : f32
    %57 = vector.shape_cast %50 : vector<1x128xf32> to vector<1x128xf32>
    %58 = vector.broadcast %57 : vector<1x128xf32> to vector<8x128xf32>
    %59 = vector.broadcast %cst_15 : f32 to vector<8x128xf32>
    %60 = arith.select %56, %58, %59 : vector<8x128xi1>, vector<8x128xf32>
    %c0_16 = arith.constant 0 : index
    %c0_17 = arith.constant 0 : index
    %c0_18 = arith.constant 0 : index
    %61 = vector.load %arg6[%c0_16, %c0_17, %c0_18] : memref<1x8x128xf32, #tpu.memory_space<vmem>>, vector<1x8x128xf32>
    %62 = vector.shape_cast %61 : vector<1x8x128xf32> to vector<8x128xf32>
    %63 = vector.shape_cast %60 : vector<8x128xf32> to vector<1x8x128xf32>
    tpu.vector_store %arg6[%c0_16, %c0_17, %c0_18], %63 {strides = array<i32>} : memref<1x8x128xf32, #tpu.memory_space<vmem>>, vector<1x8x128xf32>,
    %cst_19 = arith.constant 0.000000e+00 : f32
    %64 = vector.shape_cast %53 : vector<1x128xf32> to vector<1x128xf32>
    %65 = vector.broadcast %64 : vector<1x128xf32> to vector<8x128xf32>
    %66 = vector.broadcast %cst_19 : f32 to vector<8x128xf32>
    %67 = arith.select %56, %65, %66 : vector<8x128xi1>, vector<8x128xf32>
    %c0_20 = arith.constant 0 : index
    %c0_21 = arith.constant 0 : index
    %c0_22 = arith.constant 0 : index
    %68 = vector.load %arg7[%c0_20, %c0_21, %c0_22] : memref<1x8x128xf32, #tpu.memory_space<vmem>>, vector<1x8x128xf32>
    %69 = vector.shape_cast %68 : vector<1x8x128xf32> to vector<8x128xf32>
    %70 = vector.shape_cast %67 : vector<8x128xf32> to vector<1x8x128xf32>
    tpu.vector_store %arg7[%c0_20, %c0_21, %c0_22], %70 {strides = array<i32>} : memref<1x8x128xf32, #tpu.memory_space<vmem>>, vector<1x8x128xf32>,
    return
  }
  func.func @transform_0(%arg0: i32, %arg1: i32) -> (i32, i32, i32) {
    %c0_i32 = arith.constant 0 : i32
    %c0_i32_0 = arith.constant 0 : i32
    %c0_i32_1 = arith.constant 0 : i32
    return %arg0, %c0_i32, %c0_i32_0 : i32, i32, i32
  }
  func.func @transform_1(%arg0: i32, %arg1: i32) -> (i32, i32) {
    %c0_i32 = arith.constant 0 : i32
    %c0_i32_0 = arith.constant 0 : i32
    %c0_i32_1 = arith.constant 0 : i32
    return %c0_i32, %c0_i32_0 : i32, i32
  }
  func.func @transform_2(%arg0: i32, %arg1: i32) -> (i32, i32) {
    %c0_i32 = arith.constant 0 : i32
    %c0_i32_0 = arith.constant 0 : i32
    %c0_i32_1 = arith.constant 0 : i32
    return %c0_i32, %c0_i32_0 : i32, i32
  }
  func.func @transform_3(%arg0: i32, %arg1: i32) -> (i32, i32, i32) {
    %c0_i32 = arith.constant 0 : i32
    %c0_i32_0 = arith.constant 0 : i32
    return %arg0, %arg1, %c0_i32 : i32, i32, i32
  }
  func.func @transform_4(%arg0: i32, %arg1: i32) -> (i32, i32, i32) {
    %c0_i32 = arith.constant 0 : i32
    %c0_i32_0 = arith.constant 0 : i32
    return %arg0, %arg1, %c0_i32 : i32, i32, i32
  }
  func.func @transform_5(%arg0: i32, %arg1: i32) -> (i32, i32, i32) {
    %c0_i32 = arith.constant 0 : i32
    %c0_i32_0 = arith.constant 0 : i32
    return %arg0, %arg1, %c0_i32 : i32, i32, i32
  }
}

module attributes {stable_mosaic.version = 11 : i64} {
  func.func @_fused_conv_kernel(%arg0: i32, %arg1: i32, %arg2: memref<1x12x128xbf16, #tpu.memory_space<vmem>>, %arg3: memref<512x128xbf16, #tpu.memory_space<vmem>>, %arg4: memref<1x128xf32, #tpu.memory_space<vmem>>, %arg5: memref<1x8x128xbf16, #tpu.memory_space<vmem>>, %arg6: memref<1x8x128xf32, #tpu.memory_space<vmem>>, %arg7: memref<1x8x128xf32, #tpu.memory_space<vmem>>) attributes {dimension_semantics = [#tpu.dimension_semantics<parallel>, #tpu.dimension_semantics<parallel>], iteration_bounds = array<i64: 2, 1>, scalar_prefetch = 0 : i64, scratch_operands = 0 : i64, tpu.core_type = #tpu.core_type<tc>, window_params = [{transform_indices = @transform_0, window_bounds = array<i64: 1, 12, 128>}, {pipeline_mode = #tpu.pipeline_mode<synchronous>, transform_indices = @transform_1, window_bounds = array<i64: 512, 128>}, {pipeline_mode = #tpu.pipeline_mode<synchronous>, transform_indices = @transform_2, window_bounds = array<i64: 1, 128>}, {transform_indices = @transform_3, window_bounds = array<i64: 1, 8, 128>}, {transform_indices = @transform_4, window_bounds = array<i64: 1, 8, 128>}, {transform_indices = @transform_5, window_bounds = array<i64: 1, 8, 128>}]} {
    %c8_i32 = arith.constant 8 : i32
    %0 = arith.muli %arg1, %c8_i32 : i32
    %1 = tpu.assume_multiple %0, 8 : i32
    %c0 = arith.constant 0 : index
    %2 = arith.index_cast %1 : i32 to index
    %c0_0 = arith.constant 0 : index
    %3 = vector.load %arg2[%c0, %2, %c0_0] : memref<1x12x128xbf16, #tpu.memory_space<vmem>>, vector<1x12x128xbf16>
    %4 = vector.shape_cast %3 : vector<1x12x128xbf16> to vector<12x128xbf16>
    %5 = arith.extf %4 : vector<12x128xbf16> to vector<12x128xf32>
    %cst = arith.constant 0.000000e+00 : f32
    %6 = vector.broadcast %cst : f32 to vector<12x128xf32>
    %7 = arith.cmpf oge, %5, %6 : vector<12x128xf32>
    %cst_1 = arith.constant 2.000000e-01 : f32
    %8 = vector.broadcast %cst_1 : f32 to vector<12x128xf32>
    %9 = arith.mulf %8, %5 : vector<12x128xf32>
    %10 = arith.select %7, %5, %9 : vector<12x128xi1>, vector<12x128xf32>
    %11 = vector.extract_strided_slice %10 {offsets = [0, 0], sizes = [8, 128], strides = [1, 1]} : vector<12x128xf32> to vector<8x128xf32>
    %12 = vector.extract_strided_slice %10 {offsets = [1, 0], sizes = [8, 128], strides = [1, 1]} : vector<12x128xf32> to vector<8x128xf32>
    %13 = vector.extract_strided_slice %10 {offsets = [3, 0], sizes = [8, 128], strides = [1, 1]} : vector<12x128xf32> to vector<8x128xf32>
    %14 = vector.extract_strided_slice %10 {offsets = [4, 0], sizes = [8, 128], strides = [1, 1]} : vector<12x128xf32> to vector<8x128xf32>
    %15 = tpu.concatenate %11, %12, %13, %14 in 1 : vector<8x128xf32>, vector<8x128xf32>, vector<8x128xf32>, vector<8x128xf32> -> vector<8x512xf32>
    %16 = arith.truncf %15 : vector<8x512xf32> to vector<8x512xbf16>
    %c0_2 = arith.constant 0 : index
    %c0_3 = arith.constant 0 : index
    %17 = vector.load %arg3[%c0_2, %c0_3] : memref<512x128xbf16, #tpu.memory_space<vmem>>, vector<512x128xbf16>
    %cst_4 = arith.constant dense<0.000000e+00> : vector<8x128xf32>
    %18 = tpu.matmul %16, %17, %cst_4 {dimension_numbers = #tpu.dot_dimension_numbers<[1], [0], [0], [1], [0, 0, 1, 1], [], []>} : vector<8x512xbf16>, vector<512x128xbf16>, vector<8x128xf32> -> vector<8x128xf32>
    %c0_5 = arith.constant 0 : index
    %c0_6 = arith.constant 0 : index
    %19 = vector.load %arg4[%c0_5, %c0_6] : memref<1x128xf32, #tpu.memory_space<vmem>>, vector<1x128xf32>
    %20 = vector.broadcast %19 : vector<1x128xf32> to vector<8x128xf32>
    %21 = arith.addf %18, %20 : vector<8x128xf32>
    %22 = arith.truncf %21 : vector<8x128xf32> to vector<8x128xbf16>
    %c0_7 = arith.constant 0 : index
    %c0_8 = arith.constant 0 : index
    %c0_9 = arith.constant 0 : index
    %23 = vector.load %arg5[%c0_7, %c0_8, %c0_9] : memref<1x8x128xbf16, #tpu.memory_space<vmem>>, vector<1x8x128xbf16>
    %24 = vector.shape_cast %23 : vector<1x8x128xbf16> to vector<8x128xbf16>
    %25 = vector.shape_cast %22 : vector<8x128xbf16> to vector<1x8x128xbf16>
    tpu.vector_store %arg5[%c0_7, %c0_8, %c0_9], %25 {strides = array<i32>} : memref<1x8x128xbf16, #tpu.memory_space<vmem>>, vector<1x8x128xbf16>,
    %26 = tpu.iota {dimensions = array<i32: 0>} : vector<8x1xi32>
    %27 = vector.broadcast %1 : i32 to vector<8x1xi32>
    %28 = arith.addi %27, %26 : vector<8x1xi32>
    %c5_i32 = arith.constant 5 : i32
    %29 = vector.broadcast %c5_i32 : i32 to vector<8x1xi32>
    %30 = arith.cmpi slt, %28, %29 : vector<8x1xi32>
    %c3_i32 = arith.constant 3 : i32
    %c0_i32 = arith.constant 0 : i32
    %31 = arith.cmpi eq, %c3_i32, %c0_i32 : i32
    %c1_i32 = arith.constant 1 : i32
    %32 = arith.select %31, %c1_i32, %c3_i32 : i32
    %33 = vector.broadcast %32 : i32 to vector<8x1xi32>
    %34 = arith.remsi %28, %33 : vector<8x1xi32>
    %c0_i32_10 = arith.constant 0 : i32
    %35 = vector.broadcast %c0_i32_10 : i32 to vector<8x1xi32>
    %36 = arith.cmpi ne, %34, %35 : vector<8x1xi32>
    %c0_i32_11 = arith.constant 0 : i32
    %37 = vector.broadcast %c0_i32_11 : i32 to vector<8x1xi32>
    %38 = arith.cmpi slt, %34, %37 : vector<8x1xi32>
    %c0_i32_12 = arith.constant 0 : i32
    %39 = arith.cmpi slt, %32, %c0_i32_12 : i32
    %40 = vector.broadcast %39 : i1 to vector<8x1xi1>
    %41 = vector.broadcast %40 : vector<8x1xi1> to vector<8x1xi1>
    %42 = arith.xori %38, %41 : vector<8x1xi1>
    %43 = arith.andi %42, %36 : vector<8x1xi1>
    %44 = vector.broadcast %32 : i32 to vector<8x1xi32>
    %45 = arith.addi %34, %44 : vector<8x1xi32>
    %46 = arith.select %43, %45, %34 : vector<8x1xi1>, vector<8x1xi32>
    %c2_i32 = arith.constant 2 : i32
    %47 = vector.broadcast %c2_i32 : i32 to vector<8x1xi32>
    %48 = arith.cmpi slt, %46, %47 : vector<8x1xi32>
    %49 = arith.andi %30, %48 : vector<8x1xi1>
    %cst_13 = arith.constant 0.000000e+00 : f32
    %50 = vector.shape_cast %49 : vector<8x1xi1> to vector<8x1xi1>
    %51 = vector.broadcast %50 : vector<8x1xi1> to vector<8x128xi1>
    %52 = vector.broadcast %cst_13 : f32 to vector<8x128xf32>
    %53 = arith.select %51, %21, %52 : vector<8x128xi1>, vector<8x128xf32>
    %cst_14 = arith.constant dense<0.000000e+00> : vector<128xf32>
    %54 = vector.multi_reduction <add>, %53, %cst_14 [0] : vector<8x128xf32> to vector<128xf32>
    %55 = vector.shape_cast %54 : vector<128xf32> to vector<1x128xf32>
    %56 = arith.mulf %53, %53 : vector<8x128xf32>
    %cst_15 = arith.constant dense<0.000000e+00> : vector<128xf32>
    %57 = vector.multi_reduction <add>, %56, %cst_15 [0] : vector<8x128xf32> to vector<128xf32>
    %58 = vector.shape_cast %57 : vector<128xf32> to vector<1x128xf32>
    %59 = tpu.iota {dimensions = array<i32: 0>} : vector<8x128xi32>
    %c0_i32_16 = arith.constant 0 : i32
    %60 = vector.broadcast %c0_i32_16 : i32 to vector<8x128xi32>
    %61 = arith.cmpi eq, %59, %60 : vector<8x128xi32>
    %cst_17 = arith.constant 0.000000e+00 : f32
    %62 = vector.shape_cast %55 : vector<1x128xf32> to vector<1x128xf32>
    %63 = vector.broadcast %62 : vector<1x128xf32> to vector<8x128xf32>
    %64 = vector.broadcast %cst_17 : f32 to vector<8x128xf32>
    %65 = arith.select %61, %63, %64 : vector<8x128xi1>, vector<8x128xf32>
    %c0_18 = arith.constant 0 : index
    %c0_19 = arith.constant 0 : index
    %c0_20 = arith.constant 0 : index
    %66 = vector.load %arg6[%c0_18, %c0_19, %c0_20] : memref<1x8x128xf32, #tpu.memory_space<vmem>>, vector<1x8x128xf32>
    %67 = vector.shape_cast %66 : vector<1x8x128xf32> to vector<8x128xf32>
    %68 = vector.shape_cast %65 : vector<8x128xf32> to vector<1x8x128xf32>
    tpu.vector_store %arg6[%c0_18, %c0_19, %c0_20], %68 {strides = array<i32>} : memref<1x8x128xf32, #tpu.memory_space<vmem>>, vector<1x8x128xf32>,
    %cst_21 = arith.constant 0.000000e+00 : f32
    %69 = vector.shape_cast %58 : vector<1x128xf32> to vector<1x128xf32>
    %70 = vector.broadcast %69 : vector<1x128xf32> to vector<8x128xf32>
    %71 = vector.broadcast %cst_21 : f32 to vector<8x128xf32>
    %72 = arith.select %61, %70, %71 : vector<8x128xi1>, vector<8x128xf32>
    %c0_22 = arith.constant 0 : index
    %c0_23 = arith.constant 0 : index
    %c0_24 = arith.constant 0 : index
    %73 = vector.load %arg7[%c0_22, %c0_23, %c0_24] : memref<1x8x128xf32, #tpu.memory_space<vmem>>, vector<1x8x128xf32>
    %74 = vector.shape_cast %73 : vector<1x8x128xf32> to vector<8x128xf32>
    %75 = vector.shape_cast %72 : vector<8x128xf32> to vector<1x8x128xf32>
    tpu.vector_store %arg7[%c0_22, %c0_23, %c0_24], %75 {strides = array<i32>} : memref<1x8x128xf32, #tpu.memory_space<vmem>>, vector<1x8x128xf32>,
    return
  }
  func.func @transform_0(%arg0: i32, %arg1: i32) -> (i32, i32, i32) {
    %c0_i32 = arith.constant 0 : i32
    %c0_i32_0 = arith.constant 0 : i32
    %c0_i32_1 = arith.constant 0 : i32
    return %arg0, %c0_i32, %c0_i32_0 : i32, i32, i32
  }
  func.func @transform_1(%arg0: i32, %arg1: i32) -> (i32, i32) {
    %c0_i32 = arith.constant 0 : i32
    %c0_i32_0 = arith.constant 0 : i32
    %c0_i32_1 = arith.constant 0 : i32
    return %c0_i32, %c0_i32_0 : i32, i32
  }
  func.func @transform_2(%arg0: i32, %arg1: i32) -> (i32, i32) {
    %c0_i32 = arith.constant 0 : i32
    %c0_i32_0 = arith.constant 0 : i32
    %c0_i32_1 = arith.constant 0 : i32
    return %c0_i32, %c0_i32_0 : i32, i32
  }
  func.func @transform_3(%arg0: i32, %arg1: i32) -> (i32, i32, i32) {
    %c0_i32 = arith.constant 0 : i32
    %c0_i32_0 = arith.constant 0 : i32
    return %arg0, %arg1, %c0_i32 : i32, i32, i32
  }
  func.func @transform_4(%arg0: i32, %arg1: i32) -> (i32, i32, i32) {
    %c0_i32 = arith.constant 0 : i32
    %c0_i32_0 = arith.constant 0 : i32
    return %arg0, %arg1, %c0_i32 : i32, i32, i32
  }
  func.func @transform_5(%arg0: i32, %arg1: i32) -> (i32, i32, i32) {
    %c0_i32 = arith.constant 0 : i32
    %c0_i32_0 = arith.constant 0 : i32
    return %arg0, %arg1, %c0_i32 : i32, i32, i32
  }
}

module attributes {stable_mosaic.version = 11 : i64} {
  func.func @_fused_conv_kernel(%arg0: i32, %arg1: i32, %arg2: memref<1x18x64xbf16, #tpu.memory_space<vmem>>, %arg3: memref<576x128xbf16, #tpu.memory_space<vmem>>, %arg4: memref<1x128xf32, #tpu.memory_space<vmem>>, %arg5: memref<1x8x128xbf16, #tpu.memory_space<vmem>>, %arg6: memref<1x8x128xf32, #tpu.memory_space<vmem>>, %arg7: memref<1x8x128xf32, #tpu.memory_space<vmem>>) attributes {dimension_semantics = [#tpu.dimension_semantics<parallel>, #tpu.dimension_semantics<parallel>], iteration_bounds = array<i64: 2, 1>, scalar_prefetch = 0 : i64, scratch_operands = 0 : i64, tpu.core_type = #tpu.core_type<tc>, window_params = [{transform_indices = @transform_0, window_bounds = array<i64: 1, 18, 64>}, {pipeline_mode = #tpu.pipeline_mode<synchronous>, transform_indices = @transform_1, window_bounds = array<i64: 576, 128>}, {pipeline_mode = #tpu.pipeline_mode<synchronous>, transform_indices = @transform_2, window_bounds = array<i64: 1, 128>}, {transform_indices = @transform_3, window_bounds = array<i64: 1, 8, 128>}, {transform_indices = @transform_4, window_bounds = array<i64: 1, 8, 128>}, {transform_indices = @transform_5, window_bounds = array<i64: 1, 8, 128>}]} {
    %c8_i32 = arith.constant 8 : i32
    %0 = arith.muli %arg1, %c8_i32 : i32
    %1 = tpu.assume_multiple %0, 8 : i32
    %c0 = arith.constant 0 : index
    %2 = arith.index_cast %1 : i32 to index
    %c0_0 = arith.constant 0 : index
    %3 = vector.load %arg2[%c0, %2, %c0_0] : memref<1x18x64xbf16, #tpu.memory_space<vmem>>, vector<1x18x64xbf16>
    %4 = vector.shape_cast %3 : vector<1x18x64xbf16> to vector<18x64xbf16>
    %5 = arith.extf %4 : vector<18x64xbf16> to vector<18x64xf32>
    %cst = arith.constant 0.000000e+00 : f32
    %6 = vector.broadcast %cst : f32 to vector<18x64xf32>
    %7 = arith.cmpf oge, %5, %6 : vector<18x64xf32>
    %cst_1 = arith.constant 2.000000e-01 : f32
    %8 = vector.broadcast %cst_1 : f32 to vector<18x64xf32>
    %9 = arith.mulf %8, %5 : vector<18x64xf32>
    %10 = arith.select %7, %5, %9 : vector<18x64xi1>, vector<18x64xf32>
    %11 = vector.extract_strided_slice %10 {offsets = [0, 0], sizes = [8, 64], strides = [1, 1]} : vector<18x64xf32> to vector<8x64xf32>
    %12 = vector.extract_strided_slice %10 {offsets = [1, 0], sizes = [8, 64], strides = [1, 1]} : vector<18x64xf32> to vector<8x64xf32>
    %13 = vector.extract_strided_slice %10 {offsets = [2, 0], sizes = [8, 64], strides = [1, 1]} : vector<18x64xf32> to vector<8x64xf32>
    %14 = vector.extract_strided_slice %10 {offsets = [4, 0], sizes = [8, 64], strides = [1, 1]} : vector<18x64xf32> to vector<8x64xf32>
    %15 = vector.extract_strided_slice %10 {offsets = [5, 0], sizes = [8, 64], strides = [1, 1]} : vector<18x64xf32> to vector<8x64xf32>
    %16 = vector.extract_strided_slice %10 {offsets = [6, 0], sizes = [8, 64], strides = [1, 1]} : vector<18x64xf32> to vector<8x64xf32>
    %17 = vector.extract_strided_slice %10 {offsets = [8, 0], sizes = [8, 64], strides = [1, 1]} : vector<18x64xf32> to vector<8x64xf32>
    %18 = vector.extract_strided_slice %10 {offsets = [9, 0], sizes = [8, 64], strides = [1, 1]} : vector<18x64xf32> to vector<8x64xf32>
    %19 = vector.extract_strided_slice %10 {offsets = [10, 0], sizes = [8, 64], strides = [1, 1]} : vector<18x64xf32> to vector<8x64xf32>
    %20 = tpu.concatenate %11, %12, %13, %14, %15, %16, %17, %18, %19 in 1 : vector<8x64xf32>, vector<8x64xf32>, vector<8x64xf32>, vector<8x64xf32>, vector<8x64xf32>, vector<8x64xf32>, vector<8x64xf32>, vector<8x64xf32>, vector<8x64xf32> -> vector<8x576xf32>
    %21 = arith.truncf %20 : vector<8x576xf32> to vector<8x576xbf16>
    %c0_2 = arith.constant 0 : index
    %c0_3 = arith.constant 0 : index
    %22 = vector.load %arg3[%c0_2, %c0_3] : memref<576x128xbf16, #tpu.memory_space<vmem>>, vector<576x128xbf16>
    %cst_4 = arith.constant dense<0.000000e+00> : vector<8x128xf32>
    %23 = tpu.matmul %21, %22, %cst_4 {dimension_numbers = #tpu.dot_dimension_numbers<[1], [0], [0], [1], [0, 0, 1, 1], [], []>} : vector<8x576xbf16>, vector<576x128xbf16>, vector<8x128xf32> -> vector<8x128xf32>
    %c0_5 = arith.constant 0 : index
    %c0_6 = arith.constant 0 : index
    %24 = vector.load %arg4[%c0_5, %c0_6] : memref<1x128xf32, #tpu.memory_space<vmem>>, vector<1x128xf32>
    %25 = vector.broadcast %24 : vector<1x128xf32> to vector<8x128xf32>
    %26 = arith.addf %23, %25 : vector<8x128xf32>
    %27 = arith.truncf %26 : vector<8x128xf32> to vector<8x128xbf16>
    %c0_7 = arith.constant 0 : index
    %c0_8 = arith.constant 0 : index
    %c0_9 = arith.constant 0 : index
    %28 = vector.load %arg5[%c0_7, %c0_8, %c0_9] : memref<1x8x128xbf16, #tpu.memory_space<vmem>>, vector<1x8x128xbf16>
    %29 = vector.shape_cast %28 : vector<1x8x128xbf16> to vector<8x128xbf16>
    %30 = vector.shape_cast %27 : vector<8x128xbf16> to vector<1x8x128xbf16>
    tpu.vector_store %arg5[%c0_7, %c0_8, %c0_9], %30 {strides = array<i32>} : memref<1x8x128xbf16, #tpu.memory_space<vmem>>, vector<1x8x128xbf16>,
    %31 = tpu.iota {dimensions = array<i32: 0>} : vector<8x1xi32>
    %32 = vector.broadcast %1 : i32 to vector<8x1xi32>
    %33 = arith.addi %32, %31 : vector<8x1xi32>
    %c6_i32 = arith.constant 6 : i32
    %34 = vector.broadcast %c6_i32 : i32 to vector<8x1xi32>
    %35 = arith.cmpi slt, %33, %34 : vector<8x1xi32>
    %c4_i32 = arith.constant 4 : i32
    %c0_i32 = arith.constant 0 : i32
    %36 = arith.cmpi eq, %c4_i32, %c0_i32 : i32
    %c1_i32 = arith.constant 1 : i32
    %37 = arith.select %36, %c1_i32, %c4_i32 : i32
    %38 = vector.broadcast %37 : i32 to vector<8x1xi32>
    %39 = arith.remsi %33, %38 : vector<8x1xi32>
    %c0_i32_10 = arith.constant 0 : i32
    %40 = vector.broadcast %c0_i32_10 : i32 to vector<8x1xi32>
    %41 = arith.cmpi ne, %39, %40 : vector<8x1xi32>
    %c0_i32_11 = arith.constant 0 : i32
    %42 = vector.broadcast %c0_i32_11 : i32 to vector<8x1xi32>
    %43 = arith.cmpi slt, %39, %42 : vector<8x1xi32>
    %c0_i32_12 = arith.constant 0 : i32
    %44 = arith.cmpi slt, %37, %c0_i32_12 : i32
    %45 = vector.broadcast %44 : i1 to vector<8x1xi1>
    %46 = vector.broadcast %45 : vector<8x1xi1> to vector<8x1xi1>
    %47 = arith.xori %43, %46 : vector<8x1xi1>
    %48 = arith.andi %47, %41 : vector<8x1xi1>
    %49 = vector.broadcast %37 : i32 to vector<8x1xi32>
    %50 = arith.addi %39, %49 : vector<8x1xi32>
    %51 = arith.select %48, %50, %39 : vector<8x1xi1>, vector<8x1xi32>
    %c2_i32 = arith.constant 2 : i32
    %52 = vector.broadcast %c2_i32 : i32 to vector<8x1xi32>
    %53 = arith.cmpi slt, %51, %52 : vector<8x1xi32>
    %54 = arith.andi %35, %53 : vector<8x1xi1>
    %cst_13 = arith.constant 0.000000e+00 : f32
    %55 = vector.shape_cast %54 : vector<8x1xi1> to vector<8x1xi1>
    %56 = vector.broadcast %55 : vector<8x1xi1> to vector<8x128xi1>
    %57 = vector.broadcast %cst_13 : f32 to vector<8x128xf32>
    %58 = arith.select %56, %26, %57 : vector<8x128xi1>, vector<8x128xf32>
    %cst_14 = arith.constant dense<0.000000e+00> : vector<128xf32>
    %59 = vector.multi_reduction <add>, %58, %cst_14 [0] : vector<8x128xf32> to vector<128xf32>
    %60 = vector.shape_cast %59 : vector<128xf32> to vector<1x128xf32>
    %61 = arith.mulf %58, %58 : vector<8x128xf32>
    %cst_15 = arith.constant dense<0.000000e+00> : vector<128xf32>
    %62 = vector.multi_reduction <add>, %61, %cst_15 [0] : vector<8x128xf32> to vector<128xf32>
    %63 = vector.shape_cast %62 : vector<128xf32> to vector<1x128xf32>
    %64 = tpu.iota {dimensions = array<i32: 0>} : vector<8x128xi32>
    %c0_i32_16 = arith.constant 0 : i32
    %65 = vector.broadcast %c0_i32_16 : i32 to vector<8x128xi32>
    %66 = arith.cmpi eq, %64, %65 : vector<8x128xi32>
    %cst_17 = arith.constant 0.000000e+00 : f32
    %67 = vector.shape_cast %60 : vector<1x128xf32> to vector<1x128xf32>
    %68 = vector.broadcast %67 : vector<1x128xf32> to vector<8x128xf32>
    %69 = vector.broadcast %cst_17 : f32 to vector<8x128xf32>
    %70 = arith.select %66, %68, %69 : vector<8x128xi1>, vector<8x128xf32>
    %c0_18 = arith.constant 0 : index
    %c0_19 = arith.constant 0 : index
    %c0_20 = arith.constant 0 : index
    %71 = vector.load %arg6[%c0_18, %c0_19, %c0_20] : memref<1x8x128xf32, #tpu.memory_space<vmem>>, vector<1x8x128xf32>
    %72 = vector.shape_cast %71 : vector<1x8x128xf32> to vector<8x128xf32>
    %73 = vector.shape_cast %70 : vector<8x128xf32> to vector<1x8x128xf32>
    tpu.vector_store %arg6[%c0_18, %c0_19, %c0_20], %73 {strides = array<i32>} : memref<1x8x128xf32, #tpu.memory_space<vmem>>, vector<1x8x128xf32>,
    %cst_21 = arith.constant 0.000000e+00 : f32
    %74 = vector.shape_cast %63 : vector<1x128xf32> to vector<1x128xf32>
    %75 = vector.broadcast %74 : vector<1x128xf32> to vector<8x128xf32>
    %76 = vector.broadcast %cst_21 : f32 to vector<8x128xf32>
    %77 = arith.select %66, %75, %76 : vector<8x128xi1>, vector<8x128xf32>
    %c0_22 = arith.constant 0 : index
    %c0_23 = arith.constant 0 : index
    %c0_24 = arith.constant 0 : index
    %78 = vector.load %arg7[%c0_22, %c0_23, %c0_24] : memref<1x8x128xf32, #tpu.memory_space<vmem>>, vector<1x8x128xf32>
    %79 = vector.shape_cast %78 : vector<1x8x128xf32> to vector<8x128xf32>
    %80 = vector.shape_cast %77 : vector<8x128xf32> to vector<1x8x128xf32>
    tpu.vector_store %arg7[%c0_22, %c0_23, %c0_24], %80 {strides = array<i32>} : memref<1x8x128xf32, #tpu.memory_space<vmem>>, vector<1x8x128xf32>,
    return
  }
  func.func @transform_0(%arg0: i32, %arg1: i32) -> (i32, i32, i32) {
    %c0_i32 = arith.constant 0 : i32
    %c0_i32_0 = arith.constant 0 : i32
    %c0_i32_1 = arith.constant 0 : i32
    return %arg0, %c0_i32, %c0_i32_0 : i32, i32, i32
  }
  func.func @transform_1(%arg0: i32, %arg1: i32) -> (i32, i32) {
    %c0_i32 = arith.constant 0 : i32
    %c0_i32_0 = arith.constant 0 : i32
    %c0_i32_1 = arith.constant 0 : i32
    return %c0_i32, %c0_i32_0 : i32, i32
  }
  func.func @transform_2(%arg0: i32, %arg1: i32) -> (i32, i32) {
    %c0_i32 = arith.constant 0 : i32
    %c0_i32_0 = arith.constant 0 : i32
    %c0_i32_1 = arith.constant 0 : i32
    return %c0_i32, %c0_i32_0 : i32, i32
  }
  func.func @transform_3(%arg0: i32, %arg1: i32) -> (i32, i32, i32) {
    %c0_i32 = arith.constant 0 : i32
    %c0_i32_0 = arith.constant 0 : i32
    return %arg0, %arg1, %c0_i32 : i32, i32, i32
  }
  func.func @transform_4(%arg0: i32, %arg1: i32) -> (i32, i32, i32) {
    %c0_i32 = arith.constant 0 : i32
    %c0_i32_0 = arith.constant 0 : i32
    return %arg0, %arg1, %c0_i32 : i32, i32, i32
  }
  func.func @transform_5(%arg0: i32, %arg1: i32) -> (i32, i32, i32) {
    %c0_i32 = arith.constant 0 : i32
    %c0_i32_0 = arith.constant 0 : i32
    return %arg0, %arg1, %c0_i32 : i32, i32, i32
  }
}

module attributes {stable_mosaic.version = 11 : i64} {
  func.func @_fused_conv_kernel(%arg0: i32, %arg1: i32, %arg2: memref<1x18x128xbf16, #tpu.memory_space<vmem>>, %arg3: memref<1152x128xbf16, #tpu.memory_space<vmem>>, %arg4: memref<1x128xf32, #tpu.memory_space<vmem>>, %arg5: memref<1x8x128xf32, #tpu.memory_space<vmem>>) attributes {dimension_semantics = [#tpu.dimension_semantics<parallel>, #tpu.dimension_semantics<parallel>], iteration_bounds = array<i64: 2, 1>, scalar_prefetch = 0 : i64, scratch_operands = 0 : i64, tpu.core_type = #tpu.core_type<tc>, window_params = [{transform_indices = @transform_0, window_bounds = array<i64: 1, 18, 128>}, {pipeline_mode = #tpu.pipeline_mode<synchronous>, transform_indices = @transform_1, window_bounds = array<i64: 1152, 128>}, {pipeline_mode = #tpu.pipeline_mode<synchronous>, transform_indices = @transform_2, window_bounds = array<i64: 1, 128>}, {transform_indices = @transform_3, window_bounds = array<i64: 1, 8, 128>}]} {
    %c8_i32 = arith.constant 8 : i32
    %0 = arith.muli %arg1, %c8_i32 : i32
    %1 = tpu.assume_multiple %0, 8 : i32
    %c0 = arith.constant 0 : index
    %2 = arith.index_cast %1 : i32 to index
    %c0_0 = arith.constant 0 : index
    %3 = vector.load %arg2[%c0, %2, %c0_0] : memref<1x18x128xbf16, #tpu.memory_space<vmem>>, vector<1x18x128xbf16>
    %4 = vector.shape_cast %3 : vector<1x18x128xbf16> to vector<18x128xbf16>
    %5 = arith.extf %4 : vector<18x128xbf16> to vector<18x128xf32>
    %cst = arith.constant 0.000000e+00 : f32
    %6 = vector.broadcast %cst : f32 to vector<18x128xf32>
    %7 = arith.cmpf oge, %5, %6 : vector<18x128xf32>
    %cst_1 = arith.constant 2.000000e-01 : f32
    %8 = vector.broadcast %cst_1 : f32 to vector<18x128xf32>
    %9 = arith.mulf %8, %5 : vector<18x128xf32>
    %10 = arith.select %7, %5, %9 : vector<18x128xi1>, vector<18x128xf32>
    %11 = vector.extract_strided_slice %10 {offsets = [0, 0], sizes = [8, 128], strides = [1, 1]} : vector<18x128xf32> to vector<8x128xf32>
    %12 = vector.extract_strided_slice %10 {offsets = [1, 0], sizes = [8, 128], strides = [1, 1]} : vector<18x128xf32> to vector<8x128xf32>
    %13 = vector.extract_strided_slice %10 {offsets = [2, 0], sizes = [8, 128], strides = [1, 1]} : vector<18x128xf32> to vector<8x128xf32>
    %14 = vector.extract_strided_slice %10 {offsets = [4, 0], sizes = [8, 128], strides = [1, 1]} : vector<18x128xf32> to vector<8x128xf32>
    %15 = vector.extract_strided_slice %10 {offsets = [5, 0], sizes = [8, 128], strides = [1, 1]} : vector<18x128xf32> to vector<8x128xf32>
    %16 = vector.extract_strided_slice %10 {offsets = [6, 0], sizes = [8, 128], strides = [1, 1]} : vector<18x128xf32> to vector<8x128xf32>
    %17 = vector.extract_strided_slice %10 {offsets = [8, 0], sizes = [8, 128], strides = [1, 1]} : vector<18x128xf32> to vector<8x128xf32>
    %18 = vector.extract_strided_slice %10 {offsets = [9, 0], sizes = [8, 128], strides = [1, 1]} : vector<18x128xf32> to vector<8x128xf32>
    %19 = vector.extract_strided_slice %10 {offsets = [10, 0], sizes = [8, 128], strides = [1, 1]} : vector<18x128xf32> to vector<8x128xf32>
    %20 = tpu.concatenate %11, %12, %13, %14, %15, %16, %17, %18, %19 in 1 : vector<8x128xf32>, vector<8x128xf32>, vector<8x128xf32>, vector<8x128xf32>, vector<8x128xf32>, vector<8x128xf32>, vector<8x128xf32>, vector<8x128xf32>, vector<8x128xf32> -> vector<8x1152xf32>
    %21 = arith.truncf %20 : vector<8x1152xf32> to vector<8x1152xbf16>
    %c0_2 = arith.constant 0 : index
    %c0_3 = arith.constant 0 : index
    %22 = vector.load %arg3[%c0_2, %c0_3] : memref<1152x128xbf16, #tpu.memory_space<vmem>>, vector<1152x128xbf16>
    %cst_4 = arith.constant dense<0.000000e+00> : vector<8x128xf32>
    %23 = tpu.matmul %21, %22, %cst_4 {dimension_numbers = #tpu.dot_dimension_numbers<[1], [0], [0], [1], [0, 0, 1, 1], [], []>} : vector<8x1152xbf16>, vector<1152x128xbf16>, vector<8x128xf32> -> vector<8x128xf32>
    %c0_5 = arith.constant 0 : index
    %c0_6 = arith.constant 0 : index
    %24 = vector.load %arg4[%c0_5, %c0_6] : memref<1x128xf32, #tpu.memory_space<vmem>>, vector<1x128xf32>
    %25 = vector.broadcast %24 : vector<1x128xf32> to vector<8x128xf32>
    %26 = arith.addf %23, %25 : vector<8x128xf32>
    %c0_7 = arith.constant 0 : index
    %c0_8 = arith.constant 0 : index
    %c0_9 = arith.constant 0 : index
    %27 = vector.load %arg5[%c0_7, %c0_8, %c0_9] : memref<1x8x128xf32, #tpu.memory_space<vmem>>, vector<1x8x128xf32>
    %28 = vector.shape_cast %27 : vector<1x8x128xf32> to vector<8x128xf32>
    %29 = vector.shape_cast %26 : vector<8x128xf32> to vector<1x8x128xf32>
    tpu.vector_store %arg5[%c0_7, %c0_8, %c0_9], %29 {strides = array<i32>} : memref<1x8x128xf32, #tpu.memory_space<vmem>>, vector<1x8x128xf32>,
    return
  }
  func.func @transform_0(%arg0: i32, %arg1: i32) -> (i32, i32, i32) {
    %c0_i32 = arith.constant 0 : i32
    %c0_i32_0 = arith.constant 0 : i32
    %c0_i32_1 = arith.constant 0 : i32
    return %arg0, %c0_i32, %c0_i32_0 : i32, i32, i32
  }
  func.func @transform_1(%arg0: i32, %arg1: i32) -> (i32, i32) {
    %c0_i32 = arith.constant 0 : i32
    %c0_i32_0 = arith.constant 0 : i32
    %c0_i32_1 = arith.constant 0 : i32
    return %c0_i32, %c0_i32_0 : i32, i32
  }
  func.func @transform_2(%arg0: i32, %arg1: i32) -> (i32, i32) {
    %c0_i32 = arith.constant 0 : i32
    %c0_i32_0 = arith.constant 0 : i32
    %c0_i32_1 = arith.constant 0 : i32
    return %c0_i32, %c0_i32_0 : i32, i32
  }
  func.func @transform_3(%arg0: i32, %arg1: i32) -> (i32, i32, i32) {
    %c0_i32 = arith.constant 0 : i32
    %c0_i32_0 = arith.constant 0 : i32
    return %arg0, %arg1, %c0_i32 : i32, i32, i32
  }
}

</mosaic_0001>

<llo_original>
// kernel: forward.5
$region0: #{forward.5}
  #allocation0 [shape = 'u32[]', space=smem, size = 0x4, offset = 0x4, fixed_abs, tag = 'smem constant byte address 0x4 - core index']
  #allocation1 [shape = 'u32[72,128]{1,0:T(1,128)}', space=vmem, size = 0x9000, scoped, tag = 'internal scratch']
  %s0 = inlined_call_operand.vmem [shape: bf16[2,82,16], index: 0, kind: input, shape index: {}]
  %s1 = inlined_call_operand.vmem [shape: bf16[64,128], index: 1, kind: input, shape index: {}]
  %s2 = inlined_call_operand.vmem [shape: f32[1,128], index: 2, kind: input, shape index: {}]
  %s3 = inlined_call_operand.vmem [shape: bf16[2,72,128], index: 3, kind: output, shape index: {}]
  %s4 = sld [smem:[#allocation0]]
  $region45: #{forward.5} parent=0
    _
  %s6 = ssub.s32 1, %s4
  %s7 = scalar_select 0, %s6, %s4
  loop: start=0, step=1, limit=4
  $region2: #{forward.5} parent=0 // loop_pre_header
    _
  $region3: #{forward.5} parent=0 // loop_header
    %s9 = sphi 0, %s13
    %p10 = scmp.ge.s32.totalorder %s9, 4
    %s16 = sphi 0, %s28
    %s17 = sphi 0, %s24
    %s18 = sphi 0, %s16
    %s19 = sphi 0, %s17
    %s20 = sphi 0, %s18
    %s21 = sphi 0, %s19
    %s31 = sphi 0, %s33
    %s34 = sphi 0, %s31
    %s35 = sphi 0, %s34
    %s51 = sphi 0, %s35
    %s55 = sphi 0, %s55
    %s57 = sphi 0, %s55
    %s58 = sphi 0, %s57
    %s72 = sphi 0, %s58
    %s76 = sphi 0, %s76
    %s78 = sphi 0, %s76
    %s79 = sphi 0, %s78
    %s93 = sphi 0, %s79
    %s101 = sphi 0, %s103
    %s104 = sphi 0, %s101
    %s105 = sphi 0, %s104
    %s121 = sphi 0, %s105
  $region4: #{forward.5} parent=0 // loop_header_branch
    %12 = sbr.rel (%p10) target = $region8
  $region5: #{forward.5} parent=0 // loop_body
    %s14 = ssub.s32 %s9, 1
    %s15 = ssub.s32 %s9, 2
    %s22 = sadd.s32 1, %s17
    %p23 = scmp.ge.s32.totalorder %s22, 1
    %s24 = scalar_select %p23, 0, %s22
    %s25 = sadd.s32 1, %s16
    %s26 = scalar_select %p23, %s25, %s16
    %p27 = scmp.ge.s32.totalorder %s26, 2
    %s28 = scalar_select %p27, 0, %s26
    %s29 = ssub.s32 %s16, %s28
    %p30 = scmp.eq.s32.totalorder %s29, 0
    %s32 = sadd.s32 %s31, 1
    %s33 = scalar_select %p30, %s31, %s32
    %p36 = pneg %p30
    %p37 = scmp.eq.s32.totalorder %s9, 1
    %p38 = por %p36, %p37
    %p39 = scmp.ne.s32.totalorder %s31, %s34
    %p40 = scmp.eq.s32.totalorder %s9, 0
    %p41 = por %p39, %p40
    %p42 = scmp.ne.s32.totalorder %s31, %s34
    %p43 = scmp.eq.s32.totalorder %s14, 1
    %p44 = por %p42, %p43
    %p45 = scmp.ne.s32.totalorder %s34, %s35
    %p46 = scmp.eq.s32.totalorder %s14, 0
    %p47 = por %p45, %p46
    %p48 = scmp.ne.s32.totalorder %s34, %s35
    %p49 = scmp.eq.s32.totalorder %s15, 1
    %p50 = por %p48, %p49
    %p52 = scmp.ne.s32.totalorder %s35, %s51
    %p53 = scmp.eq.s32.totalorder %s15, 0
    %p54 = por %p52, %p53
    %s56 = sadd.s32 %s55, 1
    %p59 = scmp.eq.s32.totalorder %s9, 1
    %p60 = scmp.ne.s32.totalorder %s55, %s57
    %p61 = scmp.eq.s32.totalorder %s9, 0
    %p62 = por %p60, %p61
    %p63 = scmp.ne.s32.totalorder %s55, %s57
    %p64 = scmp.eq.s32.totalorder %s14, 1
    %p65 = por %p63, %p64
    %p66 = scmp.ne.s32.totalorder %s57, %s58
    %p67 = scmp.eq.s32.totalorder %s14, 0
    %p68 = por %p66, %p67
    %p69 = scmp.ne.s32.totalorder %s57, %s58
    %p70 = scmp.eq.s32.totalorder %s15, 1
    %p71 = por %p69, %p70
    %p73 = scmp.ne.s32.totalorder %s58, %s72
    %p74 = scmp.eq.s32.totalorder %s15, 0
    %p75 = por %p73, %p74
    %s77 = sadd.s32 %s76, 1
    %p80 = scmp.eq.s32.totalorder %s9, 1
    %p81 = scmp.ne.s32.totalorder %s76, %s78
    %p82 = scmp.eq.s32.totalorder %s9, 0
    %p83 = por %p81, %p82
    %p84 = scmp.ne.s32.totalorder %s76, %s78
    %p85 = scmp.eq.s32.totalorder %s14, 1
    %p86 = por %p84, %p85
    %p87 = scmp.ne.s32.totalorder %s78, %s79
    %p88 = scmp.eq.s32.totalorder %s14, 0
    %p89 = por %p87, %p88
    %p90 = scmp.ne.s32.totalorder %s78, %s79
    %p91 = scmp.eq.s32.totalorder %s15, 1
    %p92 = por %p90, %p91
    %p94 = scmp.ne.s32.totalorder %s79, %s93
    %p95 = scmp.eq.s32.totalorder %s15, 0
    %p96 = por %p94, %p95
    %s97 = ssub.s32 %s16, %s28
    %s98 = ssub.s32 %s17, %s24
    %s99 = sor.u32 %s97, %s98
    %p100 = scmp.eq.s32.totalorder %s99, 0
    %s102 = sadd.s32 %s101, 1
    %s103 = scalar_select %p100, %s101, %s102
    %p106 = pneg %p100
    %p107 = scmp.eq.s32.totalorder %s9, 1
    %p108 = por %p106, %p107
    %p109 = scmp.ne.s32.totalorder %s101, %s104
    %p110 = scmp.eq.s32.totalorder %s9, 0
    %p111 = por %p109, %p110
    %p112 = scmp.ne.s32.totalorder %s101, %s104
    %p113 = scmp.eq.s32.totalorder %s14, 1
    %p114 = por %p112, %p113
    %p115 = scmp.ne.s32.totalorder %s104, %s105
    %p116 = scmp.eq.s32.totalorder %s14, 0
    %p117 = por %p115, %p116
    %p118 = scmp.ne.s32.totalorder %s104, %s105
    %p119 = scmp.eq.s32.totalorder %s15, 1
    %p120 = por %p118, %p119
    %p122 = scmp.ne.s32.totalorder %s105, %s121
    %p123 = scmp.eq.s32.totalorder %s15, 0
    %p124 = por %p122, %p123
    %p125 = scmp.le.s32.totalorder 1, %s9
    %p126 = scmp.lt.s32.totalorder %s9, 3
    %p127 = pnand %p125, %p126
    %p128 = pneg %p127
    // Predicated region
    $region9: #{forward.5} parent=5 // pred_check
      _
    $region10: #{forward.5} parent=5 // pred_check_branch
      %130 = sbr.rel (%p127) target = $region12
    $region11: #{forward.5} parent=5 // pred_region
      %s131 = ssub.s32 %s9, 1
      // Predicated region
      $region13: #{forward.5} parent=11 // pred_check
        %p132 = pneg %p68
      $region14: #{forward.5} parent=11 // pred_check_branch
        %134 = sbr.rel (%p132) target = $region16
      $region15: #{forward.5} parent=11 // pred_region
        _
      $region16: #{forward.5} parent=11 // pred_fallthru
        _
      // Predicated region
      $region17: #{forward.5} parent=11 // pred_check
        %p135 = pneg %p89
      $region18: #{forward.5} parent=11 // pred_check_branch
        %137 = sbr.rel (%p135) target = $region20
      $region19: #{forward.5} parent=11 // pred_region
        _
      $region20: #{forward.5} parent=11 // pred_fallthru
        _
    $region12: #{forward.5} parent=5 // pred_fallthru
      _
    %p138 = scmp.lt.s32.totalorder %s9, 2
    // Predicated region
    $region21: #{forward.5} parent=5 // pred_check
      %p139 = pneg %p138
    $region22: #{forward.5} parent=5 // pred_check_branch
      %141 = sbr.rel (%p139) target = $region24
    $region23: #{forward.5} parent=5 // pred_region
      // Predicated region
      $region25: #{forward.5} parent=23 // pred_check
        %p142 = pneg %p41
      $region26: #{forward.5} parent=23 // pred_check_branch
        %144 = sbr.rel (%p142) target = $region28
      $region27: #{forward.5} parent=23 // pred_region
        %p145 = scmp.lt.s32.totalorder %s16, 1
        %s146 = scalar_select %p145, %s16, 1
        %s147 = smul.addr %s146, 11
        %s148 = smul.addr %s147, 4
        %s149 = scalar_lea.vmem %s0, %s148
      $region28: #{forward.5} parent=23 // pred_fallthru
        _
    $region24: #{forward.5} parent=5 // pred_fallthru
      _
    %p150 = scmp.le.s32.totalorder 1, %s9
    %p151 = scmp.lt.s32.totalorder %s9, 3
    %p152 = pnand %p150, %p151
    %p153 = pneg %p152
    // Predicated region
    $region29: #{forward.5} parent=5 // pred_check
      _
    $region30: #{forward.5} parent=5 // pred_check_branch
      %155 = sbr.rel (%p152) target = $region32
    $region31: #{forward.5} parent=5 // pred_region
      %s156 = ssub.s32 %s9, 1
      %p157 = scmp.lt.s32.totalorder %s18, 1
      %s158 = scalar_select %p157, %s18, 1
      %s159 = smul.addr %s158, 11
      %s160 = smul.addr %s159, 4
      %s161 = scalar_lea.vmem %s0, %s160
      %p162 = pneg %p47
      %p163 = pneg %p44
      %p164 = pneg %p68
      %p165 = pneg %p65
      %p166 = pneg %p89
      %p167 = pneg %p86
      %p168 = pneg %p117
      %p169 = pneg %p114
      %s170 = smul.u32 9, %s19
      %p171 = scmp.lt.s32.totalorder %s18, 1
      %s172 = scalar_select %p171, %s18, 1
      %p173 = scmp.lt.s32.totalorder %s170, 8
      %s174 = scalar_select %p173, %s170, 8
      %s175 = smul.addr %s172, 9
      %s176 = sadd.s32 %s174, %s175
      %s177 = smul.addr %s176, 4
      %s178 = scalar_lea.vmem %s3, %s177
      %p179 = scmp.lt.s32.totalorder %s18, 1
      %s180 = scalar_select %p179, %s18, 1
      %s181 = smul.addr %s180, 11
      %s182 = smul.addr %s181, 4
      %s183 = scalar_lea.vmem %s0, %s182
      %s184 = smul.u32 9, %s19
      %p185 = scmp.lt.s32.totalorder %s18, 1
      %s186 = scalar_select %p185, %s18, 1
      %p187 = scmp.lt.s32.totalorder %s184, 8
      %s188 = scalar_select %p187, %s184, 8
      %s189 = smul.addr %s186, 9
      %s190 = sadd.s32 %s188, %s189
      %s191 = smul.addr %s190, 4
      %s192 = scalar_lea.vmem %s3, %s191
      %s193 = smul.u32 9, %s19
      %s195 = smul.u32 %s19, 72
      %s196 = sshra.s32 %s195, 3
      %s197 = sand.u32 %s195, 7
      %s198 = smul.addr %s196, 4
      %s199 = scalar_lea.vmem %s183, %s198
      %v200 = vld [vmem:[%s199] sm:$0xf]
      %v201 = vld [vmem:[%s199 + $0x4] sm:$0xf]
      %v202 = vld [vmem:[%s199 + $0x8] sm:$0xf]
      %v203 = vld [vmem:[%s199 + $0xc] sm:$0xf]
      %v204 = vld [vmem:[%s199 + $0x10] sm:$0xf]
      %v205 = vld [vmem:[%s199 + $0x14] sm:$0xf]
      %v206 = vld [vmem:[%s199 + $0x18] sm:$0xf]
      %v207 = vld [vmem:[%s199 + $0x1c] sm:$0xf]
      %v208 = vld [vmem:[%s199 + $0x20] sm:$0xf]
      %v209 = vld [vmem:[%s199 + $0x24] sm:$0xf]
      %v210 = vld [vmem:[%s199 + $0x28] sm:$0x1]
      %v211 = vunpack.c.l.bf16 %v200
      %v212 = vunpack.c.l.bf16 %v201
      %v213 = vunpack.c.l.bf16 %v202
      %v214 = vunpack.c.l.bf16 %v203
      %v215 = vunpack.c.l.bf16 %v204
      %v216 = vunpack.c.l.bf16 %v205
      %v217 = vunpack.c.l.bf16 %v206
      %v218 = vunpack.c.l.bf16 %v207
      %v219 = vunpack.c.l.bf16 %v208
      %v220 = vunpack.c.l.bf16 %v209
      %v221 = vunpack.c.l.bf16 %v210
      %vm232 = vcmask 1046528
      %v233 = vrot.slane %v211, 1
      %v234 = vrot.slane %v212, 1
      %v235 = vsel %vm232, %v233, %v234
      %v236 = vrot.slane %v213, 1
      %v237 = vsel %vm232, %v234, %v236
      %v238 = vrot.slane %v214, 1
      %v239 = vsel %vm232, %v236, %v238
      %v240 = vrot.slane %v215, 1
      %v241 = vsel %vm232, %v238, %v240
      %v242 = vrot.slane %v216, 1
      %v243 = vsel %vm232, %v240, %v242
      %v244 = vrot.slane %v217, 1
      %v245 = vsel %vm232, %v242, %v244
      %v246 = vrot.slane %v218, 1
      %v247 = vsel %vm232, %v244, %v246
      %v248 = vrot.slane %v219, 1
      %v249 = vsel %vm232, %v246, %v248
      %v250 = vrot.slane %v220, 1
      %v251 = vsel %vm232, %v248, %v250
      %252 = vrot.lane.b32.xlu0 %v235, 16
      %v253 = vpop.permute.xlu0 %252
      %254 = vrot.lane.b32.xlu0 %v237, 16
      %v255 = vpop.permute.xlu0 %254
      %256 = vrot.lane.b32.xlu0 %v239, 16
      %v257 = vpop.permute.xlu0 %256
      %258 = vrot.lane.b32.xlu0 %v241, 16
      %v259 = vpop.permute.xlu0 %258
      %260 = vrot.lane.b32.xlu0 %v243, 16
      %v261 = vpop.permute.xlu0 %260
      %262 = vrot.lane.b32.xlu0 %v245, 16
      %v263 = vpop.permute.xlu0 %262
      %264 = vrot.lane.b32.xlu0 %v247, 16
      %v265 = vpop.permute.xlu0 %264
      %266 = vrot.lane.b32.xlu0 %v249, 16
      %v267 = vpop.permute.xlu0 %266
      %268 = vrot.lane.b32.xlu0 %v251, 16
      %v269 = vpop.permute.xlu0 %268
      %v280 = vrot.slane %v221, 1
      %v281 = vsel %vm232, %v250, %v280
      %282 = vrot.lane.b32.xlu0 %v237, 32
      %v283 = vpop.permute.xlu0 %282
      %284 = vrot.lane.b32.xlu0 %v239, 32
      %v285 = vpop.permute.xlu0 %284
      %286 = vrot.lane.b32.xlu0 %v241, 32
      %v287 = vpop.permute.xlu0 %286
      %288 = vrot.lane.b32.xlu0 %v243, 32
      %v289 = vpop.permute.xlu0 %288
      %290 = vrot.lane.b32.xlu0 %v245, 32
      %v291 = vpop.permute.xlu0 %290
      %292 = vrot.lane.b32.xlu0 %v247, 32
      %v293 = vpop.permute.xlu0 %292
      %294 = vrot.lane.b32.xlu0 %v249, 32
      %v295 = vpop.permute.xlu0 %294
      %296 = vrot.lane.b32.xlu0 %v251, 32
      %v297 = vpop.permute.xlu0 %296
      %298 = vrot.lane.b32.xlu0 %v281, 32
      %v299 = vpop.permute.xlu0 %298
      %vm309 = vcmask 1045504
      %v310 = vrot.slane %v212, 2
      %v311 = vrot.slane %v213, 2
      %v312 = vsel %vm309, %v310, %v311
      %v313 = vrot.slane %v214, 2
      %v314 = vsel %vm309, %v311, %v313
      %v315 = vrot.slane %v215, 2
      %v316 = vsel %vm309, %v313, %v315
      %v317 = vrot.slane %v216, 2
      %v318 = vsel %vm309, %v315, %v317
      %v319 = vrot.slane %v217, 2
      %v320 = vsel %vm309, %v317, %v319
      %v321 = vrot.slane %v218, 2
      %v322 = vsel %vm309, %v319, %v321
      %v323 = vrot.slane %v219, 2
      %v324 = vsel %vm309, %v321, %v323
      %v325 = vrot.slane %v220, 2
      %v326 = vsel %vm309, %v323, %v325
      %v327 = vrot.slane %v221, 2
      %v328 = vsel %vm309, %v325, %v327
      %329 = vrot.lane.b32.xlu0 %v312, 48
      %v330 = vpop.permute.xlu0 %329
      %331 = vrot.lane.b32.xlu0 %v314, 48
      %v332 = vpop.permute.xlu0 %331
      %333 = vrot.lane.b32.xlu0 %v316, 48
      %v334 = vpop.permute.xlu0 %333
      %335 = vrot.lane.b32.xlu0 %v318, 48
      %v336 = vpop.permute.xlu0 %335
      %337 = vrot.lane.b32.xlu0 %v320, 48
      %v338 = vpop.permute.xlu0 %337
      %339 = vrot.lane.b32.xlu0 %v322, 48
      %v340 = vpop.permute.xlu0 %339
      %341 = vrot.lane.b32.xlu0 %v324, 48
      %v342 = vpop.permute.xlu0 %341
      %343 = vrot.lane.b32.xlu0 %v326, 48
      %v344 = vpop.permute.xlu0 %343
      %345 = vrot.lane.b32.xlu0 %v328, 48
      %v346 = vpop.permute.xlu0 %345
      %vm356 = vcmask 130048
      %v357 = vsel %vm356, %v211, %v253
      %v358 = vsel %vm356, %v212, %v255
      %v359 = vsel %vm356, %v213, %v257
      %v360 = vsel %vm356, %v214, %v259
      %v361 = vsel %vm356, %v215, %v261
      %v362 = vsel %vm356, %v216, %v263
      %v363 = vsel %vm356, %v217, %v265
      %v364 = vsel %vm356, %v218, %v267
      %v365 = vsel %vm356, %v219, %v269
      %vm366 = vcmask 261120
      %v367 = vsel %vm366, %v357, %v283
      %v368 = vsel %vm366, %v358, %v285
      %v369 = vsel %vm366, %v359, %v287
      %v370 = vsel %vm366, %v360, %v289
      %v371 = vsel %vm366, %v361, %v291
      %v372 = vsel %vm366, %v362, %v293
      %v373 = vsel %vm366, %v363, %v295
      %v374 = vsel %vm366, %v364, %v297
      %v375 = vsel %vm366, %v365, %v299
      %vm376 = vcmask 392192
      %v377 = vsel %vm376, %v367, %v330
      %v378 = vsel %vm376, %v368, %v332
      %v379 = vsel %vm376, %v369, %v334
      %v380 = vsel %vm376, %v370, %v336
      %v381 = vsel %vm376, %v371, %v338
      %v382 = vsel %vm376, %v372, %v340
      %v383 = vsel %vm376, %v373, %v342
      %v384 = vsel %vm376, %v374, %v344
      %v385 = vsel %vm376, %v375, %v346
      %v386 = vpack.c.bf16 %v378, %v377
      %v387 = vpack.c.bf16 %v380, %v379
      %v388 = vpack.c.bf16 %v382, %v381
      %v389 = vpack.c.bf16 %v384, %v383
      %v390 = vpack.c.bf16 %v385, %v385
      %v391 = vld [vmem:[%s1] sm:$0xf]
      %v392 = vld [vmem:[%s1 + $0x4] sm:$0xf]
      %v393 = vld [vmem:[%s1 + $0x8] sm:$0xf]
      %v394 = vld [vmem:[%s1 + $0xc] sm:$0xf]
      %v395 = vld [vmem:[%s1 + $0x10] sm:$0xf]
      %v396 = vld [vmem:[%s1 + $0x14] sm:$0xf]
      %v397 = vld [vmem:[%s1 + $0x18] sm:$0xf]
      %v398 = vld [vmem:[%s1 + $0x1c] sm:$0xf]
      %v399 = vld [vmem:[%s2] sm:$0x1]
      %v401 = vperm.slane %v399, 0
      %v411 = vunpack.c.l.b16 %v391
      %v412 = vunpack.c.l.b16 %v392
      %v413 = vunpack.c.l.b16 %v393
      %v414 = vunpack.c.l.b16 %v394
      %v415 = vunpack.c.l.b16 %v395
      %v416 = vunpack.c.l.b16 %v396
      %v417 = vunpack.c.l.b16 %v397
      %v418 = vunpack.c.l.b16 %v398
      %v419 = vpack.c.b16 %v412, %v411
      %v420 = vpack.c.b16 %v414, %v413
      %v421 = vpack.c.b16 %v416, %v415
      %v422 = vpack.c.b16 %v418, %v417
      %vm427 = vcmask 523264
      %v429 = vsel %vm427, %v386, 0
      %v432 = vsel %vm427, %v387, 0
      %v435 = vsel %vm427, %v388, 0
      %v438 = vsel %vm427, %v389, 0
      %v441 = vsel %vm427, %v390, 0
      %443 = vmatpush.bf16.msra.mxu0 0
      %444 = vmatpush.bf16.msra.mxu0 0
      %445 = vmatpush.bf16.msra.mxu0 0
      %446 = vmatpush.bf16.msra.mxu0 0
      %447 = vmatpush.bf16.msra.mxu0 %v422
      %448 = vmatpush.bf16.msra.mxu0 %v421
      %449 = vmatpush.bf16.msra.mxu0 %v420
      %450 = vmatpush.bf16.msra.mxu0 %v419
      %451 = vmatmul.bf16.gmra.mxu0 %v429
      %v452 = vpop.f32.mrf.mxu0
      %v453 = vadd.f32 %v401, %v452
      %v454 = vpop.f32.mrf.mxu0
      %v455 = vadd.f32 %v401, %v454
      %456 = vmatmul.bf16.gmra.mxu0 %v432
      %v457 = vpop.f32.mrf.mxu0
      %v458 = vadd.f32 %v401, %v457
      %v459 = vpop.f32.mrf.mxu0
      %v460 = vadd.f32 %v401, %v459
      %461 = vmatmul.bf16.gmra.mxu0 %v435
      %v462 = vpop.f32.mrf.mxu0
      %v463 = vadd.f32 %v401, %v462
      %v464 = vpop.f32.mrf.mxu0
      %v465 = vadd.f32 %v401, %v464
      %466 = vmatmul.bf16.gmra.mxu0 %v438
      %v467 = vpop.f32.mrf.mxu0
      %v468 = vadd.f32 %v401, %v467
      %v469 = vpop.f32.mrf.mxu0
      %v470 = vadd.f32 %v401, %v469
      %471 = vmatmul.bf16.gmra.mxu0 %v441
      %v472 = vpop.f32.mrf.mxu0
      %v473 = vadd.f32 %v401, %v472
      %v474 = vpop.f32.mrf.mxu0
      %475 = vdwg.mxu0
      %vm476 = vcmp.ge.f32.partialorder %v453, 0.0
      %vm477 = vcmp.ge.f32.partialorder %v455, 0.0
      %vm478 = vcmp.ge.f32.partialorder %v458, 0.0
      %vm479 = vcmp.ge.f32.partialorder %v460, 0.0
      %vm480 = vcmp.ge.f32.partialorder %v463, 0.0
      %vm481 = vcmp.ge.f32.partialorder %v465, 0.0
      %vm482 = vcmp.ge.f32.partialorder %v468, 0.0
      %vm483 = vcmp.ge.f32.partialorder %v470, 0.0
      %vm484 = vcmp.ge.f32.partialorder %v473, 0.0
      %v485 = vmul.f32 %v453, 0.2
      %v486 = vmul.f32 %v455, 0.2
      %v487 = vmul.f32 %v458, 0.2
      %v488 = vmul.f32 %v460, 0.2
      %v489 = vmul.f32 %v463, 0.2
      %v490 = vmul.f32 %v465, 0.2
      %v491 = vmul.f32 %v468, 0.2
      %v492 = vmul.f32 %v470, 0.2
      %v493 = vmul.f32 %v473, 0.2
      %v494 = vsel %vm476, %v453, %v485
      %v495 = vsel %vm477, %v455, %v486
      %v496 = vsel %vm478, %v458, %v487
      %v497 = vsel %vm479, %v460, %v488
      %v498 = vsel %vm480, %v463, %v489
      %v499 = vsel %vm481, %v465, %v490
      %v500 = vsel %vm482, %v468, %v491
      %v501 = vsel %vm483, %v470, %v492
      %v502 = vsel %vm484, %v473, %v493
      %v503 = vpack.c.bf16 %v494, %v494
      %v504 = vpack.c.bf16 %v495, %v495
      %v505 = vpack.c.bf16 %v496, %v496
      %v506 = vpack.c.bf16 %v497, %v497
      %v507 = vpack.c.bf16 %v498, %v498
      %v508 = vpack.c.bf16 %v499, %v499
      %v509 = vpack.c.bf16 %v500, %v500
      %v510 = vpack.c.bf16 %v501, %v501
      %v511 = vpack.c.bf16 %v502, %v502
      %512 = vst [vmem:[%s192] sm:$0xf] %v503
      %513 = vst [vmem:[%s192 + $0x4] sm:$0xf] %v504
      %514 = vst [vmem:[%s192 + $0x8] sm:$0xf] %v505
      %515 = vst [vmem:[%s192 + $0xc] sm:$0xf] %v506
      %516 = vst [vmem:[%s192 + $0x10] sm:$0xf] %v507
      %517 = vst [vmem:[%s192 + $0x14] sm:$0xf] %v508
      %518 = vst [vmem:[%s192 + $0x18] sm:$0xf] %v509
      %519 = vst [vmem:[%s192 + $0x1c] sm:$0xf] %v510
      %520 = vst [vmem:[%s192 + $0x20] sm:$0xf] %v511
      %s521 = smul.u32 9, %s19
      %p522 = scmp.lt.s32.totalorder %s18, 1
      %s523 = scalar_select %p522, %s18, 1
      %p524 = scmp.lt.s32.totalorder %s521, 8
      %s525 = scalar_select %p524, %s521, 8
      %s526 = smul.addr %s523, 9
      %s527 = sadd.s32 %s525, %s526
      %s528 = smul.addr %s527, 4
      %s529 = scalar_lea.vmem %s3, %s528
      // Predicated region
      $region33: #{forward.5} parent=31 // pred_check
        %p530 = pneg %p114
      $region34: #{forward.5} parent=31 // pred_check_branch
        %532 = sbr.rel (%p530) target = $region36
      $region35: #{forward.5} parent=31 // pred_region
        %s533 = smul.u32 9, %s19
      $region36: #{forward.5} parent=31 // pred_fallthru
        _
    $region32: #{forward.5} parent=5 // pred_fallthru
      _
    %p534 = scmp.le.s32.totalorder 2, %s9
    // Predicated region
    $region37: #{forward.5} parent=5 // pred_check
      %p535 = pneg %p534
    $region38: #{forward.5} parent=5 // pred_check_branch
      %537 = sbr.rel (%p535) target = $region40
    $region39: #{forward.5} parent=5 // pred_region
      %s538 = ssub.s32 %s9, 2
      // Predicated region
      $region41: #{forward.5} parent=39 // pred_check
        %p539 = pneg %p120
      $region42: #{forward.5} parent=39 // pred_check_branch
        %541 = sbr.rel (%p539) target = $region44
      $region43: #{forward.5} parent=39 // pred_region
        %s542 = smul.u32 9, %s21
        %p543 = scmp.lt.s32.totalorder %s20, 1
        %s544 = scalar_select %p543, %s20, 1
        %p545 = scmp.lt.s32.totalorder %s542, 8
        %s546 = scalar_select %p545, %s542, 8
        %s547 = smul.addr %s544, 9
        %s548 = sadd.s32 %s546, %s547
        %s549 = smul.addr %s548, 4
        %s550 = scalar_lea.vmem %s3, %s549
      $region44: #{forward.5} parent=39 // pred_fallthru
        _
    $region40: #{forward.5} parent=5 // pred_fallthru
      _
  $region6: #{forward.5} parent=0 // loop_footer
    %s13 = sadd.s32 1, %s9
  $region7: #{forward.5} parent=0 // loop_footer_branch
    %8 = sbr.rel target = $region3
  $region8: #{forward.5} parent=0 // loop_exit
    _

// kernel: forward.6
$region0: #{forward.6}
  #allocation0 [shape = 'u32[]', space=smem, size = 0x4, offset = 0x4, fixed_abs, tag = 'smem constant byte address 0x4 - core index']
  #allocation1 [shape = 'u32[72,128]{1,0:T(1,128)}', space=vmem, size = 0x9000, scoped, tag = 'internal scratch']
  %s0 = inlined_call_operand.vmem [shape: bf16[2,30,64], index: 0, kind: input, shape index: {}]
  %s1 = inlined_call_operand.vmem [shape: bf16[256,128], index: 1, kind: input, shape index: {}]
  %s2 = inlined_call_operand.vmem [shape: f32[1,128], index: 2, kind: input, shape index: {}]
  %s3 = inlined_call_operand.vmem [shape: bf16[2,24,128], index: 3, kind: output, shape index: {0}]
  %s4 = inlined_call_operand.vmem [shape: f32[2,8,128], index: 4, kind: output, shape index: {1}]
  %s5 = inlined_call_operand.vmem [shape: f32[2,8,128], index: 5, kind: output, shape index: {2}]
  %6 = xla_tuple %s3, %s4, %s5
  %s7 = sld [smem:[#allocation0]]
  $region61: #{forward.6} parent=0
    _
  %s9 = ssub.s32 1, %s7
  %s10 = scalar_select 0, %s9, %s7
  loop: start=0, step=1, limit=4
  $region2: #{forward.6} parent=0 // loop_pre_header
    _
  $region3: #{forward.6} parent=0 // loop_header
    %s12 = sphi 0, %s16
    %p13 = scmp.ge.s32.totalorder %s12, 4
    %s19 = sphi 0, %s31
    %s20 = sphi 0, %s27
    %s21 = sphi 0, %s19
    %s22 = sphi 0, %s20
    %s23 = sphi 0, %s21
    %s24 = sphi 0, %s22
    %s34 = sphi 0, %s36
    %s37 = sphi 0, %s34
    %s38 = sphi 0, %s37
    %s54 = sphi 0, %s38
    %s58 = sphi 0, %s58
    %s60 = sphi 0, %s58
    %s61 = sphi 0, %s60
    %s75 = sphi 0, %s61
    %s79 = sphi 0, %s79
    %s81 = sphi 0, %s79
    %s82 = sphi 0, %s81
    %s96 = sphi 0, %s82
    %s104 = sphi 0, %s106
    %s107 = sphi 0, %s104
    %s108 = sphi 0, %s107
    %s124 = sphi 0, %s108
    %s132 = sphi 0, %s134
    %s135 = sphi 0, %s132
    %s136 = sphi 0, %s135
    %s152 = sphi 0, %s136
    %s160 = sphi 0, %s162
    %s163 = sphi 0, %s160
    %s164 = sphi 0, %s163
    %s180 = sphi 0, %s164
  $region4: #{forward.6} parent=0 // loop_header_branch
    %15 = sbr.rel (%p13) target = $region8
  $region5: #{forward.6} parent=0 // loop_body
    %s17 = ssub.s32 %s12, 1
    %s18 = ssub.s32 %s12, 2
    %s25 = sadd.s32 1, %s20
    %p26 = scmp.ge.s32.totalorder %s25, 1
    %s27 = scalar_select %p26, 0, %s25
    %s28 = sadd.s32 1, %s19
    %s29 = scalar_select %p26, %s28, %s19
    %p30 = scmp.ge.s32.totalorder %s29, 2
    %s31 = scalar_select %p30, 0, %s29
    %s32 = ssub.s32 %s19, %s31
    %p33 = scmp.eq.s32.totalorder %s32, 0
    %s35 = sadd.s32 %s34, 1
    %s36 = scalar_select %p33, %s34, %s35
    %p39 = pneg %p33
    %p40 = scmp.eq.s32.totalorder %s12, 1
    %p41 = por %p39, %p40
    %p42 = scmp.ne.s32.totalorder %s34, %s37
    %p43 = scmp.eq.s32.totalorder %s12, 0
    %p44 = por %p42, %p43
    %p45 = scmp.ne.s32.totalorder %s34, %s37
    %p46 = scmp.eq.s32.totalorder %s17, 1
    %p47 = por %p45, %p46
    %p48 = scmp.ne.s32.totalorder %s37, %s38
    %p49 = scmp.eq.s32.totalorder %s17, 0
    %p50 = por %p48, %p49
    %p51 = scmp.ne.s32.totalorder %s37, %s38
    %p52 = scmp.eq.s32.totalorder %s18, 1
    %p53 = por %p51, %p52
    %p55 = scmp.ne.s32.totalorder %s38, %s54
    %p56 = scmp.eq.s32.totalorder %s18, 0
    %p57 = por %p55, %p56
    %s59 = sadd.s32 %s58, 1
    %p62 = scmp.eq.s32.totalorder %s12, 1
    %p63 = scmp.ne.s32.totalorder %s58, %s60
    %p64 = scmp.eq.s32.totalorder %s12, 0
    %p65 = por %p63, %p64
    %p66 = scmp.ne.s32.totalorder %s58, %s60
    %p67 = scmp.eq.s32.totalorder %s17, 1
    %p68 = por %p66, %p67
    %p69 = scmp.ne.s32.totalorder %s60, %s61
    %p70 = scmp.eq.s32.totalorder %s17, 0
    %p71 = por %p69, %p70
    %p72 = scmp.ne.s32.totalorder %s60, %s61
    %p73 = scmp.eq.s32.totalorder %s18, 1
    %p74 = por %p72, %p73
    %p76 = scmp.ne.s32.totalorder %s61, %s75
    %p77 = scmp.eq.s32.totalorder %s18, 0
    %p78 = por %p76, %p77
    %s80 = sadd.s32 %s79, 1
    %p83 = scmp.eq.s32.totalorder %s12, 1
    %p84 = scmp.ne.s32.totalorder %s79, %s81
    %p85 = scmp.eq.s32.totalorder %s12, 0
    %p86 = por %p84, %p85
    %p87 = scmp.ne.s32.totalorder %s79, %s81
    %p88 = scmp.eq.s32.totalorder %s17, 1
    %p89 = por %p87, %p88
    %p90 = scmp.ne.s32.totalorder %s81, %s82
    %p91 = scmp.eq.s32.totalorder %s17, 0
    %p92 = por %p90, %p91
    %p93 = scmp.ne.s32.totalorder %s81, %s82
    %p94 = scmp.eq.s32.totalorder %s18, 1
    %p95 = por %p93, %p94
    %p97 = scmp.ne.s32.totalorder %s82, %s96
    %p98 = scmp.eq.s32.totalorder %s18, 0
    %p99 = por %p97, %p98
    %s100 = ssub.s32 %s19, %s31
    %s101 = ssub.s32 %s20, %s27
    %s102 = sor.u32 %s100, %s101
    %p103 = scmp.eq.s32.totalorder %s102, 0
    %s105 = sadd.s32 %s104, 1
    %s106 = scalar_select %p103, %s104, %s105
    %p109 = pneg %p103
    %p110 = scmp.eq.s32.totalorder %s12, 1
    %p111 = por %p109, %p110
    %p112 = scmp.ne.s32.totalorder %s104, %s107
    %p113 = scmp.eq.s32.totalorder %s12, 0
    %p114 = por %p112, %p113
    %p115 = scmp.ne.s32.totalorder %s104, %s107
    %p116 = scmp.eq.s32.totalorder %s17, 1
    %p117 = por %p115, %p116
    %p118 = scmp.ne.s32.totalorder %s107, %s108
    %p119 = scmp.eq.s32.totalorder %s17, 0
    %p120 = por %p118, %p119
    %p121 = scmp.ne.s32.totalorder %s107, %s108
    %p122 = scmp.eq.s32.totalorder %s18, 1
    %p123 = por %p121, %p122
    %p125 = scmp.ne.s32.totalorder %s108, %s124
    %p126 = scmp.eq.s32.totalorder %s18, 0
    %p127 = por %p125, %p126
    %s128 = ssub.s32 %s19, %s31
    %s129 = ssub.s32 %s20, %s27
    %s130 = sor.u32 %s128, %s129
    %p131 = scmp.eq.s32.totalorder %s130, 0
    %s133 = sadd.s32 %s132, 1
    %s134 = scalar_select %p131, %s132, %s133
    %p137 = pneg %p131
    %p138 = scmp.eq.s32.totalorder %s12, 1
    %p139 = por %p137, %p138
    %p140 = scmp.ne.s32.totalorder %s132, %s135
    %p141 = scmp.eq.s32.totalorder %s12, 0
    %p142 = por %p140, %p141
    %p143 = scmp.ne.s32.totalorder %s132, %s135
    %p144 = scmp.eq.s32.totalorder %s17, 1
    %p145 = por %p143, %p144
    %p146 = scmp.ne.s32.totalorder %s135, %s136
    %p147 = scmp.eq.s32.totalorder %s17, 0
    %p148 = por %p146, %p147
    %p149 = scmp.ne.s32.totalorder %s135, %s136
    %p150 = scmp.eq.s32.totalorder %s18, 1
    %p151 = por %p149, %p150
    %p153 = scmp.ne.s32.totalorder %s136, %s152
    %p154 = scmp.eq.s32.totalorder %s18, 0
    %p155 = por %p153, %p154
    %s156 = ssub.s32 %s19, %s31
    %s157 = ssub.s32 %s20, %s27
    %s158 = sor.u32 %s156, %s157
    %p159 = scmp.eq.s32.totalorder %s158, 0
    %s161 = sadd.s32 %s160, 1
    %s162 = scalar_select %p159, %s160, %s161
    %p165 = pneg %p159
    %p166 = scmp.eq.s32.totalorder %s12, 1
    %p167 = por %p165, %p166
    %p168 = scmp.ne.s32.totalorder %s160, %s163
    %p169 = scmp.eq.s32.totalorder %s12, 0
    %p170 = por %p168, %p169
    %p171 = scmp.ne.s32.totalorder %s160, %s163
    %p172 = scmp.eq.s32.totalorder %s17, 1
    %p173 = por %p171, %p172
    %p174 = scmp.ne.s32.totalorder %s163, %s164
    %p175 = scmp.eq.s32.totalorder %s17, 0
    %p176 = por %p174, %p175
    %p177 = scmp.ne.s32.totalorder %s163, %s164
    %p178 = scmp.eq.s32.totalorder %s18, 1
    %p179 = por %p177, %p178
    %p181 = scmp.ne.s32.totalorder %s164, %s180
    %p182 = scmp.eq.s32.totalorder %s18, 0
    %p183 = por %p181, %p182
    %p184 = scmp.le.s32.totalorder 1, %s12
    %p185 = scmp.lt.s32.totalorder %s12, 3
    %p186 = pnand %p184, %p185
    %p187 = pneg %p186
    // Predicated region
    $region9: #{forward.6} parent=5 // pred_check
      _
    $region10: #{forward.6} parent=5 // pred_check_branch
      %189 = sbr.rel (%p186) target = $region12
    $region11: #{forward.6} parent=5 // pred_region
      %s190 = ssub.s32 %s12, 1
      // Predicated region
      $region13: #{forward.6} parent=11 // pred_check
        %p191 = pneg %p71
      $region14: #{forward.6} parent=11 // pred_check_branch
        %193 = sbr.rel (%p191) target = $region16
      $region15: #{forward.6} parent=11 // pred_region
        _
      $region16: #{forward.6} parent=11 // pred_fallthru
        _
      // Predicated region
      $region17: #{forward.6} parent=11 // pred_check
        %p194 = pneg %p92
      $region18: #{forward.6} parent=11 // pred_check_branch
        %196 = sbr.rel (%p194) target = $region20
      $region19: #{forward.6} parent=11 // pred_region
        _
      $region20: #{forward.6} parent=11 // pred_fallthru
        _
    $region12: #{forward.6} parent=5 // pred_fallthru
      _
    %p197 = scmp.lt.s32.totalorder %s12, 2
    // Predicated region
    $region21: #{forward.6} parent=5 // pred_check
      %p198 = pneg %p197
    $region22: #{forward.6} parent=5 // pred_check_branch
      %200 = sbr.rel (%p198) target = $region24
    $region23: #{forward.6} parent=5 // pred_region
      // Predicated region
      $region25: #{forward.6} parent=23 // pred_check
        %p201 = pneg %p44
      $region26: #{forward.6} parent=23 // pred_check_branch
        %203 = sbr.rel (%p201) target = $region28
      $region27: #{forward.6} parent=23 // pred_region
        %p204 = scmp.lt.s32.totalorder %s19, 1
        %s205 = scalar_select %p204, %s19, 1
        %s206 = smul.addr %s205, 4
        %s207 = smul.addr %s206, 4
        %s208 = scalar_lea.vmem %s0, %s207
      $region28: #{forward.6} parent=23 // pred_fallthru
        _
    $region24: #{forward.6} parent=5 // pred_fallthru
      _
    %p209 = scmp.le.s32.totalorder 1, %s12
    %p210 = scmp.lt.s32.totalorder %s12, 3
    %p211 = pnand %p209, %p210
    %p212 = pneg %p211
    // Predicated region
    $region29: #{forward.6} parent=5 // pred_check
      _
    $region30: #{forward.6} parent=5 // pred_check_branch
      %214 = sbr.rel (%p211) target = $region32
    $region31: #{forward.6} parent=5 // pred_region
      %s215 = ssub.s32 %s12, 1
      %p216 = scmp.lt.s32.totalorder %s21, 1
      %s217 = scalar_select %p216, %s21, 1
      %s218 = smul.addr %s217, 4
      %s219 = smul.addr %s218, 4
      %s220 = scalar_lea.vmem %s0, %s219
      %p221 = pneg %p50
      %p222 = pneg %p47
      %p223 = pneg %p71
      %p224 = pneg %p68
      %p225 = pneg %p92
      %p226 = pneg %p89
      %p227 = pneg %p120
      %p228 = pneg %p117
      %s229 = smul.u32 3, %s22
      %p230 = scmp.lt.s32.totalorder %s21, 1
      %s231 = scalar_select %p230, %s21, 1
      %p232 = scmp.lt.s32.totalorder %s229, 2
      %s233 = scalar_select %p232, %s229, 2
      %s234 = smul.addr %s231, 3
      %s235 = sadd.s32 %s233, %s234
      %s236 = smul.addr %s235, 4
      %s237 = scalar_lea.vmem %s3, %s236
      %p238 = pneg %p148
      %p239 = pneg %p145
      %p240 = scmp.lt.s32.totalorder %s21, 1
      %s241 = scalar_select %p240, %s21, 1
      %p242 = scmp.lt.s32.totalorder %s22, 0
      %s243 = scalar_select %p242, %s22, 0
      %s244 = sadd.s32 %s243, %s241
      %s245 = smul.addr %s244, 8
      %s246 = scalar_lea.vmem %s4, %s245
      %p247 = pneg %p176
      %p248 = pneg %p173
      %p249 = scmp.lt.s32.totalorder %s21, 1
      %s250 = scalar_select %p249, %s21, 1
      %p251 = scmp.lt.s32.totalorder %s22, 0
      %s252 = scalar_select %p251, %s22, 0
      %s253 = sadd.s32 %s252, %s250
      %s254 = smul.addr %s253, 8
      %s255 = scalar_lea.vmem %s5, %s254
      %p256 = scmp.lt.s32.totalorder %s21, 1
      %s257 = scalar_select %p256, %s21, 1
      %s258 = smul.addr %s257, 4
      %s259 = smul.addr %s258, 4
      %s260 = scalar_lea.vmem %s0, %s259
      %s261 = smul.u32 3, %s22
      %p262 = scmp.lt.s32.totalorder %s21, 1
      %s263 = scalar_select %p262, %s21, 1
      %p264 = scmp.lt.s32.totalorder %s261, 2
      %s265 = scalar_select %p264, %s261, 2
      %s266 = smul.addr %s263, 3
      %s267 = sadd.s32 %s265, %s266
      %s268 = smul.addr %s267, 4
      %s269 = scalar_lea.vmem %s3, %s268
      %s270 = smul.u32 3, %s22
      %p271 = scmp.lt.s32.totalorder %s21, 1
      %s272 = scalar_select %p271, %s21, 1
      %p273 = scmp.lt.s32.totalorder %s22, 0
      %s274 = scalar_select %p273, %s22, 0
      %s275 = sadd.s32 %s274, %s272
      %s276 = smul.addr %s275, 8
      %s277 = scalar_lea.vmem %s4, %s276
      %p278 = scmp.lt.s32.totalorder %s21, 1
      %s279 = scalar_select %p278, %s21, 1
      %p280 = scmp.lt.s32.totalorder %s22, 0
      %s281 = scalar_select %p280, %s22, 0
      %s282 = sadd.s32 %s281, %s279
      %s283 = smul.addr %s282, 8
      %s284 = scalar_lea.vmem %s5, %s283
      %s285 = smul.u32 %s22, 24
      %s286 = sshra.s32 %s285, 3
      %s287 = sand.u32 %s285, 7
      %s288 = smul.addr %s286, 4
      %s289 = scalar_lea.vmem %s260, %s288
      %v290 = vld [vmem:[%s289] sm:$0xf]
      %v291 = vld [vmem:[%s289 + $0x4] sm:$0xf]
      %v292 = vld [vmem:[%s289 + $0x8] sm:$0xf]
      %v293 = vld [vmem:[%s289 + $0xc] sm:$0x7]
      %v294 = vunpack.c.l.bf16 %v290
      %v295 = vunpack.c.l.bf16 %v291
      %v296 = vunpack.c.l.bf16 %v292
      %v297 = vunpack.c.l.bf16 %v293
      %vm302 = vcmask 1046528
      %v303 = vrot.slane %v294, 1
      %v304 = vrot.slane %v295, 1
      %v305 = vsel %vm302, %v303, %v304
      %v306 = vrot.slane %v296, 1
      %v307 = vsel %vm302, %v304, %v306
      %v308 = vrot.slane %v297, 1
      %v309 = vsel %vm302, %v306, %v308
      %310 = vrot.lane.b32.xlu0 %v305, 64
      %v311 = vpop.permute.xlu0 %310
      %312 = vrot.lane.b32.xlu0 %v307, 64
      %v313 = vpop.permute.xlu0 %312
      %314 = vrot.lane.b32.xlu0 %v309, 64
      %v315 = vpop.permute.xlu0 %314
      %vm319 = vcmask 1042432
      %v320 = vrot.slane %v294, 5
      %v321 = vrot.slane %v295, 5
      %v322 = vsel %vm319, %v320, %v321
      %v323 = vrot.slane %v296, 5
      %v324 = vsel %vm319, %v321, %v323
      %v325 = vrot.slane %v297, 5
      %v326 = vsel %vm319, %v323, %v325
      %vm330 = vcmask 1041408
      %v331 = vrot.slane %v294, 6
      %v332 = vrot.slane %v295, 6
      %v333 = vsel %vm330, %v331, %v332
      %v334 = vrot.slane %v296, 6
      %v335 = vsel %vm330, %v332, %v334
      %v336 = vrot.slane %v297, 6
      %v337 = vsel %vm330, %v334, %v336
      %338 = vrot.lane.b32.xlu0 %v333, 64
      %v339 = vpop.permute.xlu0 %338
      %340 = vrot.lane.b32.xlu0 %v335, 64
      %v341 = vpop.permute.xlu0 %340
      %342 = vrot.lane.b32.xlu0 %v337, 64
      %v343 = vpop.permute.xlu0 %342
      %vm347 = vcmask 523264
      %v348 = vsel %vm347, %v294, %v311
      %v349 = vsel %vm347, %v295, %v313
      %v350 = vsel %vm347, %v296, %v315
      %v351 = vsel %vm347, %v322, %v339
      %v352 = vsel %vm347, %v324, %v341
      %v353 = vsel %vm347, %v326, %v343
      %v354 = vpack.c.bf16 %v349, %v348
      %v355 = vpack.c.bf16 %v352, %v351
      %v356 = vpack.c.bf16 %v350, %v350
      %v357 = vpack.c.bf16 %v353, %v353
      %v358 = vld [vmem:[%s1] sm:$0xf]
      %v359 = vld [vmem:[%s1 + $0x4] sm:$0xf]
      %v360 = vld [vmem:[%s1 + $0x8] sm:$0xf]
      %v361 = vld [vmem:[%s1 + $0xc] sm:$0xf]
      %v362 = vld [vmem:[%s1 + $0x10] sm:$0xf]
      %v363 = vld [vmem:[%s1 + $0x14] sm:$0xf]
      %v364 = vld [vmem:[%s1 + $0x18] sm:$0xf]
      %v365 = vld [vmem:[%s1 + $0x1c] sm:$0xf]
      %v366 = vld [vmem:[%s1 + $0x20] sm:$0xf]
      %v367 = vld [vmem:[%s1 + $0x24] sm:$0xf]
      %v368 = vld [vmem:[%s1 + $0x28] sm:$0xf]
      %v369 = vld [vmem:[%s1 + $0x2c] sm:$0xf]
      %v370 = vld [vmem:[%s1 + $0x30] sm:$0xf]
      %v371 = vld [vmem:[%s1 + $0x34] sm:$0xf]
      %v372 = vld [vmem:[%s1 + $0x38] sm:$0xf]
      %v373 = vld [vmem:[%s1 + $0x3c] sm:$0xf]
      %v374 = vld [vmem:[%s1 + $0x40] sm:$0xf]
      %v375 = vld [vmem:[%s1 + $0x44] sm:$0xf]
      %v376 = vld [vmem:[%s1 + $0x48] sm:$0xf]
      %v377 = vld [vmem:[%s1 + $0x4c] sm:$0xf]
      %v378 = vld [vmem:[%s1 + $0x50] sm:$0xf]
      %v379 = vld [vmem:[%s1 + $0x54] sm:$0xf]
      %v380 = vld [vmem:[%s1 + $0x58] sm:$0xf]
      %v381 = vld [vmem:[%s1 + $0x5c] sm:$0xf]
      %v382 = vld [vmem:[%s1 + $0x60] sm:$0xf]
      %v383 = vld [vmem:[%s1 + $0x64] sm:$0xf]
      %v384 = vld [vmem:[%s1 + $0x68] sm:$0xf]
      %v385 = vld [vmem:[%s1 + $0x6c] sm:$0xf]
      %v386 = vld [vmem:[%s1 + $0x70] sm:$0xf]
      %v387 = vld [vmem:[%s1 + $0x74] sm:$0xf]
      %v388 = vld [vmem:[%s1 + $0x78] sm:$0xf]
      %v389 = vld [vmem:[%s1 + $0x7c] sm:$0xf]
      %v390 = vld [vmem:[%s2] sm:$0x1]
      %v392 = vperm.slane %v390, 0
      %v426 = vunpack.c.l.b16 %v358
      %v427 = vunpack.c.l.b16 %v359
      %v428 = vunpack.c.l.b16 %v360
      %v429 = vunpack.c.l.b16 %v361
      %v430 = vunpack.c.l.b16 %v362
      %v431 = vunpack.c.l.b16 %v363
      %v432 = vunpack.c.l.b16 %v364
      %v433 = vunpack.c.l.b16 %v365
      %v434 = vunpack.c.l.b16 %v366
      %v435 = vunpack.c.l.b16 %v367
      %v436 = vunpack.c.l.b16 %v368
      %v437 = vunpack.c.l.b16 %v369
      %v438 = vunpack.c.l.b16 %v370
      %v439 = vunpack.c.l.b16 %v371
      %v440 = vunpack.c.l.b16 %v372
      %v441 = vunpack.c.l.b16 %v373
      %v442 = vunpack.c.l.b16 %v374
      %v443 = vunpack.c.l.b16 %v375
      %v444 = vunpack.c.l.b16 %v376
      %v445 = vunpack.c.l.b16 %v377
      %v446 = vunpack.c.l.b16 %v378
      %v447 = vunpack.c.l.b16 %v379
      %v448 = vunpack.c.l.b16 %v380
      %v449 = vunpack.c.l.b16 %v381
      %v450 = vunpack.c.l.b16 %v382
      %v451 = vunpack.c.l.b16 %v383
      %v452 = vunpack.c.l.b16 %v384
      %v453 = vunpack.c.l.b16 %v385
      %v454 = vunpack.c.l.b16 %v386
      %v455 = vunpack.c.l.b16 %v387
      %v456 = vunpack.c.l.b16 %v388
      %v457 = vunpack.c.l.b16 %v389
      %v458 = vpack.c.b16 %v427, %v426
      %v459 = vpack.c.b16 %v429, %v428
      %v460 = vpack.c.b16 %v431, %v430
      %v461 = vpack.c.b16 %v433, %v432
      %v462 = vpack.c.b16 %v435, %v434
      %v463 = vpack.c.b16 %v437, %v436
      %v464 = vpack.c.b16 %v439, %v438
      %v465 = vpack.c.b16 %v441, %v440
      %v466 = vpack.c.b16 %v443, %v442
      %v467 = vpack.c.b16 %v445, %v444
      %v468 = vpack.c.b16 %v447, %v446
      %v469 = vpack.c.b16 %v449, %v448
      %v470 = vpack.c.b16 %v451, %v450
      %v471 = vpack.c.b16 %v453, %v452
      %v472 = vpack.c.b16 %v455, %v454
      %v473 = vpack.c.b16 %v457, %v456
      %490 = vmatpush.bf16.msra.mxu0 %v465
      %491 = vmatpush.bf16.msra.mxu0 %v464
      %492 = vmatpush.bf16.msra.mxu0 %v463
      %493 = vmatpush.bf16.msra.mxu0 %v462
      %494 = vmatpush.bf16.msra.mxu0 %v461
      %495 = vmatpush.bf16.msra.mxu0 %v460
      %496 = vmatpush.bf16.msra.mxu0 %v459
      %497 = vmatpush.bf16.msra.mxu0 %v458
      %498 = vmatmul.bf16.gmra.mxu0 %v354
      %v499 = vpop.f32.mrf.mxu0
      %v500 = vadd.f32 %v392, %v499
      %v501 = vpop.f32.mrf.mxu0
      %v502 = vadd.f32 %v392, %v501
      %503 = vmatmul.bf16.gmra.mxu0 %v356
      %v504 = vpop.f32.mrf.mxu0
      %v505 = vadd.f32 %v392, %v504
      %v506 = vpop.f32.mrf.mxu0
      %507 = vdwg.mxu0
      %508 = vmatpush.bf16.msra.mxu0 %v473
      %509 = vmatpush.bf16.msra.mxu0 %v472
      %510 = vmatpush.bf16.msra.mxu0 %v471
      %511 = vmatpush.bf16.msra.mxu0 %v470
      %512 = vmatpush.bf16.msra.mxu0 %v469
      %513 = vmatpush.bf16.msra.mxu0 %v468
      %514 = vmatpush.bf16.msra.mxu0 %v467
      %515 = vmatpush.bf16.msra.mxu0 %v466
      %516 = vmatmul.bf16.gmra.mxu0 %v355
      %v517 = vpop.f32.mrf.mxu0
      %v518 = vadd.f32 %v500, %v517
      %v519 = vpop.f32.mrf.mxu0
      %v520 = vadd.f32 %v502, %v519
      %521 = vmatmul.bf16.gmra.mxu0 %v357
      %v522 = vpop.f32.mrf.mxu0
      %v523 = vadd.f32 %v505, %v522
      %v524 = vpop.f32.mrf.mxu0
      %525 = vdwg.mxu0
      %v526 = vpack.c.bf16 %v518, %v518
      %v527 = vpack.c.bf16 %v520, %v520
      %v528 = vpack.c.bf16 %v523, %v523
      %529 = vst [vmem:[%s269] sm:$0xf] %v526
      %530 = vst [vmem:[%s269 + $0x4] sm:$0xf] %v527
      %531 = vst [vmem:[%s269 + $0x8] sm:$0xf] %v528
      %v532 = vlaneseq
      %v533 = vshrl.u32 %v532, 7
      %v534 = vadd.s32 %v533, 8
      %v535 = vadd.s32 %v533, 16
      %v536 = vstv %s285
      %v537 = vadd.s32 %v536, %v533
      %v538 = vadd.s32 %v536, %v534
      %v539 = vadd.s32 %v536, %v535
      %vm540 = vcmp.lt.s32.totalorder %v537, 19
      %vm541 = vcmp.lt.s32.totalorder %v538, 19
      %vm542 = vcmp.lt.s32.totalorder %v539, 19
      %vm543 = vcmp.lt.s32.totalorder %v537, 0
      %v544 = vsub.s32 0, %v537
      %v545 = vsel %vm543, %v544, %v537
      %v546 = vand.u32 %v545, 65535
      %v547 = vshrl.u32 %v545, 16
      %v549 = vmul.u32 %v546, 52429
      %v550 = vmul.u32 %v546, 52428
      %v551 = vmul.u32 %v547, 52429
      %v552 = vmul.u32 %v547, 52428
      %v553 = vshll.u32 %v550, 16
      %v554 = vshrl.u32 %v550, 16
      %v555 = vshll.u32 %v551, 16
      %v556 = vshrl.u32 %v551, 16
      %vm557 = vc.u32 %v549, %v553
      %v558 = vsel %vm557, 1, 0
      %v559 = vadd.s32 %v549, %v553
      %v560 = vadd.s32 %v552, %v558
      %vm561 = vc.u32 %v559, %v555
      %v562 = vsel %vm561, 1, 0
      %v563 = vadd.s32 %v559, %v555
      %v564 = vadd.s32 %v560, %v562
      %v565 = vadd.s32 %v564, %v554
      %v566 = vadd.s32 %v565, %v556
      %v567 = vshrl.u32 %v566, 2
      %v568 = vmul.u32 %v567, 5
      %v569 = vsub.s32 %v545, %v568
      %v570 = vsub.s32 0, %v569
      %v571 = vsel %vm543, %v570, %v569
      %vm572 = vcmp.lt.s32.totalorder %v538, 0
      %v573 = vsub.s32 0, %v538
      %v574 = vsel %vm572, %v573, %v538
      %v575 = vand.u32 %v574, 65535
      %v576 = vshrl.u32 %v574, 16
      %v578 = vmul.u32 %v575, 52429
      %v579 = vmul.u32 %v575, 52428
      %v580 = vmul.u32 %v576, 52429
      %v581 = vmul.u32 %v576, 52428
      %v582 = vshll.u32 %v579, 16
      %v583 = vshrl.u32 %v579, 16
      %v584 = vshll.u32 %v580, 16
      %v585 = vshrl.u32 %v580, 16
      %vm586 = vc.u32 %v578, %v582
      %v587 = vsel %vm586, 1, 0
      %v588 = vadd.s32 %v578, %v582
      %v589 = vadd.s32 %v581, %v587
      %vm590 = vc.u32 %v588, %v584
      %v591 = vsel %vm590, 1, 0
      %v592 = vadd.s32 %v588, %v584
      %v593 = vadd.s32 %v589, %v591
      %v594 = vadd.s32 %v593, %v583
      %v595 = vadd.s32 %v594, %v585
      %v596 = vshrl.u32 %v595, 2
      %v597 = vmul.u32 %v596, 5
      %v598 = vsub.s32 %v574, %v597
      %v599 = vsub.s32 0, %v598
      %v600 = vsel %vm572, %v599, %v598
      %vm601 = vcmp.lt.s32.totalorder %v539, 0
      %v602 = vsub.s32 0, %v539
      %v603 = vsel %vm601, %v602, %v539
      %v604 = vand.u32 %v603, 65535
      %v605 = vshrl.u32 %v603, 16
      %v607 = vmul.u32 %v604, 52429
      %v608 = vmul.u32 %v604, 52428
      %v609 = vmul.u32 %v605, 52429
      %v610 = vmul.u32 %v605, 52428
      %v611 = vshll.u32 %v608, 16
      %v612 = vshrl.u32 %v608, 16
      %v613 = vshll.u32 %v609, 16
      %v614 = vshrl.u32 %v609, 16
      %vm615 = vc.u32 %v607, %v611
      %v616 = vsel %vm615, 1, 0
      %v617 = vadd.s32 %v607, %v611
      %v618 = vadd.s32 %v610, %v616
      %vm619 = vc.u32 %v617, %v613
      %v620 = vsel %vm619, 1, 0
      %v621 = vadd.s32 %v617, %v613
      %v622 = vadd.s32 %v618, %v620
      %v623 = vadd.s32 %v622, %v612
      %v624 = vadd.s32 %v623, %v614
      %v625 = vshrl.u32 %v624, 2
      %v626 = vmul.u32 %v625, 5
      %v627 = vsub.s32 %v603, %v626
      %v628 = vsub.s32 0, %v627
      %v629 = vsel %vm601, %v628, %v627
      %vm630 = vcmp.ne.s32.totalorder %v571, 0
      %vm631 = vcmp.ne.s32.totalorder %v600, 0
      %vm632 = vcmp.ne.s32.totalorder %v629, 0
      %vm633 = vcmp.lt.s32.totalorder %v571, 0
      %vm634 = vcmp.lt.s32.totalorder %v600, 0
      %vm635 = vcmp.lt.s32.totalorder %v629, 0
      %vm636 = vmand %vm633, %vm630
      %vm637 = vmand %vm634, %vm631
      %vm638 = vmand %vm635, %vm632
      %v639 = vadd.s32 %v571, 5
      %v640 = vadd.s32 %v600, 5
      %v641 = vadd.s32 %v629, 5
      %v642 = vsel %vm636, %v639, %v571
      %v643 = vsel %vm637, %v640, %v600
      %v644 = vsel %vm638, %v641, %v629
      %vm645 = vcmp.lt.s32.totalorder %v642, 4
      %vm646 = vcmp.lt.s32.totalorder %v643, 4
      %vm647 = vcmp.lt.s32.totalorder %v644, 4
      %vm648 = vmand %vm540, %vm645
      %vm649 = vmand %vm541, %vm646
      %vm650 = vmand %vm542, %vm647
      %v651 = vsel %vm648, 1, 0
      %v652 = vsel %vm649, 1, 0
      %v653 = vsel %vm650, 1, 0
      %vm654 = vcmp.eq.s32.totalorder %v651, 1
      %vm655 = vcmp.eq.s32.totalorder %v652, 1
      %vm656 = vcmp.eq.s32.totalorder %v653, 1
      %v657 = vsel %vm654, %v518, 0.0
      %v658 = vsel %vm655, %v520, 0.0
      %v659 = vsel %vm656, %v523, 0.0
      %v660 = vadd.f32 %v657, %v658
      %v661 = vadd.f32 %v660, %v659
      %v662 = vrot.slane %v661, 4
      %v663 = vadd.f32 %v661, %v662
      %v664 = vrot.slane %v663, 2
      %v665 = vadd.f32 %v663, %v664
      %v666 = vrot.slane %v665, 1
      %v667 = vadd.f32 %v665, %v666
      %v668 = vmul.f32 %v657, %v657
      %v669 = vmul.f32 %v658, %v658
      %v670 = vmul.f32 %v659, %v659
      %v671 = vadd.f32 %v668, %v669
      %v672 = vadd.f32 %v671, %v670
      %v673 = vrot.slane %v672, 4
      %v674 = vadd.f32 %v672, %v673
      %v675 = vrot.slane %v674, 2
      %v676 = vadd.f32 %v674, %v675
      %v677 = vrot.slane %v676, 1
      %v678 = vadd.f32 %v676, %v677
      %vm679 = vcmp.eq.s32.totalorder %v533, 0
      %v680 = vsel %vm679, %v667, 0.0
      %681 = vst [vmem:[%s277] sm:$0xff] %v680
      %v682 = vsel %vm679, %v678, 0.0
      %683 = vst [vmem:[%s284] sm:$0xff] %v682
      %s684 = smul.u32 3, %s22
      %p685 = scmp.lt.s32.totalorder %s21, 1
      %s686 = scalar_select %p685, %s21, 1
      %p687 = scmp.lt.s32.totalorder %s684, 2
      %s688 = scalar_select %p687, %s684, 2
      %s689 = smul.addr %s686, 3
      %s690 = sadd.s32 %s688, %s689
      %s691 = smul.addr %s690, 4
      %s692 = scalar_lea.vmem %s3, %s691
      %p693 = scmp.lt.s32.totalorder %s21, 1
      %s694 = scalar_select %p693, %s21, 1
      %p695 = scmp.lt.s32.totalorder %s22, 0
      %s696 = scalar_select %p695, %s22, 0
      %s697 = sadd.s32 %s696, %s694
      %s698 = smul.addr %s697, 8
      %s699 = scalar_lea.vmem %s4, %s698
      %p700 = scmp.lt.s32.totalorder %s21, 1
      %s701 = scalar_select %p700, %s21, 1
      %p702 = scmp.lt.s32.totalorder %s22, 0
      %s703 = scalar_select %p702, %s22, 0
      %s704 = sadd.s32 %s703, %s701
      %s705 = smul.addr %s704, 8
      %s706 = scalar_lea.vmem %s5, %s705
      // Predicated region
      $region33: #{forward.6} parent=31 // pred_check
        %p707 = pneg %p117
      $region34: #{forward.6} parent=31 // pred_check_branch
        %709 = sbr.rel (%p707) target = $region36
      $region35: #{forward.6} parent=31 // pred_region
        %s710 = smul.u32 3, %s22
      $region36: #{forward.6} parent=31 // pred_fallthru
        _
      // Predicated region
      $region37: #{forward.6} parent=31 // pred_check
        %p711 = pneg %p145
      $region38: #{forward.6} parent=31 // pred_check_branch
        %713 = sbr.rel (%p711) target = $region40
      $region39: #{forward.6} parent=31 // pred_region
        _
      $region40: #{forward.6} parent=31 // pred_fallthru
        _
      // Predicated region
      $region41: #{forward.6} parent=31 // pred_check
        %p714 = pneg %p173
      $region42: #{forward.6} parent=31 // pred_check_branch
        %716 = sbr.rel (%p714) target = $region44
      $region43: #{forward.6} parent=31 // pred_region
        _
      $region44: #{forward.6} parent=31 // pred_fallthru
        _
    $region32: #{forward.6} parent=5 // pred_fallthru
      _
    %p717 = scmp.le.s32.totalorder 2, %s12
    // Predicated region
    $region45: #{forward.6} parent=5 // pred_check
      %p718 = pneg %p717
    $region46: #{forward.6} parent=5 // pred_check_branch
      %720 = sbr.rel (%p718) target = $region48
    $region47: #{forward.6} parent=5 // pred_region
      %s721 = ssub.s32 %s12, 2
      // Predicated region
      $region49: #{forward.6} parent=47 // pred_check
        %p722 = pneg %p123
      $region50: #{forward.6} parent=47 // pred_check_branch
        %724 = sbr.rel (%p722) target = $region52
      $region51: #{forward.6} parent=47 // pred_region
        %s725 = smul.u32 3, %s24
        %p726 = scmp.lt.s32.totalorder %s23, 1
        %s727 = scalar_select %p726, %s23, 1
        %p728 = scmp.lt.s32.totalorder %s725, 2
        %s729 = scalar_select %p728, %s725, 2
        %s730 = smul.addr %s727, 3
        %s731 = sadd.s32 %s729, %s730
        %s732 = smul.addr %s731, 4
        %s733 = scalar_lea.vmem %s3, %s732
      $region52: #{forward.6} parent=47 // pred_fallthru
        _
      // Predicated region
      $region53: #{forward.6} parent=47 // pred_check
        %p734 = pneg %p151
      $region54: #{forward.6} parent=47 // pred_check_branch
        %736 = sbr.rel (%p734) target = $region56
      $region55: #{forward.6} parent=47 // pred_region
        %p737 = scmp.lt.s32.totalorder %s23, 1
        %s738 = scalar_select %p737, %s23, 1
        %p739 = scmp.lt.s32.totalorder %s24, 0
        %s740 = scalar_select %p739, %s24, 0
        %s741 = sadd.s32 %s740, %s738
        %s742 = smul.addr %s741, 8
        %s743 = scalar_lea.vmem %s4, %s742
      $region56: #{forward.6} parent=47 // pred_fallthru
        _
      // Predicated region
      $region57: #{forward.6} parent=47 // pred_check
        %p744 = pneg %p179
      $region58: #{forward.6} parent=47 // pred_check_branch
        %746 = sbr.rel (%p744) target = $region60
      $region59: #{forward.6} parent=47 // pred_region
        %p747 = scmp.lt.s32.totalorder %s23, 1
        %s748 = scalar_select %p747, %s23, 1
        %p749 = scmp.lt.s32.totalorder %s24, 0
        %s750 = scalar_select %p749, %s24, 0
        %s751 = sadd.s32 %s750, %s748
        %s752 = smul.addr %s751, 8
        %s753 = scalar_lea.vmem %s5, %s752
      $region60: #{forward.6} parent=47 // pred_fallthru
        _
    $region48: #{forward.6} parent=5 // pred_fallthru
      _
  $region6: #{forward.6} parent=0 // loop_footer
    %s16 = sadd.s32 1, %s12
  $region7: #{forward.6} parent=0 // loop_footer_branch
    %11 = sbr.rel target = $region3
  $region8: #{forward.6} parent=0 // loop_exit
    _

// kernel: forward.7
$region0: #{forward.7}
  #allocation0 [shape = 'u32[]', space=smem, size = 0x4, offset = 0x4, fixed_abs, tag = 'smem constant byte address 0x4 - core index']
  #allocation1 [shape = 'u32[72,128]{1,0:T(1,128)}', space=vmem, size = 0x9000, scoped, tag = 'internal scratch']
  %s0 = inlined_call_operand.vmem [shape: bf16[2,12,128], index: 0, kind: input, shape index: {}]
  %s1 = inlined_call_operand.vmem [shape: bf16[512,128], index: 1, kind: input, shape index: {}]
  %s2 = inlined_call_operand.vmem [shape: f32[1,128], index: 2, kind: input, shape index: {}]
  %s3 = inlined_call_operand.vmem [shape: bf16[2,8,128], index: 3, kind: output, shape index: {0}]
  %s4 = inlined_call_operand.vmem [shape: f32[2,8,128], index: 4, kind: output, shape index: {1}]
  %s5 = inlined_call_operand.vmem [shape: f32[2,8,128], index: 5, kind: output, shape index: {2}]
  %6 = xla_tuple %s3, %s4, %s5
  %s7 = sld [smem:[#allocation0]]
  $region61: #{forward.7} parent=0
    _
  %s9 = ssub.s32 1, %s7
  %s10 = scalar_select 0, %s9, %s7
  loop: start=0, step=1, limit=4
  $region2: #{forward.7} parent=0 // loop_pre_header
    _
  $region3: #{forward.7} parent=0 // loop_header
    %s12 = sphi 0, %s16
    %p13 = scmp.ge.s32.totalorder %s12, 4
    %s19 = sphi 0, %s31
    %s20 = sphi 0, %s27
    %s21 = sphi 0, %s19
    %s22 = sphi 0, %s20
    %s23 = sphi 0, %s21
    %s24 = sphi 0, %s22
    %s34 = sphi 0, %s36
    %s37 = sphi 0, %s34
    %s38 = sphi 0, %s37
    %s54 = sphi 0, %s38
    %s58 = sphi 0, %s58
    %s60 = sphi 0, %s58
    %s61 = sphi 0, %s60
    %s75 = sphi 0, %s61
    %s79 = sphi 0, %s79
    %s81 = sphi 0, %s79
    %s82 = sphi 0, %s81
    %s96 = sphi 0, %s82
    %s104 = sphi 0, %s106
    %s107 = sphi 0, %s104
    %s108 = sphi 0, %s107
    %s124 = sphi 0, %s108
    %s132 = sphi 0, %s134
    %s135 = sphi 0, %s132
    %s136 = sphi 0, %s135
    %s152 = sphi 0, %s136
    %s160 = sphi 0, %s162
    %s163 = sphi 0, %s160
    %s164 = sphi 0, %s163
    %s180 = sphi 0, %s164
  $region4: #{forward.7} parent=0 // loop_header_branch
    %15 = sbr.rel (%p13) target = $region8
  $region5: #{forward.7} parent=0 // loop_body
    %s17 = ssub.s32 %s12, 1
    %s18 = ssub.s32 %s12, 2
    %s25 = sadd.s32 1, %s20
    %p26 = scmp.ge.s32.totalorder %s25, 1
    %s27 = scalar_select %p26, 0, %s25
    %s28 = sadd.s32 1, %s19
    %s29 = scalar_select %p26, %s28, %s19
    %p30 = scmp.ge.s32.totalorder %s29, 2
    %s31 = scalar_select %p30, 0, %s29
    %s32 = ssub.s32 %s19, %s31
    %p33 = scmp.eq.s32.totalorder %s32, 0
    %s35 = sadd.s32 %s34, 1
    %s36 = scalar_select %p33, %s34, %s35
    %p39 = pneg %p33
    %p40 = scmp.eq.s32.totalorder %s12, 1
    %p41 = por %p39, %p40
    %p42 = scmp.ne.s32.totalorder %s34, %s37
    %p43 = scmp.eq.s32.totalorder %s12, 0
    %p44 = por %p42, %p43
    %p45 = scmp.ne.s32.totalorder %s34, %s37
    %p46 = scmp.eq.s32.totalorder %s17, 1
    %p47 = por %p45, %p46
    %p48 = scmp.ne.s32.totalorder %s37, %s38
    %p49 = scmp.eq.s32.totalorder %s17, 0
    %p50 = por %p48, %p49
    %p51 = scmp.ne.s32.totalorder %s37, %s38
    %p52 = scmp.eq.s32.totalorder %s18, 1
    %p53 = por %p51, %p52
    %p55 = scmp.ne.s32.totalorder %s38, %s54
    %p56 = scmp.eq.s32.totalorder %s18, 0
    %p57 = por %p55, %p56
    %s59 = sadd.s32 %s58, 1
    %p62 = scmp.eq.s32.totalorder %s12, 1
    %p63 = scmp.ne.s32.totalorder %s58, %s60
    %p64 = scmp.eq.s32.totalorder %s12, 0
    %p65 = por %p63, %p64
    %p66 = scmp.ne.s32.totalorder %s58, %s60
    %p67 = scmp.eq.s32.totalorder %s17, 1
    %p68 = por %p66, %p67
    %p69 = scmp.ne.s32.totalorder %s60, %s61
    %p70 = scmp.eq.s32.totalorder %s17, 0
    %p71 = por %p69, %p70
    %p72 = scmp.ne.s32.totalorder %s60, %s61
    %p73 = scmp.eq.s32.totalorder %s18, 1
    %p74 = por %p72, %p73
    %p76 = scmp.ne.s32.totalorder %s61, %s75
    %p77 = scmp.eq.s32.totalorder %s18, 0
    %p78 = por %p76, %p77
    %s80 = sadd.s32 %s79, 1
    %p83 = scmp.eq.s32.totalorder %s12, 1
    %p84 = scmp.ne.s32.totalorder %s79, %s81
    %p85 = scmp.eq.s32.totalorder %s12, 0
    %p86 = por %p84, %p85
    %p87 = scmp.ne.s32.totalorder %s79, %s81
    %p88 = scmp.eq.s32.totalorder %s17, 1
    %p89 = por %p87, %p88
    %p90 = scmp.ne.s32.totalorder %s81, %s82
    %p91 = scmp.eq.s32.totalorder %s17, 0
    %p92 = por %p90, %p91
    %p93 = scmp.ne.s32.totalorder %s81, %s82
    %p94 = scmp.eq.s32.totalorder %s18, 1
    %p95 = por %p93, %p94
    %p97 = scmp.ne.s32.totalorder %s82, %s96
    %p98 = scmp.eq.s32.totalorder %s18, 0
    %p99 = por %p97, %p98
    %s100 = ssub.s32 %s19, %s31
    %s101 = ssub.s32 %s20, %s27
    %s102 = sor.u32 %s100, %s101
    %p103 = scmp.eq.s32.totalorder %s102, 0
    %s105 = sadd.s32 %s104, 1
    %s106 = scalar_select %p103, %s104, %s105
    %p109 = pneg %p103
    %p110 = scmp.eq.s32.totalorder %s12, 1
    %p111 = por %p109, %p110
    %p112 = scmp.ne.s32.totalorder %s104, %s107
    %p113 = scmp.eq.s32.totalorder %s12, 0
    %p114 = por %p112, %p113
    %p115 = scmp.ne.s32.totalorder %s104, %s107
    %p116 = scmp.eq.s32.totalorder %s17, 1
    %p117 = por %p115, %p116
    %p118 = scmp.ne.s32.totalorder %s107, %s108
    %p119 = scmp.eq.s32.totalorder %s17, 0
    %p120 = por %p118, %p119
    %p121 = scmp.ne.s32.totalorder %s107, %s108
    %p122 = scmp.eq.s32.totalorder %s18, 1
    %p123 = por %p121, %p122
    %p125 = scmp.ne.s32.totalorder %s108, %s124
    %p126 = scmp.eq.s32.totalorder %s18, 0
    %p127 = por %p125, %p126
    %s128 = ssub.s32 %s19, %s31
    %s129 = ssub.s32 %s20, %s27
    %s130 = sor.u32 %s128, %s129
    %p131 = scmp.eq.s32.totalorder %s130, 0
    %s133 = sadd.s32 %s132, 1
    %s134 = scalar_select %p131, %s132, %s133
    %p137 = pneg %p131
    %p138 = scmp.eq.s32.totalorder %s12, 1
    %p139 = por %p137, %p138
    %p140 = scmp.ne.s32.totalorder %s132, %s135
    %p141 = scmp.eq.s32.totalorder %s12, 0
    %p142 = por %p140, %p141
    %p143 = scmp.ne.s32.totalorder %s132, %s135
    %p144 = scmp.eq.s32.totalorder %s17, 1
    %p145 = por %p143, %p144
    %p146 = scmp.ne.s32.totalorder %s135, %s136
    %p147 = scmp.eq.s32.totalorder %s17, 0
    %p148 = por %p146, %p147
    %p149 = scmp.ne.s32.totalorder %s135, %s136
    %p150 = scmp.eq.s32.totalorder %s18, 1
    %p151 = por %p149, %p150
    %p153 = scmp.ne.s32.totalorder %s136, %s152
    %p154 = scmp.eq.s32.totalorder %s18, 0
    %p155 = por %p153, %p154
    %s156 = ssub.s32 %s19, %s31
    %s157 = ssub.s32 %s20, %s27
    %s158 = sor.u32 %s156, %s157
    %p159 = scmp.eq.s32.totalorder %s158, 0
    %s161 = sadd.s32 %s160, 1
    %s162 = scalar_select %p159, %s160, %s161
    %p165 = pneg %p159
    %p166 = scmp.eq.s32.totalorder %s12, 1
    %p167 = por %p165, %p166
    %p168 = scmp.ne.s32.totalorder %s160, %s163
    %p169 = scmp.eq.s32.totalorder %s12, 0
    %p170 = por %p168, %p169
    %p171 = scmp.ne.s32.totalorder %s160, %s163
    %p172 = scmp.eq.s32.totalorder %s17, 1
    %p173 = por %p171, %p172
    %p174 = scmp.ne.s32.totalorder %s163, %s164
    %p175 = scmp.eq.s32.totalorder %s17, 0
    %p176 = por %p174, %p175
    %p177 = scmp.ne.s32.totalorder %s163, %s164
    %p178 = scmp.eq.s32.totalorder %s18, 1
    %p179 = por %p177, %p178
    %p181 = scmp.ne.s32.totalorder %s164, %s180
    %p182 = scmp.eq.s32.totalorder %s18, 0
    %p183 = por %p181, %p182
    %p184 = scmp.le.s32.totalorder 1, %s12
    %p185 = scmp.lt.s32.totalorder %s12, 3
    %p186 = pnand %p184, %p185
    %p187 = pneg %p186
    // Predicated region
    $region9: #{forward.7} parent=5 // pred_check
      _
    $region10: #{forward.7} parent=5 // pred_check_branch
      %189 = sbr.rel (%p186) target = $region12
    $region11: #{forward.7} parent=5 // pred_region
      %s190 = ssub.s32 %s12, 1
      // Predicated region
      $region13: #{forward.7} parent=11 // pred_check
        %p191 = pneg %p71
      $region14: #{forward.7} parent=11 // pred_check_branch
        %193 = sbr.rel (%p191) target = $region16
      $region15: #{forward.7} parent=11 // pred_region
        _
      $region16: #{forward.7} parent=11 // pred_fallthru
        _
      // Predicated region
      $region17: #{forward.7} parent=11 // pred_check
        %p194 = pneg %p92
      $region18: #{forward.7} parent=11 // pred_check_branch
        %196 = sbr.rel (%p194) target = $region20
      $region19: #{forward.7} parent=11 // pred_region
        _
      $region20: #{forward.7} parent=11 // pred_fallthru
        _
    $region12: #{forward.7} parent=5 // pred_fallthru
      _
    %p197 = scmp.lt.s32.totalorder %s12, 2
    // Predicated region
    $region21: #{forward.7} parent=5 // pred_check
      %p198 = pneg %p197
    $region22: #{forward.7} parent=5 // pred_check_branch
      %200 = sbr.rel (%p198) target = $region24
    $region23: #{forward.7} parent=5 // pred_region
      // Predicated region
      $region25: #{forward.7} parent=23 // pred_check
        %p201 = pneg %p44
      $region26: #{forward.7} parent=23 // pred_check_branch
        %203 = sbr.rel (%p201) target = $region28
      $region27: #{forward.7} parent=23 // pred_region
        %p204 = scmp.lt.s32.totalorder %s19, 1
        %s205 = scalar_select %p204, %s19, 1
        %s206 = smul.addr %s205, 2
        %s207 = smul.addr %s206, 4
        %s208 = scalar_lea.vmem %s0, %s207
      $region28: #{forward.7} parent=23 // pred_fallthru
        _
    $region24: #{forward.7} parent=5 // pred_fallthru
      _
    %p209 = scmp.le.s32.totalorder 1, %s12
    %p210 = scmp.lt.s32.totalorder %s12, 3
    %p211 = pnand %p209, %p210
    %p212 = pneg %p211
    // Predicated region
    $region29: #{forward.7} parent=5 // pred_check
      _
    $region30: #{forward.7} parent=5 // pred_check_branch
      %214 = sbr.rel (%p211) target = $region32
    $region31: #{forward.7} parent=5 // pred_region
      %s215 = ssub.s32 %s12, 1
      %p216 = scmp.lt.s32.totalorder %s21, 1
      %s217 = scalar_select %p216, %s21, 1
      %s218 = smul.addr %s217, 2
      %s219 = smul.addr %s218, 4
      %s220 = scalar_lea.vmem %s0, %s219
      %p221 = pneg %p50
      %p222 = pneg %p47
      %p223 = pneg %p71
      %p224 = pneg %p68
      %p225 = pneg %p92
      %p226 = pneg %p89
      %p227 = pneg %p120
      %p228 = pneg %p117
      %p229 = scmp.lt.s32.totalorder %s21, 1
      %s230 = scalar_select %p229, %s21, 1
      %p231 = scmp.lt.s32.totalorder %s22, 0
      %s232 = scalar_select %p231, %s22, 0
      %s233 = sadd.s32 %s232, %s230
      %s234 = smul.addr %s233, 4
      %s235 = scalar_lea.vmem %s3, %s234
      %p236 = pneg %p148
      %p237 = pneg %p145
      %p238 = scmp.lt.s32.totalorder %s21, 1
      %s239 = scalar_select %p238, %s21, 1
      %p240 = scmp.lt.s32.totalorder %s22, 0
      %s241 = scalar_select %p240, %s22, 0
      %s242 = sadd.s32 %s241, %s239
      %s243 = smul.addr %s242, 8
      %s244 = scalar_lea.vmem %s4, %s243
      %p245 = pneg %p176
      %p246 = pneg %p173
      %p247 = scmp.lt.s32.totalorder %s21, 1
      %s248 = scalar_select %p247, %s21, 1
      %p249 = scmp.lt.s32.totalorder %s22, 0
      %s250 = scalar_select %p249, %s22, 0
      %s251 = sadd.s32 %s250, %s248
      %s252 = smul.addr %s251, 8
      %s253 = scalar_lea.vmem %s5, %s252
      %p254 = scmp.lt.s32.totalorder %s21, 1
      %s255 = scalar_select %p254, %s21, 1
      %s256 = smul.addr %s255, 2
      %s257 = smul.addr %s256, 4
      %s258 = scalar_lea.vmem %s0, %s257
      %p259 = scmp.lt.s32.totalorder %s21, 1
      %s260 = scalar_select %p259, %s21, 1
      %p261 = scmp.lt.s32.totalorder %s22, 0
      %s262 = scalar_select %p261, %s22, 0
      %s263 = sadd.s32 %s262, %s260
      %s264 = smul.addr %s263, 4
      %s265 = scalar_lea.vmem %s3, %s264
      %p266 = scmp.lt.s32.totalorder %s21, 1
      %s267 = scalar_select %p266, %s21, 1
      %p268 = scmp.lt.s32.totalorder %s22, 0
      %s269 = scalar_select %p268, %s22, 0
      %s270 = sadd.s32 %s269, %s267
      %s271 = smul.addr %s270, 8
      %s272 = scalar_lea.vmem %s4, %s271
      %p273 = scmp.lt.s32.totalorder %s21, 1
      %s274 = scalar_select %p273, %s21, 1
      %p275 = scmp.lt.s32.totalorder %s22, 0
      %s276 = scalar_select %p275, %s22, 0
      %s277 = sadd.s32 %s276, %s274
      %s278 = smul.addr %s277, 8
      %s279 = scalar_lea.vmem %s5, %s278
      %s280 = smul.u32 %s22, 8
      %s281 = sshra.s32 %s280, 3
      %s282 = sand.u32 %s280, 7
      %s283 = smul.addr %s281, 4
      %s284 = scalar_lea.vmem %s258, %s283
      %v285 = vld [vmem:[%s284] sm:$0xf]
      %v286 = vld [vmem:[%s284 + $0x4] sm:$0x3]
      %v287 = vunpack.c.l.bf16 %v285
      %v288 = vunpack.c.l.bf16 %v286
      %vm289 = vcmp.ge.f32.partialorder %v287, 0.0
      %vm290 = vcmp.ge.f32.partialorder %v288, 0.0
      %v291 = vmul.f32 %v287, 0.2
      %v292 = vmul.f32 %v288, 0.2
      %v293 = vsel %vm289, %v287, %v291
      %v294 = vsel %vm290, %v288, %v292
      %vm297 = vcmask 1046528
      %v298 = vrot.slane %v293, 1
      %v299 = vrot.slane %v294, 1
      %v300 = vsel %vm297, %v298, %v299
      %vm302 = vcmask 1044480
      %v303 = vrot.slane %v293, 3
      %v304 = vrot.slane %v294, 3
      %v305 = vsel %vm302, %v303, %v304
      %vm307 = vcmask 1043456
      %v308 = vrot.slane %v293, 4
      %v309 = vrot.slane %v294, 4
      %v310 = vsel %vm307, %v308, %v309
      %v312 = vpack.c.bf16 %v293, %v293
      %v313 = vpack.c.bf16 %v300, %v300
      %v314 = vpack.c.bf16 %v305, %v305
      %v315 = vpack.c.bf16 %v310, %v310
      %v316 = vld [vmem:[%s1] sm:$0xf]
      %v317 = vld [vmem:[%s1 + $0x4] sm:$0xf]
      %v318 = vld [vmem:[%s1 + $0x8] sm:$0xf]
      %v319 = vld [vmem:[%s1 + $0xc] sm:$0xf]
      %v320 = vld [vmem:[%s1 + $0x10] sm:$0xf]
      %v321 = vld [vmem:[%s1 + $0x14] sm:$0xf]
      %v322 = vld [vmem:[%s1 + $0x18] sm:$0xf]
      %v323 = vld [vmem:[%s1 + $0x1c] sm:$0xf]
      %v324 = vld [vmem:[%s1 + $0x20] sm:$0xf]
      %v325 = vld [vmem:[%s1 + $0x24] sm:$0xf]
      %v326 = vld [vmem:[%s1 + $0x28] sm:$0xf]
      %v327 = vld [vmem:[%s1 + $0x2c] sm:$0xf]
      %v328 = vld [vmem:[%s1 + $0x30] sm:$0xf]
      %v329 = vld [vmem:[%s1 + $0x34] sm:$0xf]
      %v330 = vld [vmem:[%s1 + $0x38] sm:$0xf]
      %v331 = vld [vmem:[%s1 + $0x3c] sm:$0xf]
      %v332 = vld [vmem:[%s1 + $0x40] sm:$0xf]
      %v333 = vld [vmem:[%s1 + $0x44] sm:$0xf]
      %v334 = vld [vmem:[%s1 + $0x48] sm:$0xf]
      %v335 = vld [vmem:[%s1 + $0x4c] sm:$0xf]
      %v336 = vld [vmem:[%s1 + $0x50] sm:$0xf]
      %v337 = vld [vmem:[%s1 + $0x54] sm:$0xf]
      %v338 = vld [vmem:[%s1 + $0x58] sm:$0xf]
      %v339 = vld [vmem:[%s1 + $0x5c] sm:$0xf]
      %v340 = vld [vmem:[%s1 + $0x60] sm:$0xf]
      %v341 = vld [vmem:[%s1 + $0x64] sm:$0xf]
      %v342 = vld [vmem:[%s1 + $0x68] sm:$0xf]
      %v343 = vld [vmem:[%s1 + $0x6c] sm:$0xf]
      %v344 = vld [vmem:[%s1 + $0x70] sm:$0xf]
      %v345 = vld [vmem:[%s1 + $0x74] sm:$0xf]
      %v346 = vld [vmem:[%s1 + $0x78] sm:$0xf]
      %v347 = vld [vmem:[%s1 + $0x7c] sm:$0xf]
      %v348 = vld [vmem:[%s1 + $0x80] sm:$0xf]
      %v349 = vld [vmem:[%s1 + $0x84] sm:$0xf]
      %v350 = vld [vmem:[%s1 + $0x88] sm:$0xf]
      %v351 = vld [vmem:[%s1 + $0x8c] sm:$0xf]
      %v352 = vld [vmem:[%s1 + $0x90] sm:$0xf]
      %v353 = vld [vmem:[%s1 + $0x94] sm:$0xf]
      %v354 = vld [vmem:[%s1 + $0x98] sm:$0xf]
      %v355 = vld [vmem:[%s1 + $0x9c] sm:$0xf]
      %v356 = vld [vmem:[%s1 + $0xa0] sm:$0xf]
      %v357 = vld [vmem:[%s1 + $0xa4] sm:$0xf]
      %v358 = vld [vmem:[%s1 + $0xa8] sm:$0xf]
      %v359 = vld [vmem:[%s1 + $0xac] sm:$0xf]
      %v360 = vld [vmem:[%s1 + $0xb0] sm:$0xf]
      %v361 = vld [vmem:[%s1 + $0xb4] sm:$0xf]
      %v362 = vld [vmem:[%s1 + $0xb8] sm:$0xf]
      %v363 = vld [vmem:[%s1 + $0xbc] sm:$0xf]
      %v364 = vld [vmem:[%s1 + $0xc0] sm:$0xf]
      %v365 = vld [vmem:[%s1 + $0xc4] sm:$0xf]
      %v366 = vld [vmem:[%s1 + $0xc8] sm:$0xf]
      %v367 = vld [vmem:[%s1 + $0xcc] sm:$0xf]
      %v368 = vld [vmem:[%s1 + $0xd0] sm:$0xf]
      %v369 = vld [vmem:[%s1 + $0xd4] sm:$0xf]
      %v370 = vld [vmem:[%s1 + $0xd8] sm:$0xf]
      %v371 = vld [vmem:[%s1 + $0xdc] sm:$0xf]
      %v372 = vld [vmem:[%s1 + $0xe0] sm:$0xf]
      %v373 = vld [vmem:[%s1 + $0xe4] sm:$0xf]
      %v374 = vld [vmem:[%s1 + $0xe8] sm:$0xf]
      %v375 = vld [vmem:[%s1 + $0xec] sm:$0xf]
      %v376 = vld [vmem:[%s1 + $0xf0] sm:$0xf]
      %v377 = vld [vmem:[%s1 + $0xf4] sm:$0xf]
      %v378 = vld [vmem:[%s1 + $0xf8] sm:$0xf]
      %v379 = vld [vmem:[%s1 + $0xfc] sm:$0xf]
      %v380 = vld [vmem:[%s2] sm:$0x1]
      %v382 = vperm.slane %v380, 0
      %v448 = vunpack.c.l.b16 %v316
      %v449 = vunpack.c.l.b16 %v317
      %v450 = vunpack.c.l.b16 %v318
      %v451 = vunpack.c.l.b16 %v319
      %v452 = vunpack.c.l.b16 %v320
      %v453 = vunpack.c.l.b16 %v321
      %v454 = vunpack.c.l.b16 %v322
      %v455 = vunpack.c.l.b16 %v323
      %v456 = vunpack.c.l.b16 %v324
      %v457 = vunpack.c.l.b16 %v325
      %v458 = vunpack.c.l.b16 %v326
      %v459 = vunpack.c.l.b16 %v327
      %v460 = vunpack.c.l.b16 %v328
      %v461 = vunpack.c.l.b16 %v329
      %v462 = vunpack.c.l.b16 %v330
      %v463 = vunpack.c.l.b16 %v331
      %v464 = vunpack.c.l.b16 %v332
      %v465 = vunpack.c.l.b16 %v333
      %v466 = vunpack.c.l.b16 %v334
      %v467 = vunpack.c.l.b16 %v335
      %v468 = vunpack.c.l.b16 %v336
      %v469 = vunpack.c.l.b16 %v337
      %v470 = vunpack.c.l.b16 %v338
      %v471 = vunpack.c.l.b16 %v339
      %v472 = vunpack.c.l.b16 %v340
      %v473 = vunpack.c.l.b16 %v341
      %v474 = vunpack.c.l.b16 %v342
      %v475 = vunpack.c.l.b16 %v343
      %v476 = vunpack.c.l.b16 %v344
      %v477 = vunpack.c.l.b16 %v345
      %v478 = vunpack.c.l.b16 %v346
      %v479 = vunpack.c.l.b16 %v347
      %v480 = vunpack.c.l.b16 %v348
      %v481 = vunpack.c.l.b16 %v349
      %v482 = vunpack.c.l.b16 %v350
      %v483 = vunpack.c.l.b16 %v351
      %v484 = vunpack.c.l.b16 %v352
      %v485 = vunpack.c.l.b16 %v353
      %v486 = vunpack.c.l.b16 %v354
      %v487 = vunpack.c.l.b16 %v355
      %v488 = vunpack.c.l.b16 %v356
      %v489 = vunpack.c.l.b16 %v357
      %v490 = vunpack.c.l.b16 %v358
      %v491 = vunpack.c.l.b16 %v359
      %v492 = vunpack.c.l.b16 %v360
      %v493 = vunpack.c.l.b16 %v361
      %v494 = vunpack.c.l.b16 %v362
      %v495 = vunpack.c.l.b16 %v363
      %v496 = vunpack.c.l.b16 %v364
      %v497 = vunpack.c.l.b16 %v365
      %v498 = vunpack.c.l.b16 %v366
      %v499 = vunpack.c.l.b16 %v367
      %v500 = vunpack.c.l.b16 %v368
      %v501 = vunpack.c.l.b16 %v369
      %v502 = vunpack.c.l.b16 %v370
      %v503 = vunpack.c.l.b16 %v371
      %v504 = vunpack.c.l.b16 %v372
      %v505 = vunpack.c.l.b16 %v373
      %v506 = vunpack.c.l.b16 %v374
      %v507 = vunpack.c.l.b16 %v375
      %v508 = vunpack.c.l.b16 %v376
      %v509 = vunpack.c.l.b16 %v377
      %v510 = vunpack.c.l.b16 %v378
      %v511 = vunpack.c.l.b16 %v379
      %v512 = vpack.c.b16 %v449, %v448
      %v513 = vpack.c.b16 %v451, %v450
      %v514 = vpack.c.b16 %v453, %v452
      %v515 = vpack.c.b16 %v455, %v454
      %v516 = vpack.c.b16 %v457, %v456
      %v517 = vpack.c.b16 %v459, %v458
      %v518 = vpack.c.b16 %v461, %v460
      %v519 = vpack.c.b16 %v463, %v462
      %v520 = vpack.c.b16 %v465, %v464
      %v521 = vpack.c.b16 %v467, %v466
      %v522 = vpack.c.b16 %v469, %v468
      %v523 = vpack.c.b16 %v471, %v470
      %v524 = vpack.c.b16 %v473, %v472
      %v525 = vpack.c.b16 %v475, %v474
      %v526 = vpack.c.b16 %v477, %v476
      %v527 = vpack.c.b16 %v479, %v478
      %v528 = vpack.c.b16 %v481, %v480
      %v529 = vpack.c.b16 %v483, %v482
      %v530 = vpack.c.b16 %v485, %v484
      %v531 = vpack.c.b16 %v487, %v486
      %v532 = vpack.c.b16 %v489, %v488
      %v533 = vpack.c.b16 %v491, %v490
      %v534 = vpack.c.b16 %v493, %v492
      %v535 = vpack.c.b16 %v495, %v494
      %v536 = vpack.c.b16 %v497, %v496
      %v537 = vpack.c.b16 %v499, %v498
      %v538 = vpack.c.b16 %v501, %v500
      %v539 = vpack.c.b16 %v503, %v502
      %v540 = vpack.c.b16 %v505, %v504
      %v541 = vpack.c.b16 %v507, %v506
      %v542 = vpack.c.b16 %v509, %v508
      %v543 = vpack.c.b16 %v511, %v510
      %576 = vmatpush.bf16.msra.mxu0 %v519
      %577 = vmatpush.bf16.msra.mxu0 %v518
      %578 = vmatpush.bf16.msra.mxu0 %v517
      %579 = vmatpush.bf16.msra.mxu0 %v516
      %580 = vmatpush.bf16.msra.mxu0 %v515
      %581 = vmatpush.bf16.msra.mxu0 %v514
      %582 = vmatpush.bf16.msra.mxu0 %v513
      %583 = vmatpush.bf16.msra.mxu0 %v512
      %584 = vmatmul.bf16.gmra.mxu0 %v312
      %v585 = vpop.f32.mrf.mxu0
      %v586 = vadd.f32 %v382, %v585
      %v587 = vpop.f32.mrf.mxu0
      %588 = vdwg.mxu0
      %589 = vmatpush.bf16.msra.mxu0 %v527
      %590 = vmatpush.bf16.msra.mxu0 %v526
      %591 = vmatpush.bf16.msra.mxu0 %v525
      %592 = vmatpush.bf16.msra.mxu0 %v524
      %593 = vmatpush.bf16.msra.mxu0 %v523
      %594 = vmatpush.bf16.msra.mxu0 %v522
      %595 = vmatpush.bf16.msra.mxu0 %v521
      %596 = vmatpush.bf16.msra.mxu0 %v520
      %597 = vmatmul.bf16.gmra.mxu0 %v313
      %v598 = vpop.f32.mrf.mxu0
      %v599 = vadd.f32 %v586, %v598
      %v600 = vpop.f32.mrf.mxu0
      %601 = vdwg.mxu0
      %602 = vmatpush.bf16.msra.mxu0 %v535
      %603 = vmatpush.bf16.msra.mxu0 %v534
      %604 = vmatpush.bf16.msra.mxu0 %v533
      %605 = vmatpush.bf16.msra.mxu0 %v532
      %606 = vmatpush.bf16.msra.mxu0 %v531
      %607 = vmatpush.bf16.msra.mxu0 %v530
      %608 = vmatpush.bf16.msra.mxu0 %v529
      %609 = vmatpush.bf16.msra.mxu0 %v528
      %610 = vmatmul.bf16.gmra.mxu0 %v314
      %v611 = vpop.f32.mrf.mxu0
      %v612 = vadd.f32 %v599, %v611
      %v613 = vpop.f32.mrf.mxu0
      %614 = vdwg.mxu0
      %615 = vmatpush.bf16.msra.mxu0 %v543
      %616 = vmatpush.bf16.msra.mxu0 %v542
      %617 = vmatpush.bf16.msra.mxu0 %v541
      %618 = vmatpush.bf16.msra.mxu0 %v540
      %619 = vmatpush.bf16.msra.mxu0 %v539
      %620 = vmatpush.bf16.msra.mxu0 %v538
      %621 = vmatpush.bf16.msra.mxu0 %v537
      %622 = vmatpush.bf16.msra.mxu0 %v536
      %623 = vmatmul.bf16.gmra.mxu0 %v315
      %v624 = vpop.f32.mrf.mxu0
      %v625 = vadd.f32 %v612, %v624
      %v626 = vpop.f32.mrf.mxu0
      %627 = vdwg.mxu0
      %v628 = vpack.c.bf16 %v625, %v625
      %629 = vst [vmem:[%s265] sm:$0xf] %v628
      %v630 = vlaneseq
      %v631 = vshrl.u32 %v630, 7
      %v632 = vstv %s280
      %v633 = vadd.s32 %v632, %v631
      %vm634 = vcmp.lt.s32.totalorder %v633, 5
      %vm635 = vcmp.lt.s32.totalorder %v633, 0
      %v636 = vsub.s32 0, %v633
      %v637 = vsel %vm635, %v636, %v633
      %v638 = vand.u32 %v637, 65535
      %v639 = vshrl.u32 %v637, 16
      %v641 = vmul.u32 %v638, 43691
      %v642 = vmul.u32 %v638, 43690
      %v643 = vmul.u32 %v639, 43691
      %v644 = vmul.u32 %v639, 43690
      %v645 = vshll.u32 %v642, 16
      %v646 = vshrl.u32 %v642, 16
      %v647 = vshll.u32 %v643, 16
      %v648 = vshrl.u32 %v643, 16
      %vm649 = vc.u32 %v641, %v645
      %v650 = vsel %vm649, 1, 0
      %v651 = vadd.s32 %v641, %v645
      %v652 = vadd.s32 %v644, %v650
      %vm653 = vc.u32 %v651, %v647
      %v654 = vsel %vm653, 1, 0
      %v655 = vadd.s32 %v651, %v647
      %v656 = vadd.s32 %v652, %v654
      %v657 = vadd.s32 %v656, %v646
      %v658 = vadd.s32 %v657, %v648
      %v659 = vshrl.u32 %v658, 1
      %v660 = vmul.u32 %v659, 3
      %v661 = vsub.s32 %v637, %v660
      %v662 = vsub.s32 0, %v661
      %v663 = vsel %vm635, %v662, %v661
      %vm664 = vcmp.ne.s32.totalorder %v663, 0
      %vm665 = vcmp.lt.s32.totalorder %v663, 0
      %vm666 = vmand %vm665, %vm664
      %v667 = vadd.s32 %v663, 3
      %v668 = vsel %vm666, %v667, %v663
      %vm669 = vcmp.lt.s32.totalorder %v668, 2
      %vm670 = vmand %vm634, %vm669
      %v671 = vsel %vm670, 1, 0
      %vm672 = vcmp.eq.s32.totalorder %v671, 1
      %v673 = vsel %vm672, %v625, 0.0
      %v674 = vrot.slane %v673, 4
      %v675 = vadd.f32 %v673, %v674
      %v676 = vrot.slane %v675, 2
      %v677 = vadd.f32 %v675, %v676
      %v678 = vrot.slane %v677, 1
      %v679 = vadd.f32 %v677, %v678
      %v680 = vmul.f32 %v673, %v673
      %v681 = vrot.slane %v680, 4
      %v682 = vadd.f32 %v680, %v681
      %v683 = vrot.slane %v682, 2
      %v684 = vadd.f32 %v682, %v683
      %v685 = vrot.slane %v684, 1
      %v686 = vadd.f32 %v684, %v685
      %vm687 = vcmp.eq.s32.totalorder %v631, 0
      %v688 = vsel %vm687, %v679, 0.0
      %689 = vst [vmem:[%s272] sm:$0xff] %v688
      %v690 = vsel %vm687, %v686, 0.0
      %691 = vst [vmem:[%s279] sm:$0xff] %v690
      %p692 = scmp.lt.s32.totalorder %s21, 1
      %s693 = scalar_select %p692, %s21, 1
      %p694 = scmp.lt.s32.totalorder %s22, 0
      %s695 = scalar_select %p694, %s22, 0
      %s696 = sadd.s32 %s695, %s693
      %s697 = smul.addr %s696, 4
      %s698 = scalar_lea.vmem %s3, %s697
      %p699 = scmp.lt.s32.totalorder %s21, 1
      %s700 = scalar_select %p699, %s21, 1
      %p701 = scmp.lt.s32.totalorder %s22, 0
      %s702 = scalar_select %p701, %s22, 0
      %s703 = sadd.s32 %s702, %s700
      %s704 = smul.addr %s703, 8
      %s705 = scalar_lea.vmem %s4, %s704
      %p706 = scmp.lt.s32.totalorder %s21, 1
      %s707 = scalar_select %p706, %s21, 1
      %p708 = scmp.lt.s32.totalorder %s22, 0
      %s709 = scalar_select %p708, %s22, 0
      %s710 = sadd.s32 %s709, %s707
      %s711 = smul.addr %s710, 8
      %s712 = scalar_lea.vmem %s5, %s711
      // Predicated region
      $region33: #{forward.7} parent=31 // pred_check
        %p713 = pneg %p117
      $region34: #{forward.7} parent=31 // pred_check_branch
        %715 = sbr.rel (%p713) target = $region36
      $region35: #{forward.7} parent=31 // pred_region
        _
      $region36: #{forward.7} parent=31 // pred_fallthru
        _
      // Predicated region
      $region37: #{forward.7} parent=31 // pred_check
        %p716 = pneg %p145
      $region38: #{forward.7} parent=31 // pred_check_branch
        %718 = sbr.rel (%p716) target = $region40
      $region39: #{forward.7} parent=31 // pred_region
        _
      $region40: #{forward.7} parent=31 // pred_fallthru
        _
      // Predicated region
      $region41: #{forward.7} parent=31 // pred_check
        %p719 = pneg %p173
      $region42: #{forward.7} parent=31 // pred_check_branch
        %721 = sbr.rel (%p719) target = $region44
      $region43: #{forward.7} parent=31 // pred_region
        _
      $region44: #{forward.7} parent=31 // pred_fallthru
        _
    $region32: #{forward.7} parent=5 // pred_fallthru
      _
    %p722 = scmp.le.s32.totalorder 2, %s12
    // Predicated region
    $region45: #{forward.7} parent=5 // pred_check
      %p723 = pneg %p722
    $region46: #{forward.7} parent=5 // pred_check_branch
      %725 = sbr.rel (%p723) target = $region48
    $region47: #{forward.7} parent=5 // pred_region
      %s726 = ssub.s32 %s12, 2
      // Predicated region
      $region49: #{forward.7} parent=47 // pred_check
        %p727 = pneg %p123
      $region50: #{forward.7} parent=47 // pred_check_branch
        %729 = sbr.rel (%p727) target = $region52
      $region51: #{forward.7} parent=47 // pred_region
        %p730 = scmp.lt.s32.totalorder %s23, 1
        %s731 = scalar_select %p730, %s23, 1
        %p732 = scmp.lt.s32.totalorder %s24, 0
        %s733 = scalar_select %p732, %s24, 0
        %s734 = sadd.s32 %s733, %s731
        %s735 = smul.addr %s734, 4
        %s736 = scalar_lea.vmem %s3, %s735
      $region52: #{forward.7} parent=47 // pred_fallthru
        _
      // Predicated region
      $region53: #{forward.7} parent=47 // pred_check
        %p737 = pneg %p151
      $region54: #{forward.7} parent=47 // pred_check_branch
        %739 = sbr.rel (%p737) target = $region56
      $region55: #{forward.7} parent=47 // pred_region
        %p740 = scmp.lt.s32.totalorder %s23, 1
        %s741 = scalar_select %p740, %s23, 1
        %p742 = scmp.lt.s32.totalorder %s24, 0
        %s743 = scalar_select %p742, %s24, 0
        %s744 = sadd.s32 %s743, %s741
        %s745 = smul.addr %s744, 8
        %s746 = scalar_lea.vmem %s4, %s745
      $region56: #{forward.7} parent=47 // pred_fallthru
        _
      // Predicated region
      $region57: #{forward.7} parent=47 // pred_check
        %p747 = pneg %p179
      $region58: #{forward.7} parent=47 // pred_check_branch
        %749 = sbr.rel (%p747) target = $region60
      $region59: #{forward.7} parent=47 // pred_region
        %p750 = scmp.lt.s32.totalorder %s23, 1
        %s751 = scalar_select %p750, %s23, 1
        %p752 = scmp.lt.s32.totalorder %s24, 0
        %s753 = scalar_select %p752, %s24, 0
        %s754 = sadd.s32 %s753, %s751
        %s755 = smul.addr %s754, 8
        %s756 = scalar_lea.vmem %s5, %s755
      $region60: #{forward.7} parent=47 // pred_fallthru
        _
    $region48: #{forward.7} parent=5 // pred_fallthru
      _
  $region6: #{forward.7} parent=0 // loop_footer
    %s16 = sadd.s32 1, %s12
  $region7: #{forward.7} parent=0 // loop_footer_branch
    %11 = sbr.rel target = $region3
  $region8: #{forward.7} parent=0 // loop_exit
    _

// kernel: forward.8
$region0: #{forward.8}
  #allocation0 [shape = 'u32[]', space=smem, size = 0x4, offset = 0x4, fixed_abs, tag = 'smem constant byte address 0x4 - core index']
  #allocation1 [shape = 'u32[72,128]{1,0:T(1,128)}', space=vmem, size = 0x9000, scoped, tag = 'internal scratch']
  %s0 = inlined_call_operand.vmem [shape: bf16[2,18,64], index: 0, kind: input, shape index: {}]
  %s1 = inlined_call_operand.vmem [shape: bf16[576,128], index: 1, kind: input, shape index: {}]
  %s2 = inlined_call_operand.vmem [shape: f32[1,128], index: 2, kind: input, shape index: {}]
  %s3 = inlined_call_operand.vmem [shape: bf16[2,8,128], index: 3, kind: output, shape index: {0}]
  %s4 = inlined_call_operand.vmem [shape: f32[2,8,128], index: 4, kind: output, shape index: {1}]
  %s5 = inlined_call_operand.vmem [shape: f32[2,8,128], index: 5, kind: output, shape index: {2}]
  %6 = xla_tuple %s3, %s4, %s5
  %s7 = sld [smem:[#allocation0]]
  $region61: #{forward.8} parent=0
    _
  %s9 = ssub.s32 1, %s7
  %s10 = scalar_select 0, %s9, %s7
  loop: start=0, step=1, limit=4
  $region2: #{forward.8} parent=0 // loop_pre_header
    _
  $region3: #{forward.8} parent=0 // loop_header
    %s12 = sphi 0, %s16
    %p13 = scmp.ge.s32.totalorder %s12, 4
    %s19 = sphi 0, %s31
    %s20 = sphi 0, %s27
    %s21 = sphi 0, %s19
    %s22 = sphi 0, %s20
    %s23 = sphi 0, %s21
    %s24 = sphi 0, %s22
    %s34 = sphi 0, %s36
    %s37 = sphi 0, %s34
    %s38 = sphi 0, %s37
    %s54 = sphi 0, %s38
    %s58 = sphi 0, %s58
    %s60 = sphi 0, %s58
    %s61 = sphi 0, %s60
    %s75 = sphi 0, %s61
    %s79 = sphi 0, %s79
    %s81 = sphi 0, %s79
    %s82 = sphi 0, %s81
    %s96 = sphi 0, %s82
    %s104 = sphi 0, %s106
    %s107 = sphi 0, %s104
    %s108 = sphi 0, %s107
    %s124 = sphi 0, %s108
    %s132 = sphi 0, %s134
    %s135 = sphi 0, %s132
    %s136 = sphi 0, %s135
    %s152 = sphi 0, %s136
    %s160 = sphi 0, %s162
    %s163 = sphi 0, %s160
    %s164 = sphi 0, %s163
    %s180 = sphi 0, %s164
  $region4: #{forward.8} parent=0 // loop_header_branch
    %15 = sbr.rel (%p13) target = $region8
  $region5: #{forward.8} parent=0 // loop_body
    %s17 = ssub.s32 %s12, 1
    %s18 = ssub.s32 %s12, 2
    %s25 = sadd.s32 1, %s20
    %p26 = scmp.ge.s32.totalorder %s25, 1
    %s27 = scalar_select %p26, 0, %s25
    %s28 = sadd.s32 1, %s19
    %s29 = scalar_select %p26, %s28, %s19
    %p30 = scmp.ge.s32.totalorder %s29, 2
    %s31 = scalar_select %p30, 0, %s29
    %s32 = ssub.s32 %s19, %s31
    %p33 = scmp.eq.s32.totalorder %s32, 0
    %s35 = sadd.s32 %s34, 1
    %s36 = scalar_select %p33, %s34, %s35
    %p39 = pneg %p33
    %p40 = scmp.eq.s32.totalorder %s12, 1
    %p41 = por %p39, %p40
    %p42 = scmp.ne.s32.totalorder %s34, %s37
    %p43 = scmp.eq.s32.totalorder %s12, 0
    %p44 = por %p42, %p43
    %p45 = scmp.ne.s32.totalorder %s34, %s37
    %p46 = scmp.eq.s32.totalorder %s17, 1
    %p47 = por %p45, %p46
    %p48 = scmp.ne.s32.totalorder %s37, %s38
    %p49 = scmp.eq.s32.totalorder %s17, 0
    %p50 = por %p48, %p49
    %p51 = scmp.ne.s32.totalorder %s37, %s38
    %p52 = scmp.eq.s32.totalorder %s18, 1
    %p53 = por %p51, %p52
    %p55 = scmp.ne.s32.totalorder %s38, %s54
    %p56 = scmp.eq.s32.totalorder %s18, 0
    %p57 = por %p55, %p56
    %s59 = sadd.s32 %s58, 1
    %p62 = scmp.eq.s32.totalorder %s12, 1
    %p63 = scmp.ne.s32.totalorder %s58, %s60
    %p64 = scmp.eq.s32.totalorder %s12, 0
    %p65 = por %p63, %p64
    %p66 = scmp.ne.s32.totalorder %s58, %s60
    %p67 = scmp.eq.s32.totalorder %s17, 1
    %p68 = por %p66, %p67
    %p69 = scmp.ne.s32.totalorder %s60, %s61
    %p70 = scmp.eq.s32.totalorder %s17, 0
    %p71 = por %p69, %p70
    %p72 = scmp.ne.s32.totalorder %s60, %s61
    %p73 = scmp.eq.s32.totalorder %s18, 1
    %p74 = por %p72, %p73
    %p76 = scmp.ne.s32.totalorder %s61, %s75
    %p77 = scmp.eq.s32.totalorder %s18, 0
    %p78 = por %p76, %p77
    %s80 = sadd.s32 %s79, 1
    %p83 = scmp.eq.s32.totalorder %s12, 1
    %p84 = scmp.ne.s32.totalorder %s79, %s81
    %p85 = scmp.eq.s32.totalorder %s12, 0
    %p86 = por %p84, %p85
    %p87 = scmp.ne.s32.totalorder %s79, %s81
    %p88 = scmp.eq.s32.totalorder %s17, 1
    %p89 = por %p87, %p88
    %p90 = scmp.ne.s32.totalorder %s81, %s82
    %p91 = scmp.eq.s32.totalorder %s17, 0
    %p92 = por %p90, %p91
    %p93 = scmp.ne.s32.totalorder %s81, %s82
    %p94 = scmp.eq.s32.totalorder %s18, 1
    %p95 = por %p93, %p94
    %p97 = scmp.ne.s32.totalorder %s82, %s96
    %p98 = scmp.eq.s32.totalorder %s18, 0
    %p99 = por %p97, %p98
    %s100 = ssub.s32 %s19, %s31
    %s101 = ssub.s32 %s20, %s27
    %s102 = sor.u32 %s100, %s101
    %p103 = scmp.eq.s32.totalorder %s102, 0
    %s105 = sadd.s32 %s104, 1
    %s106 = scalar_select %p103, %s104, %s105
    %p109 = pneg %p103
    %p110 = scmp.eq.s32.totalorder %s12, 1
    %p111 = por %p109, %p110
    %p112 = scmp.ne.s32.totalorder %s104, %s107
    %p113 = scmp.eq.s32.totalorder %s12, 0
    %p114 = por %p112, %p113
    %p115 = scmp.ne.s32.totalorder %s104, %s107
    %p116 = scmp.eq.s32.totalorder %s17, 1
    %p117 = por %p115, %p116
    %p118 = scmp.ne.s32.totalorder %s107, %s108
    %p119 = scmp.eq.s32.totalorder %s17, 0
    %p120 = por %p118, %p119
    %p121 = scmp.ne.s32.totalorder %s107, %s108
    %p122 = scmp.eq.s32.totalorder %s18, 1
    %p123 = por %p121, %p122
    %p125 = scmp.ne.s32.totalorder %s108, %s124
    %p126 = scmp.eq.s32.totalorder %s18, 0
    %p127 = por %p125, %p126
    %s128 = ssub.s32 %s19, %s31
    %s129 = ssub.s32 %s20, %s27
    %s130 = sor.u32 %s128, %s129
    %p131 = scmp.eq.s32.totalorder %s130, 0
    %s133 = sadd.s32 %s132, 1
    %s134 = scalar_select %p131, %s132, %s133
    %p137 = pneg %p131
    %p138 = scmp.eq.s32.totalorder %s12, 1
    %p139 = por %p137, %p138
    %p140 = scmp.ne.s32.totalorder %s132, %s135
    %p141 = scmp.eq.s32.totalorder %s12, 0
    %p142 = por %p140, %p141
    %p143 = scmp.ne.s32.totalorder %s132, %s135
    %p144 = scmp.eq.s32.totalorder %s17, 1
    %p145 = por %p143, %p144
    %p146 = scmp.ne.s32.totalorder %s135, %s136
    %p147 = scmp.eq.s32.totalorder %s17, 0
    %p148 = por %p146, %p147
    %p149 = scmp.ne.s32.totalorder %s135, %s136
    %p150 = scmp.eq.s32.totalorder %s18, 1
    %p151 = por %p149, %p150
    %p153 = scmp.ne.s32.totalorder %s136, %s152
    %p154 = scmp.eq.s32.totalorder %s18, 0
    %p155 = por %p153, %p154
    %s156 = ssub.s32 %s19, %s31
    %s157 = ssub.s32 %s20, %s27
    %s158 = sor.u32 %s156, %s157
    %p159 = scmp.eq.s32.totalorder %s158, 0
    %s161 = sadd.s32 %s160, 1
    %s162 = scalar_select %p159, %s160, %s161
    %p165 = pneg %p159
    %p166 = scmp.eq.s32.totalorder %s12, 1
    %p167 = por %p165, %p166
    %p168 = scmp.ne.s32.totalorder %s160, %s163
    %p169 = scmp.eq.s32.totalorder %s12, 0
    %p170 = por %p168, %p169
    %p171 = scmp.ne.s32.totalorder %s160, %s163
    %p172 = scmp.eq.s32.totalorder %s17, 1
    %p173 = por %p171, %p172
    %p174 = scmp.ne.s32.totalorder %s163, %s164
    %p175 = scmp.eq.s32.totalorder %s17, 0
    %p176 = por %p174, %p175
    %p177 = scmp.ne.s32.totalorder %s163, %s164
    %p178 = scmp.eq.s32.totalorder %s18, 1
    %p179 = por %p177, %p178
    %p181 = scmp.ne.s32.totalorder %s164, %s180
    %p182 = scmp.eq.s32.totalorder %s18, 0
    %p183 = por %p181, %p182
    %p184 = scmp.le.s32.totalorder 1, %s12
    %p185 = scmp.lt.s32.totalorder %s12, 3
    %p186 = pnand %p184, %p185
    %p187 = pneg %p186
    // Predicated region
    $region9: #{forward.8} parent=5 // pred_check
      _
    $region10: #{forward.8} parent=5 // pred_check_branch
      %189 = sbr.rel (%p186) target = $region12
    $region11: #{forward.8} parent=5 // pred_region
      %s190 = ssub.s32 %s12, 1
      // Predicated region
      $region13: #{forward.8} parent=11 // pred_check
        %p191 = pneg %p71
      $region14: #{forward.8} parent=11 // pred_check_branch
        %193 = sbr.rel (%p191) target = $region16
      $region15: #{forward.8} parent=11 // pred_region
        _
      $region16: #{forward.8} parent=11 // pred_fallthru
        _
      // Predicated region
      $region17: #{forward.8} parent=11 // pred_check
        %p194 = pneg %p92
      $region18: #{forward.8} parent=11 // pred_check_branch
        %196 = sbr.rel (%p194) target = $region20
      $region19: #{forward.8} parent=11 // pred_region
        _
      $region20: #{forward.8} parent=11 // pred_fallthru
        _
    $region12: #{forward.8} parent=5 // pred_fallthru
      _
    %p197 = scmp.lt.s32.totalorder %s12, 2
    // Predicated region
    $region21: #{forward.8} parent=5 // pred_check
      %p198 = pneg %p197
    $region22: #{forward.8} parent=5 // pred_check_branch
      %200 = sbr.rel (%p198) target = $region24
    $region23: #{forward.8} parent=5 // pred_region
      // Predicated region
      $region25: #{forward.8} parent=23 // pred_check
        %p201 = pneg %p44
      $region26: #{forward.8} parent=23 // pred_check_branch
        %203 = sbr.rel (%p201) target = $region28
      $region27: #{forward.8} parent=23 // pred_region
        %p204 = scmp.lt.s32.totalorder %s19, 1
        %s205 = scalar_select %p204, %s19, 1
        %s206 = smul.addr %s205, 3
        %s207 = smul.addr %s206, 4
        %s208 = scalar_lea.vmem %s0, %s207
      $region28: #{forward.8} parent=23 // pred_fallthru
        _
    $region24: #{forward.8} parent=5 // pred_fallthru
      _
    %p209 = scmp.le.s32.totalorder 1, %s12
    %p210 = scmp.lt.s32.totalorder %s12, 3
    %p211 = pnand %p209, %p210
    %p212 = pneg %p211
    // Predicated region
    $region29: #{forward.8} parent=5 // pred_check
      _
    $region30: #{forward.8} parent=5 // pred_check_branch
      %214 = sbr.rel (%p211) target = $region32
    $region31: #{forward.8} parent=5 // pred_region
      %s215 = ssub.s32 %s12, 1
      %p216 = scmp.lt.s32.totalorder %s21, 1
      %s217 = scalar_select %p216, %s21, 1
      %s218 = smul.addr %s217, 3
      %s219 = smul.addr %s218, 4
      %s220 = scalar_lea.vmem %s0, %s219
      %p221 = pneg %p50
      %p222 = pneg %p47
      %p223 = pneg %p71
      %p224 = pneg %p68
      %p225 = pneg %p92
      %p226 = pneg %p89
      %p227 = pneg %p120
      %p228 = pneg %p117
      %p229 = scmp.lt.s32.totalorder %s21, 1
      %s230 = scalar_select %p229, %s21, 1
      %p231 = scmp.lt.s32.totalorder %s22, 0
      %s232 = scalar_select %p231, %s22, 0
      %s233 = sadd.s32 %s232, %s230
      %s234 = smul.addr %s233, 4
      %s235 = scalar_lea.vmem %s3, %s234
      %p236 = pneg %p148
      %p237 = pneg %p145
      %p238 = scmp.lt.s32.totalorder %s21, 1
      %s239 = scalar_select %p238, %s21, 1
      %p240 = scmp.lt.s32.totalorder %s22, 0
      %s241 = scalar_select %p240, %s22, 0
      %s242 = sadd.s32 %s241, %s239
      %s243 = smul.addr %s242, 8
      %s244 = scalar_lea.vmem %s4, %s243
      %p245 = pneg %p176
      %p246 = pneg %p173
      %p247 = scmp.lt.s32.totalorder %s21, 1
      %s248 = scalar_select %p247, %s21, 1
      %p249 = scmp.lt.s32.totalorder %s22, 0
      %s250 = scalar_select %p249, %s22, 0
      %s251 = sadd.s32 %s250, %s248
      %s252 = smul.addr %s251, 8
      %s253 = scalar_lea.vmem %s5, %s252
      %p254 = scmp.lt.s32.totalorder %s21, 1
      %s255 = scalar_select %p254, %s21, 1
      %s256 = smul.addr %s255, 3
      %s257 = smul.addr %s256, 4
      %s258 = scalar_lea.vmem %s0, %s257
      %p259 = scmp.lt.s32.totalorder %s21, 1
      %s260 = scalar_select %p259, %s21, 1
      %p261 = scmp.lt.s32.totalorder %s22, 0
      %s262 = scalar_select %p261, %s22, 0
      %s263 = sadd.s32 %s262, %s260
      %s264 = smul.addr %s263, 4
      %s265 = scalar_lea.vmem %s3, %s264
      %p266 = scmp.lt.s32.totalorder %s21, 1
      %s267 = scalar_select %p266, %s21, 1
      %p268 = scmp.lt.s32.totalorder %s22, 0
      %s269 = scalar_select %p268, %s22, 0
      %s270 = sadd.s32 %s269, %s267
      %s271 = smul.addr %s270, 8
      %s272 = scalar_lea.vmem %s4, %s271
      %p273 = scmp.lt.s32.totalorder %s21, 1
      %s274 = scalar_select %p273, %s21, 1
      %p275 = scmp.lt.s32.totalorder %s22, 0
      %s276 = scalar_select %p275, %s22, 0
      %s277 = sadd.s32 %s276, %s274
      %s278 = smul.addr %s277, 8
      %s279 = scalar_lea.vmem %s5, %s278
      %s281 = smul.u32 %s22, 8
      %s282 = sshra.s32 %s281, 3
      %s283 = sand.u32 %s281, 7
      %s284 = smul.addr %s282, 4
      %s285 = scalar_lea.vmem %s258, %s284
      %v286 = vld [vmem:[%s285] sm:$0xf]
      %v287 = vld [vmem:[%s285 + $0x4] sm:$0xf]
      %v288 = vld [vmem:[%s285 + $0x8] sm:$0x1]
      %v289 = vunpack.c.l.bf16 %v286
      %v290 = vunpack.c.l.bf16 %v287
      %v291 = vunpack.c.l.bf16 %v288
      %vm292 = vcmp.ge.f32.partialorder %v289, 0.0
      %vm293 = vcmp.ge.f32.partialorder %v290, 0.0
      %vm294 = vcmp.ge.f32.partialorder %v291, 0.0
      %v295 = vmul.f32 %v289, 0.2
      %v296 = vmul.f32 %v290, 0.2
      %v297 = vmul.f32 %v291, 0.2
      %v298 = vsel %vm292, %v289, %v295
      %v299 = vsel %vm293, %v290, %v296
      %v300 = vsel %vm294, %v291, %v297
      %vm303 = vcmask 1046528
      %v304 = vrot.slane %v298, 1
      %v305 = vrot.slane %v299, 1
      %v306 = vsel %vm303, %v304, %v305
      %307 = vrot.lane.b32.xlu0 %v306, 64
      %v308 = vpop.permute.xlu0 %307
      %vm310 = vcmask 1045504
      %v311 = vrot.slane %v298, 2
      %v312 = vrot.slane %v299, 2
      %v313 = vsel %vm310, %v311, %v312
      %vm315 = vcmask 1043456
      %v316 = vrot.slane %v298, 4
      %v317 = vrot.slane %v299, 4
      %v318 = vsel %vm315, %v316, %v317
      %319 = vrot.lane.b32.xlu0 %v318, 64
      %v320 = vpop.permute.xlu0 %319
      %vm322 = vcmask 1042432
      %v323 = vrot.slane %v298, 5
      %v324 = vrot.slane %v299, 5
      %v325 = vsel %vm322, %v323, %v324
      %vm327 = vcmask 1041408
      %v328 = vrot.slane %v298, 6
      %v329 = vrot.slane %v299, 6
      %v330 = vsel %vm327, %v328, %v329
      %331 = vrot.lane.b32.xlu0 %v330, 64
      %v332 = vpop.permute.xlu0 %331
      %v335 = vrot.slane %v300, 1
      %v336 = vsel %vm303, %v305, %v335
      %337 = vrot.lane.b32.xlu0 %v336, 64
      %v338 = vpop.permute.xlu0 %337
      %v340 = vrot.slane %v300, 2
      %v341 = vsel %vm310, %v312, %v340
      %vm343 = vcmask 523264
      %v344 = vsel %vm343, %v298, %v308
      %v345 = vsel %vm343, %v313, %v320
      %v346 = vsel %vm343, %v325, %v332
      %v347 = vsel %vm343, %v299, %v338
      %v348 = vpack.c.bf16 %v344, %v344
      %v349 = vpack.c.bf16 %v345, %v345
      %v350 = vpack.c.bf16 %v346, %v346
      %v351 = vpack.c.bf16 %v347, %v347
      %v352 = vpack.c.bf16 %v341, %v341
      %v353 = vld [vmem:[%s1] sm:$0xf]
      %v354 = vld [vmem:[%s1 + $0x4] sm:$0xf]
      %v355 = vld [vmem:[%s1 + $0x8] sm:$0xf]
      %v356 = vld [vmem:[%s1 + $0xc] sm:$0xf]
      %v357 = vld [vmem:[%s1 + $0x10] sm:$0xf]
      %v358 = vld [vmem:[%s1 + $0x14] sm:$0xf]
      %v359 = vld [vmem:[%s1 + $0x18] sm:$0xf]
      %v360 = vld [vmem:[%s1 + $0x1c] sm:$0xf]
      %v361 = vld [vmem:[%s1 + $0x20] sm:$0xf]
      %v362 = vld [vmem:[%s1 + $0x24] sm:$0xf]
      %v363 = vld [vmem:[%s1 + $0x28] sm:$0xf]
      %v364 = vld [vmem:[%s1 + $0x2c] sm:$0xf]
      %v365 = vld [vmem:[%s1 + $0x30] sm:$0xf]
      %v366 = vld [vmem:[%s1 + $0x34] sm:$0xf]
      %v367 = vld [vmem:[%s1 + $0x38] sm:$0xf]
      %v368 = vld [vmem:[%s1 + $0x3c] sm:$0xf]
      %v369 = vld [vmem:[%s1 + $0x40] sm:$0xf]
      %v370 = vld [vmem:[%s1 + $0x44] sm:$0xf]
      %v371 = vld [vmem:[%s1 + $0x48] sm:$0xf]
      %v372 = vld [vmem:[%s1 + $0x4c] sm:$0xf]
      %v373 = vld [vmem:[%s1 + $0x50] sm:$0xf]
      %v374 = vld [vmem:[%s1 + $0x54] sm:$0xf]
      %v375 = vld [vmem:[%s1 + $0x58] sm:$0xf]
      %v376 = vld [vmem:[%s1 + $0x5c] sm:$0xf]
      %v377 = vld [vmem:[%s1 + $0x60] sm:$0xf]
      %v378 = vld [vmem:[%s1 + $0x64] sm:$0xf]
      %v379 = vld [vmem:[%s1 + $0x68] sm:$0xf]
      %v380 = vld [vmem:[%s1 + $0x6c] sm:$0xf]
      %v381 = vld [vmem:[%s1 + $0x70] sm:$0xf]
      %v382 = vld [vmem:[%s1 + $0x74] sm:$0xf]
      %v383 = vld [vmem:[%s1 + $0x78] sm:$0xf]
      %v384 = vld [vmem:[%s1 + $0x7c] sm:$0xf]
      %v385 = vld [vmem:[%s1 + $0x80] sm:$0xf]
      %v386 = vld [vmem:[%s1 + $0x84] sm:$0xf]
      %v387 = vld [vmem:[%s1 + $0x88] sm:$0xf]
      %v388 = vld [vmem:[%s1 + $0x8c] sm:$0xf]
      %v389 = vld [vmem:[%s1 + $0x90] sm:$0xf]
      %v390 = vld [vmem:[%s1 + $0x94] sm:$0xf]
      %v391 = vld [vmem:[%s1 + $0x98] sm:$0xf]
      %v392 = vld [vmem:[%s1 + $0x9c] sm:$0xf]
      %v393 = vld [vmem:[%s1 + $0xa0] sm:$0xf]
      %v394 = vld [vmem:[%s1 + $0xa4] sm:$0xf]
      %v395 = vld [vmem:[%s1 + $0xa8] sm:$0xf]
      %v396 = vld [vmem:[%s1 + $0xac] sm:$0xf]
      %v397 = vld [vmem:[%s1 + $0xb0] sm:$0xf]
      %v398 = vld [vmem:[%s1 + $0xb4] sm:$0xf]
      %v399 = vld [vmem:[%s1 + $0xb8] sm:$0xf]
      %v400 = vld [vmem:[%s1 + $0xbc] sm:$0xf]
      %v401 = vld [vmem:[%s1 + $0xc0] sm:$0xf]
      %v402 = vld [vmem:[%s1 + $0xc4] sm:$0xf]
      %v403 = vld [vmem:[%s1 + $0xc8] sm:$0xf]
      %v404 = vld [vmem:[%s1 + $0xcc] sm:$0xf]
      %v405 = vld [vmem:[%s1 + $0xd0] sm:$0xf]
      %v406 = vld [vmem:[%s1 + $0xd4] sm:$0xf]
      %v407 = vld [vmem:[%s1 + $0xd8] sm:$0xf]
      %v408 = vld [vmem:[%s1 + $0xdc] sm:$0xf]
      %v409 = vld [vmem:[%s1 + $0xe0] sm:$0xf]
      %v410 = vld [vmem:[%s1 + $0xe4] sm:$0xf]
      %v411 = vld [vmem:[%s1 + $0xe8] sm:$0xf]
      %v412 = vld [vmem:[%s1 + $0xec] sm:$0xf]
      %v413 = vld [vmem:[%s1 + $0xf0] sm:$0xf]
      %v414 = vld [vmem:[%s1 + $0xf4] sm:$0xf]
      %v415 = vld [vmem:[%s1 + $0xf8] sm:$0xf]
      %v416 = vld [vmem:[%s1 + $0xfc] sm:$0xf]
      %v417 = vld [vmem:[%s1 + $0x100] sm:$0xf]
      %v418 = vld [vmem:[%s1 + $0x104] sm:$0xf]
      %v419 = vld [vmem:[%s1 + $0x108] sm:$0xf]
      %v420 = vld [vmem:[%s1 + $0x10c] sm:$0xf]
      %v421 = vld [vmem:[%s1 + $0x110] sm:$0xf]
      %v422 = vld [vmem:[%s1 + $0x114] sm:$0xf]
      %v423 = vld [vmem:[%s1 + $0x118] sm:$0xf]
      %v424 = vld [vmem:[%s1 + $0x11c] sm:$0xf]
      %v425 = vld [vmem:[%s2] sm:$0x1]
      %v427 = vperm.slane %v425, 0
      %v501 = vunpack.c.l.b16 %v353
      %v502 = vunpack.c.l.b16 %v354
      %v503 = vunpack.c.l.b16 %v355
      %v504 = vunpack.c.l.b16 %v356
      %v505 = vunpack.c.l.b16 %v357
      %v506 = vunpack.c.l.b16 %v358
      %v507 = vunpack.c.l.b16 %v359
      %v508 = vunpack.c.l.b16 %v360
      %v509 = vunpack.c.l.b16 %v361
      %v510 = vunpack.c.l.b16 %v362
      %v511 = vunpack.c.l.b16 %v363
      %v512 = vunpack.c.l.b16 %v364
      %v513 = vunpack.c.l.b16 %v365
      %v514 = vunpack.c.l.b16 %v366
      %v515 = vunpack.c.l.b16 %v367
      %v516 = vunpack.c.l.b16 %v368
      %v517 = vunpack.c.l.b16 %v369
      %v518 = vunpack.c.l.b16 %v370
      %v519 = vunpack.c.l.b16 %v371
      %v520 = vunpack.c.l.b16 %v372
      %v521 = vunpack.c.l.b16 %v373
      %v522 = vunpack.c.l.b16 %v374
      %v523 = vunpack.c.l.b16 %v375
      %v524 = vunpack.c.l.b16 %v376
      %v525 = vunpack.c.l.b16 %v377
      %v526 = vunpack.c.l.b16 %v378
      %v527 = vunpack.c.l.b16 %v379
      %v528 = vunpack.c.l.b16 %v380
      %v529 = vunpack.c.l.b16 %v381
      %v530 = vunpack.c.l.b16 %v382
      %v531 = vunpack.c.l.b16 %v383
      %v532 = vunpack.c.l.b16 %v384
      %v533 = vunpack.c.l.b16 %v385
      %v534 = vunpack.c.l.b16 %v386
      %v535 = vunpack.c.l.b16 %v387
      %v536 = vunpack.c.l.b16 %v388
      %v537 = vunpack.c.l.b16 %v389
      %v538 = vunpack.c.l.b16 %v390
      %v539 = vunpack.c.l.b16 %v391
      %v540 = vunpack.c.l.b16 %v392
      %v541 = vunpack.c.l.b16 %v393
      %v542 = vunpack.c.l.b16 %v394
      %v543 = vunpack.c.l.b16 %v395
      %v544 = vunpack.c.l.b16 %v396
      %v545 = vunpack.c.l.b16 %v397
      %v546 = vunpack.c.l.b16 %v398
      %v547 = vunpack.c.l.b16 %v399
      %v548 = vunpack.c.l.b16 %v400
      %v549 = vunpack.c.l.b16 %v401
      %v550 = vunpack.c.l.b16 %v402
      %v551 = vunpack.c.l.b16 %v403
      %v552 = vunpack.c.l.b16 %v404
      %v553 = vunpack.c.l.b16 %v405
      %v554 = vunpack.c.l.b16 %v406
      %v555 = vunpack.c.l.b16 %v407
      %v556 = vunpack.c.l.b16 %v408
      %v557 = vunpack.c.l.b16 %v409
      %v558 = vunpack.c.l.b16 %v410
      %v559 = vunpack.c.l.b16 %v411
      %v560 = vunpack.c.l.b16 %v412
      %v561 = vunpack.c.l.b16 %v413
      %v562 = vunpack.c.l.b16 %v414
      %v563 = vunpack.c.l.b16 %v415
      %v564 = vunpack.c.l.b16 %v416
      %v565 = vunpack.c.l.b16 %v417
      %v566 = vunpack.c.l.b16 %v418
      %v567 = vunpack.c.l.b16 %v419
      %v568 = vunpack.c.l.b16 %v420
      %v569 = vunpack.c.l.b16 %v421
      %v570 = vunpack.c.l.b16 %v422
      %v571 = vunpack.c.l.b16 %v423
      %v572 = vunpack.c.l.b16 %v424
      %v573 = vpack.c.b16 %v502, %v501
      %v574 = vpack.c.b16 %v504, %v503
      %v575 = vpack.c.b16 %v506, %v505
      %v576 = vpack.c.b16 %v508, %v507
      %v577 = vpack.c.b16 %v510, %v509
      %v578 = vpack.c.b16 %v512, %v511
      %v579 = vpack.c.b16 %v514, %v513
      %v580 = vpack.c.b16 %v516, %v515
      %v581 = vpack.c.b16 %v518, %v517
      %v582 = vpack.c.b16 %v520, %v519
      %v583 = vpack.c.b16 %v522, %v521
      %v584 = vpack.c.b16 %v524, %v523
      %v585 = vpack.c.b16 %v526, %v525
      %v586 = vpack.c.b16 %v528, %v527
      %v587 = vpack.c.b16 %v530, %v529
      %v588 = vpack.c.b16 %v532, %v531
      %v589 = vpack.c.b16 %v534, %v533
      %v590 = vpack.c.b16 %v536, %v535
      %v591 = vpack.c.b16 %v538, %v537
      %v592 = vpack.c.b16 %v540, %v539
      %v593 = vpack.c.b16 %v542, %v541
      %v594 = vpack.c.b16 %v544, %v543
      %v595 = vpack.c.b16 %v546, %v545
      %v596 = vpack.c.b16 %v548, %v547
      %v597 = vpack.c.b16 %v550, %v549
      %v598 = vpack.c.b16 %v552, %v551
      %v599 = vpack.c.b16 %v554, %v553
      %v600 = vpack.c.b16 %v556, %v555
      %v601 = vpack.c.b16 %v558, %v557
      %v602 = vpack.c.b16 %v560, %v559
      %v603 = vpack.c.b16 %v562, %v561
      %v604 = vpack.c.b16 %v564, %v563
      %v605 = vpack.c.b16 %v566, %v565
      %v606 = vpack.c.b16 %v568, %v567
      %v607 = vpack.c.b16 %v570, %v569
      %v608 = vpack.c.b16 %v572, %v571
      %v646 = vsel %vm343, %v352, 0
      %648 = vmatpush.bf16.msra.mxu0 %v580
      %649 = vmatpush.bf16.msra.mxu0 %v579
      %650 = vmatpush.bf16.msra.mxu0 %v578
      %651 = vmatpush.bf16.msra.mxu0 %v577
      %652 = vmatpush.bf16.msra.mxu0 %v576
      %653 = vmatpush.bf16.msra.mxu0 %v575
      %654 = vmatpush.bf16.msra.mxu0 %v574
      %655 = vmatpush.bf16.msra.mxu0 %v573
      %656 = vmatmul.bf16.gmra.mxu0 %v348
      %v657 = vpop.f32.mrf.mxu0
      %v658 = vadd.f32 %v427, %v657
      %v659 = vpop.f32.mrf.mxu0
      %660 = vdwg.mxu0
      %661 = vmatpush.bf16.msra.mxu0 %v588
      %662 = vmatpush.bf16.msra.mxu0 %v587
      %663 = vmatpush.bf16.msra.mxu0 %v586
      %664 = vmatpush.bf16.msra.mxu0 %v585
      %665 = vmatpush.bf16.msra.mxu0 %v584
      %666 = vmatpush.bf16.msra.mxu0 %v583
      %667 = vmatpush.bf16.msra.mxu0 %v582
      %668 = vmatpush.bf16.msra.mxu0 %v581
      %669 = vmatmul.bf16.gmra.mxu0 %v349
      %v670 = vpop.f32.mrf.mxu0
      %v671 = vadd.f32 %v658, %v670
      %v672 = vpop.f32.mrf.mxu0
      %673 = vdwg.mxu0
      %674 = vmatpush.bf16.msra.mxu0 %v596
      %675 = vmatpush.bf16.msra.mxu0 %v595
      %676 = vmatpush.bf16.msra.mxu0 %v594
      %677 = vmatpush.bf16.msra.mxu0 %v593
      %678 = vmatpush.bf16.msra.mxu0 %v592
      %679 = vmatpush.bf16.msra.mxu0 %v591
      %680 = vmatpush.bf16.msra.mxu0 %v590
      %681 = vmatpush.bf16.msra.mxu0 %v589
      %682 = vmatmul.bf16.gmra.mxu0 %v350
      %v683 = vpop.f32.mrf.mxu0
      %v684 = vadd.f32 %v671, %v683
      %v685 = vpop.f32.mrf.mxu0
      %686 = vdwg.mxu0
      %687 = vmatpush.bf16.msra.mxu0 %v604
      %688 = vmatpush.bf16.msra.mxu0 %v603
      %689 = vmatpush.bf16.msra.mxu0 %v602
      %690 = vmatpush.bf16.msra.mxu0 %v601
      %691 = vmatpush.bf16.msra.mxu0 %v600
      %692 = vmatpush.bf16.msra.mxu0 %v599
      %693 = vmatpush.bf16.msra.mxu0 %v598
      %694 = vmatpush.bf16.msra.mxu0 %v597
      %695 = vmatmul.bf16.gmra.mxu0 %v351
      %v696 = vpop.f32.mrf.mxu0
      %v697 = vadd.f32 %v684, %v696
      %v698 = vpop.f32.mrf.mxu0
      %699 = vdwg.mxu0
      %700 = vmatpush.bf16.msra.mxu0 0
      %701 = vmatpush.bf16.msra.mxu0 0
      %702 = vmatpush.bf16.msra.mxu0 0
      %703 = vmatpush.bf16.msra.mxu0 0
      %704 = vmatpush.bf16.msra.mxu0 %v608
      %705 = vmatpush.bf16.msra.mxu0 %v607
      %706 = vmatpush.bf16.msra.mxu0 %v606
      %707 = vmatpush.bf16.msra.mxu0 %v605
      %708 = vmatmul.bf16.gmra.mxu0 %v646
      %v709 = vpop.f32.mrf.mxu0
      %v710 = vadd.f32 %v697, %v709
      %v711 = vpop.f32.mrf.mxu0
      %712 = vdwg.mxu0
      %v713 = vpack.c.bf16 %v710, %v710
      %714 = vst [vmem:[%s265] sm:$0xf] %v713
      %v715 = vlaneseq
      %v716 = vshrl.u32 %v715, 7
      %v717 = vstv %s281
      %v718 = vadd.s32 %v717, %v716
      %vm719 = vcmp.lt.s32.totalorder %v718, 6
      %vm720 = vcmp.lt.s32.totalorder %v718, 0
      %v721 = vsub.s32 0, %v718
      %v722 = vsel %vm720, %v721, %v718
      %v723 = vshrl.u32 %v722, 2
      %v724 = vand.u32 %v722, 3
      %v725 = vsub.s32 0, %v724
      %v726 = vsel %vm720, %v725, %v724
      %vm727 = vcmp.ne.s32.totalorder %v726, 0
      %vm728 = vcmp.lt.s32.totalorder %v726, 0
      %vm729 = vmand %vm728, %vm727
      %v730 = vadd.s32 %v726, 4
      %v731 = vsel %vm729, %v730, %v726
      %vm732 = vcmp.lt.s32.totalorder %v731, 2
      %vm733 = vmand %vm719, %vm732
      %v734 = vsel %vm733, 1, 0
      %vm735 = vcmp.eq.s32.totalorder %v734, 1
      %v736 = vsel %vm735, %v710, 0.0
      %v737 = vrot.slane %v736, 4
      %v738 = vadd.f32 %v736, %v737
      %v739 = vrot.slane %v738, 2
      %v740 = vadd.f32 %v738, %v739
      %v741 = vrot.slane %v740, 1
      %v742 = vadd.f32 %v740, %v741
      %v743 = vmul.f32 %v736, %v736
      %v744 = vrot.slane %v743, 4
      %v745 = vadd.f32 %v743, %v744
      %v746 = vrot.slane %v745, 2
      %v747 = vadd.f32 %v745, %v746
      %v748 = vrot.slane %v747, 1
      %v749 = vadd.f32 %v747, %v748
      %vm750 = vcmp.eq.s32.totalorder %v716, 0
      %v751 = vsel %vm750, %v742, 0.0
      %752 = vst [vmem:[%s272] sm:$0xff] %v751
      %v753 = vsel %vm750, %v749, 0.0
      %754 = vst [vmem:[%s279] sm:$0xff] %v753
      %p755 = scmp.lt.s32.totalorder %s21, 1
      %s756 = scalar_select %p755, %s21, 1
      %p757 = scmp.lt.s32.totalorder %s22, 0
      %s758 = scalar_select %p757, %s22, 0
      %s759 = sadd.s32 %s758, %s756
      %s760 = smul.addr %s759, 4
      %s761 = scalar_lea.vmem %s3, %s760
      %p762 = scmp.lt.s32.totalorder %s21, 1
      %s763 = scalar_select %p762, %s21, 1
      %p764 = scmp.lt.s32.totalorder %s22, 0
      %s765 = scalar_select %p764, %s22, 0
      %s766 = sadd.s32 %s765, %s763
      %s767 = smul.addr %s766, 8
      %s768 = scalar_lea.vmem %s4, %s767
      %p769 = scmp.lt.s32.totalorder %s21, 1
      %s770 = scalar_select %p769, %s21, 1
      %p771 = scmp.lt.s32.totalorder %s22, 0
      %s772 = scalar_select %p771, %s22, 0
      %s773 = sadd.s32 %s772, %s770
      %s774 = smul.addr %s773, 8
      %s775 = scalar_lea.vmem %s5, %s774
      // Predicated region
      $region33: #{forward.8} parent=31 // pred_check
        %p776 = pneg %p117
      $region34: #{forward.8} parent=31 // pred_check_branch
        %778 = sbr.rel (%p776) target = $region36
      $region35: #{forward.8} parent=31 // pred_region
        _
      $region36: #{forward.8} parent=31 // pred_fallthru
        _
      // Predicated region
      $region37: #{forward.8} parent=31 // pred_check
        %p779 = pneg %p145
      $region38: #{forward.8} parent=31 // pred_check_branch
        %781 = sbr.rel (%p779) target = $region40
      $region39: #{forward.8} parent=31 // pred_region
        _
      $region40: #{forward.8} parent=31 // pred_fallthru
        _
      // Predicated region
      $region41: #{forward.8} parent=31 // pred_check
        %p782 = pneg %p173
      $region42: #{forward.8} parent=31 // pred_check_branch
        %784 = sbr.rel (%p782) target = $region44
      $region43: #{forward.8} parent=31 // pred_region
        _
      $region44: #{forward.8} parent=31 // pred_fallthru
        _
    $region32: #{forward.8} parent=5 // pred_fallthru
      _
    %p785 = scmp.le.s32.totalorder 2, %s12
    // Predicated region
    $region45: #{forward.8} parent=5 // pred_check
      %p786 = pneg %p785
    $region46: #{forward.8} parent=5 // pred_check_branch
      %788 = sbr.rel (%p786) target = $region48
    $region47: #{forward.8} parent=5 // pred_region
      %s789 = ssub.s32 %s12, 2
      // Predicated region
      $region49: #{forward.8} parent=47 // pred_check
        %p790 = pneg %p123
      $region50: #{forward.8} parent=47 // pred_check_branch
        %792 = sbr.rel (%p790) target = $region52
      $region51: #{forward.8} parent=47 // pred_region
        %p793 = scmp.lt.s32.totalorder %s23, 1
        %s794 = scalar_select %p793, %s23, 1
        %p795 = scmp.lt.s32.totalorder %s24, 0
        %s796 = scalar_select %p795, %s24, 0
        %s797 = sadd.s32 %s796, %s794
        %s798 = smul.addr %s797, 4
        %s799 = scalar_lea.vmem %s3, %s798
      $region52: #{forward.8} parent=47 // pred_fallthru
        _
      // Predicated region
      $region53: #{forward.8} parent=47 // pred_check
        %p800 = pneg %p151
      $region54: #{forward.8} parent=47 // pred_check_branch
        %802 = sbr.rel (%p800) target = $region56
      $region55: #{forward.8} parent=47 // pred_region
        %p803 = scmp.lt.s32.totalorder %s23, 1
        %s804 = scalar_select %p803, %s23, 1
        %p805 = scmp.lt.s32.totalorder %s24, 0
        %s806 = scalar_select %p805, %s24, 0
        %s807 = sadd.s32 %s806, %s804
        %s808 = smul.addr %s807, 8
        %s809 = scalar_lea.vmem %s4, %s808
      $region56: #{forward.8} parent=47 // pred_fallthru
        _
      // Predicated region
      $region57: #{forward.8} parent=47 // pred_check
        %p810 = pneg %p179
      $region58: #{forward.8} parent=47 // pred_check_branch
        %812 = sbr.rel (%p810) target = $region60
      $region59: #{forward.8} parent=47 // pred_region
        %p813 = scmp.lt.s32.totalorder %s23, 1
        %s814 = scalar_select %p813, %s23, 1
        %p815 = scmp.lt.s32.totalorder %s24, 0
        %s816 = scalar_select %p815, %s24, 0
        %s817 = sadd.s32 %s816, %s814
        %s818 = smul.addr %s817, 8
        %s819 = scalar_lea.vmem %s5, %s818
      $region60: #{forward.8} parent=47 // pred_fallthru
        _
    $region48: #{forward.8} parent=5 // pred_fallthru
      _
  $region6: #{forward.8} parent=0 // loop_footer
    %s16 = sadd.s32 1, %s12
  $region7: #{forward.8} parent=0 // loop_footer_branch
    %11 = sbr.rel target = $region3
  $region8: #{forward.8} parent=0 // loop_exit
    _

// kernel: forward.9
$region0: #{forward.9}
  #allocation0 [shape = 'u32[]', space=smem, size = 0x4, offset = 0x4, fixed_abs, tag = 'smem constant byte address 0x4 - core index']
  #allocation1 [shape = 'u32[72,128]{1,0:T(1,128)}', space=vmem, size = 0x9000, scoped, tag = 'internal scratch']
  %s0 = inlined_call_operand.vmem [shape: bf16[2,18,128], index: 0, kind: input, shape index: {}]
  %s1 = inlined_call_operand.vmem [shape: bf16[1152,128], index: 1, kind: input, shape index: {}]
  %s2 = inlined_call_operand.vmem [shape: f32[1,128], index: 2, kind: input, shape index: {}]
  %s3 = inlined_call_operand.vmem [shape: f32[2,8,128], index: 3, kind: output, shape index: {}]
  %s4 = sld [smem:[#allocation0]]
  $region45: #{forward.9} parent=0
    _
  %s6 = ssub.s32 1, %s4
  %s7 = scalar_select 0, %s6, %s4
  loop: start=0, step=1, limit=4
  $region2: #{forward.9} parent=0 // loop_pre_header
    _
  $region3: #{forward.9} parent=0 // loop_header
    %s9 = sphi 0, %s13
    %p10 = scmp.ge.s32.totalorder %s9, 4
    %s16 = sphi 0, %s28
    %s17 = sphi 0, %s24
    %s18 = sphi 0, %s16
    %s19 = sphi 0, %s17
    %s20 = sphi 0, %s18
    %s21 = sphi 0, %s19
    %s31 = sphi 0, %s33
    %s34 = sphi 0, %s31
    %s35 = sphi 0, %s34
    %s51 = sphi 0, %s35
    %s55 = sphi 0, %s55
    %s57 = sphi 0, %s55
    %s58 = sphi 0, %s57
    %s72 = sphi 0, %s58
    %s76 = sphi 0, %s76
    %s78 = sphi 0, %s76
    %s79 = sphi 0, %s78
    %s93 = sphi 0, %s79
    %s101 = sphi 0, %s103
    %s104 = sphi 0, %s101
    %s105 = sphi 0, %s104
    %s121 = sphi 0, %s105
  $region4: #{forward.9} parent=0 // loop_header_branch
    %12 = sbr.rel (%p10) target = $region8
  $region5: #{forward.9} parent=0 // loop_body
    %s14 = ssub.s32 %s9, 1
    %s15 = ssub.s32 %s9, 2
    %s22 = sadd.s32 1, %s17
    %p23 = scmp.ge.s32.totalorder %s22, 1
    %s24 = scalar_select %p23, 0, %s22
    %s25 = sadd.s32 1, %s16
    %s26 = scalar_select %p23, %s25, %s16
    %p27 = scmp.ge.s32.totalorder %s26, 2
    %s28 = scalar_select %p27, 0, %s26
    %s29 = ssub.s32 %s16, %s28
    %p30 = scmp.eq.s32.totalorder %s29, 0
    %s32 = sadd.s32 %s31, 1
    %s33 = scalar_select %p30, %s31, %s32
    %p36 = pneg %p30
    %p37 = scmp.eq.s32.totalorder %s9, 1
    %p38 = por %p36, %p37
    %p39 = scmp.ne.s32.totalorder %s31, %s34
    %p40 = scmp.eq.s32.totalorder %s9, 0
    %p41 = por %p39, %p40
    %p42 = scmp.ne.s32.totalorder %s31, %s34
    %p43 = scmp.eq.s32.totalorder %s14, 1
    %p44 = por %p42, %p43
    %p45 = scmp.ne.s32.totalorder %s34, %s35
    %p46 = scmp.eq.s32.totalorder %s14, 0
    %p47 = por %p45, %p46
    %p48 = scmp.ne.s32.totalorder %s34, %s35
    %p49 = scmp.eq.s32.totalorder %s15, 1
    %p50 = por %p48, %p49
    %p52 = scmp.ne.s32.totalorder %s35, %s51
    %p53 = scmp.eq.s32.totalorder %s15, 0
    %p54 = por %p52, %p53
    %s56 = sadd.s32 %s55, 1
    %p59 = scmp.eq.s32.totalorder %s9, 1
    %p60 = scmp.ne.s32.totalorder %s55, %s57
    %p61 = scmp.eq.s32.totalorder %s9, 0
    %p62 = por %p60, %p61
    %p63 = scmp.ne.s32.totalorder %s55, %s57
    %p64 = scmp.eq.s32.totalorder %s14, 1
    %p65 = por %p63, %p64
    %p66 = scmp.ne.s32.totalorder %s57, %s58
    %p67 = scmp.eq.s32.totalorder %s14, 0
    %p68 = por %p66, %p67
    %p69 = scmp.ne.s32.totalorder %s57, %s58
    %p70 = scmp.eq.s32.totalorder %s15, 1
    %p71 = por %p69, %p70
    %p73 = scmp.ne.s32.totalorder %s58, %s72
    %p74 = scmp.eq.s32.totalorder %s15, 0
    %p75 = por %p73, %p74
    %s77 = sadd.s32 %s76, 1
    %p80 = scmp.eq.s32.totalorder %s9, 1
    %p81 = scmp.ne.s32.totalorder %s76, %s78
    %p82 = scmp.eq.s32.totalorder %s9, 0
    %p83 = por %p81, %p82
    %p84 = scmp.ne.s32.totalorder %s76, %s78
    %p85 = scmp.eq.s32.totalorder %s14, 1
    %p86 = por %p84, %p85
    %p87 = scmp.ne.s32.totalorder %s78, %s79
    %p88 = scmp.eq.s32.totalorder %s14, 0
    %p89 = por %p87, %p88
    %p90 = scmp.ne.s32.totalorder %s78, %s79
    %p91 = scmp.eq.s32.totalorder %s15, 1
    %p92 = por %p90, %p91
    %p94 = scmp.ne.s32.totalorder %s79, %s93
    %p95 = scmp.eq.s32.totalorder %s15, 0
    %p96 = por %p94, %p95
    %s97 = ssub.s32 %s16, %s28
    %s98 = ssub.s32 %s17, %s24
    %s99 = sor.u32 %s97, %s98
    %p100 = scmp.eq.s32.totalorder %s99, 0
    %s102 = sadd.s32 %s101, 1
    %s103 = scalar_select %p100, %s101, %s102
    %p106 = pneg %p100
    %p107 = scmp.eq.s32.totalorder %s9, 1
    %p108 = por %p106, %p107
    %p109 = scmp.ne.s32.totalorder %s101, %s104
    %p110 = scmp.eq.s32.totalorder %s9, 0
    %p111 = por %p109, %p110
    %p112 = scmp.ne.s32.totalorder %s101, %s104
    %p113 = scmp.eq.s32.totalorder %s14, 1
    %p114 = por %p112, %p113
    %p115 = scmp.ne.s32.totalorder %s104, %s105
    %p116 = scmp.eq.s32.totalorder %s14, 0
    %p117 = por %p115, %p116
    %p118 = scmp.ne.s32.totalorder %s104, %s105
    %p119 = scmp.eq.s32.totalorder %s15, 1
    %p120 = por %p118, %p119
    %p122 = scmp.ne.s32.totalorder %s105, %s121
    %p123 = scmp.eq.s32.totalorder %s15, 0
    %p124 = por %p122, %p123
    %p125 = scmp.le.s32.totalorder 1, %s9
    %p126 = scmp.lt.s32.totalorder %s9, 3
    %p127 = pnand %p125, %p126
    %p128 = pneg %p127
    // Predicated region
    $region9: #{forward.9} parent=5 // pred_check
      _
    $region10: #{forward.9} parent=5 // pred_check_branch
      %130 = sbr.rel (%p127) target = $region12
    $region11: #{forward.9} parent=5 // pred_region
      %s131 = ssub.s32 %s9, 1
      // Predicated region
      $region13: #{forward.9} parent=11 // pred_check
        %p132 = pneg %p68
      $region14: #{forward.9} parent=11 // pred_check_branch
        %134 = sbr.rel (%p132) target = $region16
      $region15: #{forward.9} parent=11 // pred_region
        _
      $region16: #{forward.9} parent=11 // pred_fallthru
        _
      // Predicated region
      $region17: #{forward.9} parent=11 // pred_check
        %p135 = pneg %p89
      $region18: #{forward.9} parent=11 // pred_check_branch
        %137 = sbr.rel (%p135) target = $region20
      $region19: #{forward.9} parent=11 // pred_region
        _
      $region20: #{forward.9} parent=11 // pred_fallthru
        _
    $region12: #{forward.9} parent=5 // pred_fallthru
      _
    %p138 = scmp.lt.s32.totalorder %s9, 2
    // Predicated region
    $region21: #{forward.9} parent=5 // pred_check
      %p139 = pneg %p138
    $region22: #{forward.9} parent=5 // pred_check_branch
      %141 = sbr.rel (%p139) target = $region24
    $region23: #{forward.9} parent=5 // pred_region
      // Predicated region
      $region25: #{forward.9} parent=23 // pred_check
        %p142 = pneg %p41
      $region26: #{forward.9} parent=23 // pred_check_branch
        %144 = sbr.rel (%p142) target = $region28
      $region27: #{forward.9} parent=23 // pred_region
        %p145 = scmp.lt.s32.totalorder %s16, 1
        %s146 = scalar_select %p145, %s16, 1
        %s147 = smul.addr %s146, 3
        %s148 = smul.addr %s147, 4
        %s149 = scalar_lea.vmem %s0, %s148
      $region28: #{forward.9} parent=23 // pred_fallthru
        _
    $region24: #{forward.9} parent=5 // pred_fallthru
      _
    %p150 = scmp.le.s32.totalorder 1, %s9
    %p151 = scmp.lt.s32.totalorder %s9, 3
    %p152 = pnand %p150, %p151
    %p153 = pneg %p152
    // Predicated region
    $region29: #{forward.9} parent=5 // pred_check
      _
    $region30: #{forward.9} parent=5 // pred_check_branch
      %155 = sbr.rel (%p152) target = $region32
    $region31: #{forward.9} parent=5 // pred_region
      %s156 = ssub.s32 %s9, 1
      %p157 = scmp.lt.s32.totalorder %s18, 1
      %s158 = scalar_select %p157, %s18, 1
      %s159 = smul.addr %s158, 3
      %s160 = smul.addr %s159, 4
      %s161 = scalar_lea.vmem %s0, %s160
      %p162 = pneg %p47
      %p163 = pneg %p44
      %p164 = pneg %p68
      %p165 = pneg %p65
      %p166 = pneg %p89
      %p167 = pneg %p86
      %p168 = pneg %p117
      %p169 = pneg %p114
      %p170 = scmp.lt.s32.totalorder %s18, 1
      %s171 = scalar_select %p170, %s18, 1
      %p172 = scmp.lt.s32.totalorder %s19, 0
      %s173 = scalar_select %p172, %s19, 0
      %s174 = sadd.s32 %s173, %s171
      %s175 = smul.addr %s174, 8
      %s176 = scalar_lea.vmem %s3, %s175
      %p177 = scmp.lt.s32.totalorder %s18, 1
      %s178 = scalar_select %p177, %s18, 1
      %s179 = smul.addr %s178, 3
      %s180 = smul.addr %s179, 4
      %s181 = scalar_lea.vmem %s0, %s180
      %p182 = scmp.lt.s32.totalorder %s18, 1
      %s183 = scalar_select %p182, %s18, 1
      %p184 = scmp.lt.s32.totalorder %s19, 0
      %s185 = scalar_select %p184, %s19, 0
      %s186 = sadd.s32 %s185, %s183
      %s187 = smul.addr %s186, 8
      %s188 = scalar_lea.vmem %s3, %s187
      %s189 = smul.u32 %s19, 8
      %s190 = sshra.s32 %s189, 3
      %s191 = sand.u32 %s189, 7
      %s192 = smul.addr %s190, 4
      %s193 = scalar_lea.vmem %s181, %s192
      %v194 = vld [vmem:[%s193] sm:$0xf]
      %v195 = vld [vmem:[%s193 + $0x4] sm:$0xf]
      %v196 = vld [vmem:[%s193 + $0x8] sm:$0x1]
      %v197 = vunpack.c.l.bf16 %v194
      %v198 = vunpack.c.l.bf16 %v195
      %v199 = vunpack.c.l.bf16 %v196
      %vm200 = vcmp.ge.f32.partialorder %v197, 0.0
      %vm201 = vcmp.ge.f32.partialorder %v198, 0.0
      %vm202 = vcmp.ge.f32.partialorder %v199, 0.0
      %v203 = vmul.f32 %v197, 0.2
      %v204 = vmul.f32 %v198, 0.2
      %v205 = vmul.f32 %v199, 0.2
      %v206 = vsel %vm200, %v197, %v203
      %v207 = vsel %vm201, %v198, %v204
      %v208 = vsel %vm202, %v199, %v205
      %vm211 = vcmask 1046528
      %v212 = vrot.slane %v206, 1
      %v213 = vrot.slane %v207, 1
      %v214 = vsel %vm211, %v212, %v213
      %vm216 = vcmask 1045504
      %v217 = vrot.slane %v206, 2
      %v218 = vrot.slane %v207, 2
      %v219 = vsel %vm216, %v217, %v218
      %vm221 = vcmask 1043456
      %v222 = vrot.slane %v206, 4
      %v223 = vrot.slane %v207, 4
      %v224 = vsel %vm221, %v222, %v223
      %vm226 = vcmask 1042432
      %v227 = vrot.slane %v206, 5
      %v228 = vrot.slane %v207, 5
      %v229 = vsel %vm226, %v227, %v228
      %vm231 = vcmask 1041408
      %v232 = vrot.slane %v206, 6
      %v233 = vrot.slane %v207, 6
      %v234 = vsel %vm231, %v232, %v233
      %v237 = vrot.slane %v208, 1
      %v238 = vsel %vm211, %v213, %v237
      %v240 = vrot.slane %v208, 2
      %v241 = vsel %vm216, %v218, %v240
      %v243 = vpack.c.bf16 %v206, %v206
      %v244 = vpack.c.bf16 %v214, %v214
      %v245 = vpack.c.bf16 %v219, %v219
      %v246 = vpack.c.bf16 %v224, %v224
      %v247 = vpack.c.bf16 %v229, %v229
      %v248 = vpack.c.bf16 %v234, %v234
      %v249 = vpack.c.bf16 %v207, %v207
      %v250 = vpack.c.bf16 %v238, %v238
      %v251 = vpack.c.bf16 %v241, %v241
      %v252 = vld [vmem:[%s1] sm:$0xf]
      %v253 = vld [vmem:[%s1 + $0x4] sm:$0xf]
      %v254 = vld [vmem:[%s1 + $0x8] sm:$0xf]
      %v255 = vld [vmem:[%s1 + $0xc] sm:$0xf]
      %v256 = vld [vmem:[%s1 + $0x10] sm:$0xf]
      %v257 = vld [vmem:[%s1 + $0x14] sm:$0xf]
      %v258 = vld [vmem:[%s1 + $0x18] sm:$0xf]
      %v259 = vld [vmem:[%s1 + $0x1c] sm:$0xf]
      %v260 = vld [vmem:[%s1 + $0x20] sm:$0xf]
      %v261 = vld [vmem:[%s1 + $0x24] sm:$0xf]
      %v262 = vld [vmem:[%s1 + $0x28] sm:$0xf]
      %v263 = vld [vmem:[%s1 + $0x2c] sm:$0xf]
      %v264 = vld [vmem:[%s1 + $0x30] sm:$0xf]
      %v265 = vld [vmem:[%s1 + $0x34] sm:$0xf]
      %v266 = vld [vmem:[%s1 + $0x38] sm:$0xf]
      %v267 = vld [vmem:[%s1 + $0x3c] sm:$0xf]
      %v268 = vld [vmem:[%s1 + $0x40] sm:$0xf]
      %v269 = vld [vmem:[%s1 + $0x44] sm:$0xf]
      %v270 = vld [vmem:[%s1 + $0x48] sm:$0xf]
      %v271 = vld [vmem:[%s1 + $0x4c] sm:$0xf]
      %v272 = vld [vmem:[%s1 + $0x50] sm:$0xf]
      %v273 = vld [vmem:[%s1 + $0x54] sm:$0xf]
      %v274 = vld [vmem:[%s1 + $0x58] sm:$0xf]
      %v275 = vld [vmem:[%s1 + $0x5c] sm:$0xf]
      %v276 = vld [vmem:[%s1 + $0x60] sm:$0xf]
      %v277 = vld [vmem:[%s1 + $0x64] sm:$0xf]
      %v278 = vld [vmem:[%s1 + $0x68] sm:$0xf]
      %v279 = vld [vmem:[%s1 + $0x6c] sm:$0xf]
      %v280 = vld [vmem:[%s1 + $0x70] sm:$0xf]
      %v281 = vld [vmem:[%s1 + $0x74] sm:$0xf]
      %v282 = vld [vmem:[%s1 + $0x78] sm:$0xf]
      %v283 = vld [vmem:[%s1 + $0x7c] sm:$0xf]
      %v284 = vld [vmem:[%s1 + $0x80] sm:$0xf]
      %v285 = vld [vmem:[%s1 + $0x84] sm:$0xf]
      %v286 = vld [vmem:[%s1 + $0x88] sm:$0xf]
      %v287 = vld [vmem:[%s1 + $0x8c] sm:$0xf]
      %v288 = vld [vmem:[%s1 + $0x90] sm:$0xf]
      %v289 = vld [vmem:[%s1 + $0x94] sm:$0xf]
      %v290 = vld [vmem:[%s1 + $0x98] sm:$0xf]
      %v291 = vld [vmem:[%s1 + $0x9c] sm:$0xf]
      %v292 = vld [vmem:[%s1 + $0xa0] sm:$0xf]
      %v293 = vld [vmem:[%s1 + $0xa4] sm:$0xf]
      %v294 = vld [vmem:[%s1 + $0xa8] sm:$0xf]
      %v295 = vld [vmem:[%s1 + $0xac] sm:$0xf]
      %v296 = vld [vmem:[%s1 + $0xb0] sm:$0xf]
      %v297 = vld [vmem:[%s1 + $0xb4] sm:$0xf]
      %v298 = vld [vmem:[%s1 + $0xb8] sm:$0xf]
      %v299 = vld [vmem:[%s1 + $0xbc] sm:$0xf]
      %v300 = vld [vmem:[%s1 + $0xc0] sm:$0xf]
      %v301 = vld [vmem:[%s1 + $0xc4] sm:$0xf]
      %v302 = vld [vmem:[%s1 + $0xc8] sm:$0xf]
      %v303 = vld [vmem:[%s1 + $0xcc] sm:$0xf]
      %v304 = vld [vmem:[%s1 + $0xd0] sm:$0xf]
      %v305 = vld [vmem:[%s1 + $0xd4] sm:$0xf]
      %v306 = vld [vmem:[%s1 + $0xd8] sm:$0xf]
      %v307 = vld [vmem:[%s1 + $0xdc] sm:$0xf]
      %v308 = vld [vmem:[%s1 + $0xe0] sm:$0xf]
      %v309 = vld [vmem:[%s1 + $0xe4] sm:$0xf]
      %v310 = vld [vmem:[%s1 + $0xe8] sm:$0xf]
      %v311 = vld [vmem:[%s1 + $0xec] sm:$0xf]
      %v312 = vld [vmem:[%s1 + $0xf0] sm:$0xf]
      %v313 = vld [vmem:[%s1 + $0xf4] sm:$0xf]
      %v314 = vld [vmem:[%s1 + $0xf8] sm:$0xf]
      %v315 = vld [vmem:[%s1 + $0xfc] sm:$0xf]
      %v316 = vld [vmem:[%s1 + $0x100] sm:$0xf]
      %v317 = vld [vmem:[%s1 + $0x104] sm:$0xf]
      %v318 = vld [vmem:[%s1 + $0x108] sm:$0xf]
      %v319 = vld [vmem:[%s1 + $0x10c] sm:$0xf]
      %v320 = vld [vmem:[%s1 + $0x110] sm:$0xf]
      %v321 = vld [vmem:[%s1 + $0x114] sm:$0xf]
      %v322 = vld [vmem:[%s1 + $0x118] sm:$0xf]
      %v323 = vld [vmem:[%s1 + $0x11c] sm:$0xf]
      %v324 = vld [vmem:[%s1 + $0x120] sm:$0xf]
      %v325 = vld [vmem:[%s1 + $0x124] sm:$0xf]
      %v326 = vld [vmem:[%s1 + $0x128] sm:$0xf]
      %v327 = vld [vmem:[%s1 + $0x12c] sm:$0xf]
      %v328 = vld [vmem:[%s1 + $0x130] sm:$0xf]
      %v329 = vld [vmem:[%s1 + $0x134] sm:$0xf]
      %v330 = vld [vmem:[%s1 + $0x138] sm:$0xf]
      %v331 = vld [vmem:[%s1 + $0x13c] sm:$0xf]
      %v332 = vld [vmem:[%s1 + $0x140] sm:$0xf]
      %v333 = vld [vmem:[%s1 + $0x144] sm:$0xf]
      %v334 = vld [vmem:[%s1 + $0x148] sm:$0xf]
      %v335 = vld [vmem:[%s1 + $0x14c] sm:$0xf]
      %v336 = vld [vmem:[%s1 + $0x150] sm:$0xf]
      %v337 = vld [vmem:[%s1 + $0x154] sm:$0xf]
      %v338 = vld [vmem:[%s1 + $0x158] sm:$0xf]
      %v339 = vld [vmem:[%s1 + $0x15c] sm:$0xf]
      %v340 = vld [vmem:[%s1 + $0x160] sm:$0xf]
      %v341 = vld [vmem:[%s1 + $0x164] sm:$0xf]
      %v342 = vld [vmem:[%s1 + $0x168] sm:$0xf]
      %v343 = vld [vmem:[%s1 + $0x16c] sm:$0xf]
      %v344 = vld [vmem:[%s1 + $0x170] sm:$0xf]
      %v345 = vld [vmem:[%s1 + $0x174] sm:$0xf]
      %v346 = vld [vmem:[%s1 + $0x178] sm:$0xf]
      %v347 = vld [vmem:[%s1 + $0x17c] sm:$0xf]
      %v348 = vld [vmem:[%s1 + $0x180] sm:$0xf]
      %v349 = vld [vmem:[%s1 + $0x184] sm:$0xf]
      %v350 = vld [vmem:[%s1 + $0x188] sm:$0xf]
      %v351 = vld [vmem:[%s1 + $0x18c] sm:$0xf]
      %v352 = vld [vmem:[%s1 + $0x190] sm:$0xf]
      %v353 = vld [vmem:[%s1 + $0x194] sm:$0xf]
      %v354 = vld [vmem:[%s1 + $0x198] sm:$0xf]
      %v355 = vld [vmem:[%s1 + $0x19c] sm:$0xf]
      %v356 = vld [vmem:[%s1 + $0x1a0] sm:$0xf]
      %v357 = vld [vmem:[%s1 + $0x1a4] sm:$0xf]
      %v358 = vld [vmem:[%s1 + $0x1a8] sm:$0xf]
      %v359 = vld [vmem:[%s1 + $0x1ac] sm:$0xf]
      %v360 = vld [vmem:[%s1 + $0x1b0] sm:$0xf]
      %v361 = vld [vmem:[%s1 + $0x1b4] sm:$0xf]
      %v362 = vld [vmem:[%s1 + $0x1b8] sm:$0xf]
      %v363 = vld [vmem:[%s1 + $0x1bc] sm:$0xf]
      %v364 = vld [vmem:[%s1 + $0x1c0] sm:$0xf]
      %v365 = vld [vmem:[%s1 + $0x1c4] sm:$0xf]
      %v366 = vld [vmem:[%s1 + $0x1c8] sm:$0xf]
      %v367 = vld [vmem:[%s1 + $0x1cc] sm:$0xf]
      %v368 = vld [vmem:[%s1 + $0x1d0] sm:$0xf]
      %v369 = vld [vmem:[%s1 + $0x1d4] sm:$0xf]
      %v370 = vld [vmem:[%s1 + $0x1d8] sm:$0xf]
      %v371 = vld [vmem:[%s1 + $0x1dc] sm:$0xf]
      %v372 = vld [vmem:[%s1 + $0x1e0] sm:$0xf]
      %v373 = vld [vmem:[%s1 + $0x1e4] sm:$0xf]
      %v374 = vld [vmem:[%s1 + $0x1e8] sm:$0xf]
      %v375 = vld [vmem:[%s1 + $0x1ec] sm:$0xf]
      %v376 = vld [vmem:[%s1 + $0x1f0] sm:$0xf]
      %v377 = vld [vmem:[%s1 + $0x1f4] sm:$0xf]
      %v378 = vld [vmem:[%s1 + $0x1f8] sm:$0xf]
      %v379 = vld [vmem:[%s1 + $0x1fc] sm:$0xf]
      %v380 = vld [vmem:[%s1 + $0x200] sm:$0xf]
      %v381 = vld [vmem:[%s1 + $0x204] sm:$0xf]
      %v382 = vld [vmem:[%s1 + $0x208] sm:$0xf]
      %v383 = vld [vmem:[%s1 + $0x20c] sm:$0xf]
      %v384 = vld [vmem:[%s1 + $0x210] sm:$0xf]
      %v385 = vld [vmem:[%s1 + $0x214] sm:$0xf]
      %v386 = vld [vmem:[%s1 + $0x218] sm:$0xf]
      %v387 = vld [vmem:[%s1 + $0x21c] sm:$0xf]
      %v388 = vld [vmem:[%s1 + $0x220] sm:$0xf]
      %v389 = vld [vmem:[%s1 + $0x224] sm:$0xf]
      %v390 = vld [vmem:[%s1 + $0x228] sm:$0xf]
      %v391 = vld [vmem:[%s1 + $0x22c] sm:$0xf]
      %v392 = vld [vmem:[%s1 + $0x230] sm:$0xf]
      %v393 = vld [vmem:[%s1 + $0x234] sm:$0xf]
      %v394 = vld [vmem:[%s1 + $0x238] sm:$0xf]
      %v395 = vld [vmem:[%s1 + $0x23c] sm:$0xf]
      %v396 = vld [vmem:[%s2] sm:$0x1]
      %v398 = vperm.slane %v396, 0
      %v544 = vunpack.c.l.b16 %v252
      %v545 = vunpack.c.l.b16 %v253
      %v546 = vunpack.c.l.b16 %v254
      %v547 = vunpack.c.l.b16 %v255
      %v548 = vunpack.c.l.b16 %v256
      %v549 = vunpack.c.l.b16 %v257
      %v550 = vunpack.c.l.b16 %v258
      %v551 = vunpack.c.l.b16 %v259
      %v552 = vunpack.c.l.b16 %v260
      %v553 = vunpack.c.l.b16 %v261
      %v554 = vunpack.c.l.b16 %v262
      %v555 = vunpack.c.l.b16 %v263
      %v556 = vunpack.c.l.b16 %v264
      %v557 = vunpack.c.l.b16 %v265
      %v558 = vunpack.c.l.b16 %v266
      %v559 = vunpack.c.l.b16 %v267
      %v560 = vunpack.c.l.b16 %v268
      %v561 = vunpack.c.l.b16 %v269
      %v562 = vunpack.c.l.b16 %v270
      %v563 = vunpack.c.l.b16 %v271
      %v564 = vunpack.c.l.b16 %v272
      %v565 = vunpack.c.l.b16 %v273
      %v566 = vunpack.c.l.b16 %v274
      %v567 = vunpack.c.l.b16 %v275
      %v568 = vunpack.c.l.b16 %v276
      %v569 = vunpack.c.l.b16 %v277
      %v570 = vunpack.c.l.b16 %v278
      %v571 = vunpack.c.l.b16 %v279
      %v572 = vunpack.c.l.b16 %v280
      %v573 = vunpack.c.l.b16 %v281
      %v574 = vunpack.c.l.b16 %v282
      %v575 = vunpack.c.l.b16 %v283
      %v576 = vunpack.c.l.b16 %v284
      %v577 = vunpack.c.l.b16 %v285
      %v578 = vunpack.c.l.b16 %v286
      %v579 = vunpack.c.l.b16 %v287
      %v580 = vunpack.c.l.b16 %v288
      %v581 = vunpack.c.l.b16 %v289
      %v582 = vunpack.c.l.b16 %v290
      %v583 = vunpack.c.l.b16 %v291
      %v584 = vunpack.c.l.b16 %v292
      %v585 = vunpack.c.l.b16 %v293
      %v586 = vunpack.c.l.b16 %v294
      %v587 = vunpack.c.l.b16 %v295
      %v588 = vunpack.c.l.b16 %v296
      %v589 = vunpack.c.l.b16 %v297
      %v590 = vunpack.c.l.b16 %v298
      %v591 = vunpack.c.l.b16 %v299
      %v592 = vunpack.c.l.b16 %v300
      %v593 = vunpack.c.l.b16 %v301
      %v594 = vunpack.c.l.b16 %v302
      %v595 = vunpack.c.l.b16 %v303
      %v596 = vunpack.c.l.b16 %v304
      %v597 = vunpack.c.l.b16 %v305
      %v598 = vunpack.c.l.b16 %v306
      %v599 = vunpack.c.l.b16 %v307
      %v600 = vunpack.c.l.b16 %v308
      %v601 = vunpack.c.l.b16 %v309
      %v602 = vunpack.c.l.b16 %v310
      %v603 = vunpack.c.l.b16 %v311
      %v604 = vunpack.c.l.b16 %v312
      %v605 = vunpack.c.l.b16 %v313
      %v606 = vunpack.c.l.b16 %v314
      %v607 = vunpack.c.l.b16 %v315
      %v608 = vunpack.c.l.b16 %v316
      %v609 = vunpack.c.l.b16 %v317
      %v610 = vunpack.c.l.b16 %v318
      %v611 = vunpack.c.l.b16 %v319
      %v612 = vunpack.c.l.b16 %v320
      %v613 = vunpack.c.l.b16 %v321
      %v614 = vunpack.c.l.b16 %v322
      %v615 = vunpack.c.l.b16 %v323
      %v616 = vunpack.c.l.b16 %v324
      %v617 = vunpack.c.l.b16 %v325
      %v618 = vunpack.c.l.b16 %v326
      %v619 = vunpack.c.l.b16 %v327
      %v620 = vunpack.c.l.b16 %v328
      %v621 = vunpack.c.l.b16 %v329
      %v622 = vunpack.c.l.b16 %v330
      %v623 = vunpack.c.l.b16 %v331
      %v624 = vunpack.c.l.b16 %v332
      %v625 = vunpack.c.l.b16 %v333
      %v626 = vunpack.c.l.b16 %v334
      %v627 = vunpack.c.l.b16 %v335
      %v628 = vunpack.c.l.b16 %v336
      %v629 = vunpack.c.l.b16 %v337
      %v630 = vunpack.c.l.b16 %v338
      %v631 = vunpack.c.l.b16 %v339
      %v632 = vunpack.c.l.b16 %v340
      %v633 = vunpack.c.l.b16 %v341
      %v634 = vunpack.c.l.b16 %v342
      %v635 = vunpack.c.l.b16 %v343
      %v636 = vunpack.c.l.b16 %v344
      %v637 = vunpack.c.l.b16 %v345
      %v638 = vunpack.c.l.b16 %v346
      %v639 = vunpack.c.l.b16 %v347
      %v640 = vunpack.c.l.b16 %v348
      %v641 = vunpack.c.l.b16 %v349
      %v642 = vunpack.c.l.b16 %v350
      %v643 = vunpack.c.l.b16 %v351
      %v644 = vunpack.c.l.b16 %v352
      %v645 = vunpack.c.l.b16 %v353
      %v646 = vunpack.c.l.b16 %v354
      %v647 = vunpack.c.l.b16 %v355
      %v648 = vunpack.c.l.b16 %v356
      %v649 = vunpack.c.l.b16 %v357
      %v650 = vunpack.c.l.b16 %v358
      %v651 = vunpack.c.l.b16 %v359
      %v652 = vunpack.c.l.b16 %v360
      %v653 = vunpack.c.l.b16 %v361
      %v654 = vunpack.c.l.b16 %v362
      %v655 = vunpack.c.l.b16 %v363
      %v656 = vunpack.c.l.b16 %v364
      %v657 = vunpack.c.l.b16 %v365
      %v658 = vunpack.c.l.b16 %v366
      %v659 = vunpack.c.l.b16 %v367
      %v660 = vunpack.c.l.b16 %v368
      %v661 = vunpack.c.l.b16 %v369
      %v662 = vunpack.c.l.b16 %v370
      %v663 = vunpack.c.l.b16 %v371
      %v664 = vunpack.c.l.b16 %v372
      %v665 = vunpack.c.l.b16 %v373
      %v666 = vunpack.c.l.b16 %v374
      %v667 = vunpack.c.l.b16 %v375
      %v668 = vunpack.c.l.b16 %v376
      %v669 = vunpack.c.l.b16 %v377
      %v670 = vunpack.c.l.b16 %v378
      %v671 = vunpack.c.l.b16 %v379
      %v672 = vunpack.c.l.b16 %v380
      %v673 = vunpack.c.l.b16 %v381
      %v674 = vunpack.c.l.b16 %v382
      %v675 = vunpack.c.l.b16 %v383
      %v676 = vunpack.c.l.b16 %v384
      %v677 = vunpack.c.l.b16 %v385
      %v678 = vunpack.c.l.b16 %v386
      %v679 = vunpack.c.l.b16 %v387
      %v680 = vunpack.c.l.b16 %v388
      %v681 = vunpack.c.l.b16 %v389
      %v682 = vunpack.c.l.b16 %v390
      %v683 = vunpack.c.l.b16 %v391
      %v684 = vunpack.c.l.b16 %v392
      %v685 = vunpack.c.l.b16 %v393
      %v686 = vunpack.c.l.b16 %v394
      %v687 = vunpack.c.l.b16 %v395
      %v688 = vpack.c.b16 %v545, %v544
      %v689 = vpack.c.b16 %v547, %v546
      %v690 = vpack.c.b16 %v549, %v548
      %v691 = vpack.c.b16 %v551, %v550
      %v692 = vpack.c.b16 %v553, %v552
      %v693 = vpack.c.b16 %v555, %v554
      %v694 = vpack.c.b16 %v557, %v556
      %v695 = vpack.c.b16 %v559, %v558
      %v696 = vpack.c.b16 %v561, %v560
      %v697 = vpack.c.b16 %v563, %v562
      %v698 = vpack.c.b16 %v565, %v564
      %v699 = vpack.c.b16 %v567, %v566
      %v700 = vpack.c.b16 %v569, %v568
      %v701 = vpack.c.b16 %v571, %v570
      %v702 = vpack.c.b16 %v573, %v572
      %v703 = vpack.c.b16 %v575, %v574
      %v704 = vpack.c.b16 %v577, %v576
      %v705 = vpack.c.b16 %v579, %v578
      %v706 = vpack.c.b16 %v581, %v580
      %v707 = vpack.c.b16 %v583, %v582
      %v708 = vpack.c.b16 %v585, %v584
      %v709 = vpack.c.b16 %v587, %v586
      %v710 = vpack.c.b16 %v589, %v588
      %v711 = vpack.c.b16 %v591, %v590
      %v712 = vpack.c.b16 %v593, %v592
      %v713 = vpack.c.b16 %v595, %v594
      %v714 = vpack.c.b16 %v597, %v596
      %v715 = vpack.c.b16 %v599, %v598
      %v716 = vpack.c.b16 %v601, %v600
      %v717 = vpack.c.b16 %v603, %v602
      %v718 = vpack.c.b16 %v605, %v604
      %v719 = vpack.c.b16 %v607, %v606
      %v720 = vpack.c.b16 %v609, %v608
      %v721 = vpack.c.b16 %v611, %v610
      %v722 = vpack.c.b16 %v613, %v612
      %v723 = vpack.c.b16 %v615, %v614
      %v724 = vpack.c.b16 %v617, %v616
      %v725 = vpack.c.b16 %v619, %v618
      %v726 = vpack.c.b16 %v621, %v620
      %v727 = vpack.c.b16 %v623, %v622
      %v728 = vpack.c.b16 %v625, %v624
      %v729 = vpack.c.b16 %v627, %v626
      %v730 = vpack.c.b16 %v629, %v628
      %v731 = vpack.c.b16 %v631, %v630
      %v732 = vpack.c.b16 %v633, %v632
      %v733 = vpack.c.b16 %v635, %v634
      %v734 = vpack.c.b16 %v637, %v636
      %v735 = vpack.c.b16 %v639, %v638
      %v736 = vpack.c.b16 %v641, %v640
      %v737 = vpack.c.b16 %v643, %v642
      %v738 = vpack.c.b16 %v645, %v644
      %v739 = vpack.c.b16 %v647, %v646
      %v740 = vpack.c.b16 %v649, %v648
      %v741 = vpack.c.b16 %v651, %v650
      %v742 = vpack.c.b16 %v653, %v652
      %v743 = vpack.c.b16 %v655, %v654
      %v744 = vpack.c.b16 %v657, %v656
      %v745 = vpack.c.b16 %v659, %v658
      %v746 = vpack.c.b16 %v661, %v660
      %v747 = vpack.c.b16 %v663, %v662
      %v748 = vpack.c.b16 %v665, %v664
      %v749 = vpack.c.b16 %v667, %v666
      %v750 = vpack.c.b16 %v669, %v668
      %v751 = vpack.c.b16 %v671, %v670
      %v752 = vpack.c.b16 %v673, %v672
      %v753 = vpack.c.b16 %v675, %v674
      %v754 = vpack.c.b16 %v677, %v676
      %v755 = vpack.c.b16 %v679, %v678
      %v756 = vpack.c.b16 %v681, %v680
      %v757 = vpack.c.b16 %v683, %v682
      %v758 = vpack.c.b16 %v685, %v684
      %v759 = vpack.c.b16 %v687, %v686
      %832 = vmatpush.bf16.msra.mxu0 %v695
      %833 = vmatpush.bf16.msra.mxu0 %v694
      %834 = vmatpush.bf16.msra.mxu0 %v693
      %835 = vmatpush.bf16.msra.mxu0 %v692
      %836 = vmatpush.bf16.msra.mxu0 %v691
      %837 = vmatpush.bf16.msra.mxu0 %v690
      %838 = vmatpush.bf16.msra.mxu0 %v689
      %839 = vmatpush.bf16.msra.mxu0 %v688
      %840 = vmatmul.bf16.gmra.mxu0 %v243
      %v841 = vpop.f32.mrf.mxu0
      %v842 = vadd.f32 %v398, %v841
      %v843 = vpop.f32.mrf.mxu0
      %844 = vdwg.mxu0
      %845 = vmatpush.bf16.msra.mxu0 %v703
      %846 = vmatpush.bf16.msra.mxu0 %v702
      %847 = vmatpush.bf16.msra.mxu0 %v701
      %848 = vmatpush.bf16.msra.mxu0 %v700
      %849 = vmatpush.bf16.msra.mxu0 %v699
      %850 = vmatpush.bf16.msra.mxu0 %v698
      %851 = vmatpush.bf16.msra.mxu0 %v697
      %852 = vmatpush.bf16.msra.mxu0 %v696
      %853 = vmatmul.bf16.gmra.mxu0 %v244
      %v854 = vpop.f32.mrf.mxu0
      %v855 = vadd.f32 %v842, %v854
      %v856 = vpop.f32.mrf.mxu0
      %857 = vdwg.mxu0
      %858 = vmatpush.bf16.msra.mxu0 %v711
      %859 = vmatpush.bf16.msra.mxu0 %v710
      %860 = vmatpush.bf16.msra.mxu0 %v709
      %861 = vmatpush.bf16.msra.mxu0 %v708
      %862 = vmatpush.bf16.msra.mxu0 %v707
      %863 = vmatpush.bf16.msra.mxu0 %v706
      %864 = vmatpush.bf16.msra.mxu0 %v705
      %865 = vmatpush.bf16.msra.mxu0 %v704
      %866 = vmatmul.bf16.gmra.mxu0 %v245
      %v867 = vpop.f32.mrf.mxu0
      %v868 = vadd.f32 %v855, %v867
      %v869 = vpop.f32.mrf.mxu0
      %870 = vdwg.mxu0
      %871 = vmatpush.bf16.msra.mxu0 %v719
      %872 = vmatpush.bf16.msra.mxu0 %v718
      %873 = vmatpush.bf16.msra.mxu0 %v717
      %874 = vmatpush.bf16.msra.mxu0 %v716
      %875 = vmatpush.bf16.msra.mxu0 %v715
      %876 = vmatpush.bf16.msra.mxu0 %v714
      %877 = vmatpush.bf16.msra.mxu0 %v713
      %878 = vmatpush.bf16.msra.mxu0 %v712
      %879 = vmatmul.bf16.gmra.mxu0 %v246
      %v880 = vpop.f32.mrf.mxu0
      %v881 = vadd.f32 %v868, %v880
      %v882 = vpop.f32.mrf.mxu0
      %883 = vdwg.mxu0
      %884 = vmatpush.bf16.msra.mxu0 %v727
      %885 = vmatpush.bf16.msra.mxu0 %v726
      %886 = vmatpush.bf16.msra.mxu0 %v725
      %887 = vmatpush.bf16.msra.mxu0 %v724
      %888 = vmatpush.bf16.msra.mxu0 %v723
      %889 = vmatpush.bf16.msra.mxu0 %v722
      %890 = vmatpush.bf16.msra.mxu0 %v721
      %891 = vmatpush.bf16.msra.mxu0 %v720
      %892 = vmatmul.bf16.gmra.mxu0 %v247
      %v893 = vpop.f32.mrf.mxu0
      %v894 = vadd.f32 %v881, %v893
      %v895 = vpop.f32.mrf.mxu0
      %896 = vdwg.mxu0
      %897 = vmatpush.bf16.msra.mxu0 %v735
      %898 = vmatpush.bf16.msra.mxu0 %v734
      %899 = vmatpush.bf16.msra.mxu0 %v733
      %900 = vmatpush.bf16.msra.mxu0 %v732
      %901 = vmatpush.bf16.msra.mxu0 %v731
      %902 = vmatpush.bf16.msra.mxu0 %v730
      %903 = vmatpush.bf16.msra.mxu0 %v729
      %904 = vmatpush.bf16.msra.mxu0 %v728
      %905 = vmatmul.bf16.gmra.mxu0 %v248
      %v906 = vpop.f32.mrf.mxu0
      %v907 = vadd.f32 %v894, %v906
      %v908 = vpop.f32.mrf.mxu0
      %909 = vdwg.mxu0
      %910 = vmatpush.bf16.msra.mxu0 %v743
      %911 = vmatpush.bf16.msra.mxu0 %v742
      %912 = vmatpush.bf16.msra.mxu0 %v741
      %913 = vmatpush.bf16.msra.mxu0 %v740
      %914 = vmatpush.bf16.msra.mxu0 %v739
      %915 = vmatpush.bf16.msra.mxu0 %v738
      %916 = vmatpush.bf16.msra.mxu0 %v737
      %917 = vmatpush.bf16.msra.mxu0 %v736
      %918 = vmatmul.bf16.gmra.mxu0 %v249
      %v919 = vpop.f32.mrf.mxu0
      %v920 = vadd.f32 %v907, %v919
      %v921 = vpop.f32.mrf.mxu0
      %922 = vdwg.mxu0
      %923 = vmatpush.bf16.msra.mxu0 %v751
      %924 = vmatpush.bf16.msra.mxu0 %v750
      %925 = vmatpush.bf16.msra.mxu0 %v749
      %926 = vmatpush.bf16.msra.mxu0 %v748
      %927 = vmatpush.bf16.msra.mxu0 %v747
      %928 = vmatpush.bf16.msra.mxu0 %v746
      %929 = vmatpush.bf16.msra.mxu0 %v745
      %930 = vmatpush.bf16.msra.mxu0 %v744
      %931 = vmatmul.bf16.gmra.mxu0 %v250
      %v932 = vpop.f32.mrf.mxu0
      %v933 = vadd.f32 %v920, %v932
      %v934 = vpop.f32.mrf.mxu0
      %935 = vdwg.mxu0
      %936 = vmatpush.bf16.msra.mxu0 %v759
      %937 = vmatpush.bf16.msra.mxu0 %v758
      %938 = vmatpush.bf16.msra.mxu0 %v757
      %939 = vmatpush.bf16.msra.mxu0 %v756
      %940 = vmatpush.bf16.msra.mxu0 %v755
      %941 = vmatpush.bf16.msra.mxu0 %v754
      %942 = vmatpush.bf16.msra.mxu0 %v753
      %943 = vmatpush.bf16.msra.mxu0 %v752
      %944 = vmatmul.bf16.gmra.mxu0 %v251
      %v945 = vpop.f32.mrf.mxu0
      %v946 = vadd.f32 %v933, %v945
      %v947 = vpop.f32.mrf.mxu0
      %948 = vdwg.mxu0
      %949 = vst [vmem:[%s188] sm:$0xff] %v946
      %p950 = scmp.lt.s32.totalorder %s18, 1
      %s951 = scalar_select %p950, %s18, 1
      %p952 = scmp.lt.s32.totalorder %s19, 0
      %s953 = scalar_select %p952, %s19, 0
      %s954 = sadd.s32 %s953, %s951
      %s955 = smul.addr %s954, 8
      %s956 = scalar_lea.vmem %s3, %s955
      // Predicated region
      $region33: #{forward.9} parent=31 // pred_check
        %p957 = pneg %p114
      $region34: #{forward.9} parent=31 // pred_check_branch
        %959 = sbr.rel (%p957) target = $region36
      $region35: #{forward.9} parent=31 // pred_region
        _
      $region36: #{forward.9} parent=31 // pred_fallthru
        _
    $region32: #{forward.9} parent=5 // pred_fallthru
      _
    %p960 = scmp.le.s32.totalorder 2, %s9
    // Predicated region
    $region37: #{forward.9} parent=5 // pred_check
      %p961 = pneg %p960
    $region38: #{forward.9} parent=5 // pred_check_branch
      %963 = sbr.rel (%p961) target = $region40
    $region39: #{forward.9} parent=5 // pred_region
      %s964 = ssub.s32 %s9, 2
      // Predicated region
      $region41: #{forward.9} parent=39 // pred_check
        %p965 = pneg %p120
      $region42: #{forward.9} parent=39 // pred_check_branch
        %967 = sbr.rel (%p965) target = $region44
      $region43: #{forward.9} parent=39 // pred_region
        %p968 = scmp.lt.s32.totalorder %s20, 1
        %s969 = scalar_select %p968, %s20, 1
        %p970 = scmp.lt.s32.totalorder %s21, 0
        %s971 = scalar_select %p970, %s21, 0
        %s972 = sadd.s32 %s971, %s969
        %s973 = smul.addr %s972, 8
        %s974 = scalar_lea.vmem %s3, %s973
      $region44: #{forward.9} parent=39 // pred_fallthru
        _
    $region40: #{forward.9} parent=5 // pred_fallthru
      _
  $region6: #{forward.9} parent=0 // loop_footer
    %s13 = sadd.s32 1, %s9
  $region7: #{forward.9} parent=0 // loop_footer_branch
    %8 = sbr.rel target = $region3
  $region8: #{forward.9} parent=0 // loop_exit
    _

</llo_original>
